<compile_context>
chip_gen: v7x
topology: tpu7x:2x2x1
jax: 0.10.0
libtpu: 0.0.40
codegen_flags: <defaults>
</compile_context>

<pallas_src>
import math
from functools import partial

import jax
import jax.numpy as jnp
from jax.experimental import pallas as pl
from jax.experimental.pallas import tpu as pltpu

# ---- model hyper-parameters (small, consistent with the module) -------------
D_MODEL = 32
NHEAD = 4
HEAD_DIM = D_MODEL // NHEAD
DIM_FF = 64
NUM_LAYERS = 2
LN_EPS = 1e-5


def _layernorm(x, gamma, beta):
    mu = jnp.mean(x, axis=-1, keepdims=True)
    xc = x - mu
    var = jnp.mean(xc * xc, axis=-1, keepdims=True)
    return xc * jax.lax.rsqrt(var + LN_EPS) * gamma + beta


def encoder_stack_kernel(src_ref, pos_ref,
                         wqk_ref, bqk_ref, wv_ref, bv_ref,
                         wo_ref, bo_ref, ln1g_ref, ln1b_ref,
                         w1_ref, b1_ref, w2_ref, b2_ref,
                         ln2g_ref, ln2b_ref,
                         out_ref, oslab_ref,
                         *, batch, seq, nhead, num_layers):
    """Whole encoder stack in one invocation; layers statically unrolled."""
    x = src_ref[...]                           # (N, D) f32, N = B*S
    pos = pos_ref[...]                         # (N, D) f32
    n, d = x.shape
    hd = d // nhead

    for l in range(num_layers):                # static unroll over layers
        # ---- fused Q|K projection (+ separate V: no positional embedding) ----
        qk_in = (x + pos).astype(jnp.bfloat16)
        v_in = x.astype(jnp.bfloat16)
        qk = jnp.dot(qk_in, wqk_ref[l],
                     preferred_element_type=jnp.float32) + bqk_ref[l]   # (N, 2D)
        v = jnp.dot(v_in, wv_ref[l],
                    preferred_element_type=jnp.float32) + bv_ref[l]     # (N, D)

        # ---- head-batched attention: fold (head, batch) into one batch dim ----
        # Built with lane slices + major-dim concats only (no 4-D transposes), so
        # the einsums below stay single-batch-dim dot_generals.
        q_hb = jnp.concatenate(
            [qk[:, h * hd:(h + 1) * hd].reshape(batch, seq, hd)
             for h in range(nhead)], axis=0)                            # (H*B, S, hd)
        k_hb = jnp.concatenate(
            [qk[:, d + h * hd:d + (h + 1) * hd].reshape(batch, seq, hd)
             for h in range(nhead)], axis=0)
        v_hb = jnp.concatenate(
            [v[:, h * hd:(h + 1) * hd].reshape(batch, seq, hd)
             for h in range(nhead)], axis=0)

        # 1/sqrt(head_dim) is folded into the Q columns of wqk/bqk at pack time.
        s = jnp.einsum('nqd,nkd->nqk',
                       q_hb.astype(jnp.bfloat16), k_hb.astype(jnp.bfloat16),
                       preferred_element_type=jnp.float32)              # (H*B, S, S)
        s = s - jnp.max(s, axis=-1, keepdims=True)
        e = jnp.exp(s)
        p = e * pl.reciprocal(jnp.sum(e, axis=-1, keepdims=True), approx=True)
        o_hb = jnp.einsum('nqk,nkd->nqd',
                          p.astype(jnp.bfloat16), v_hb.astype(jnp.bfloat16),
                          preferred_element_type=jnp.float32)           # (H*B, S, hd)

        # ---- head merge via VMEM slab + ONE full-width output-projection dot ----
        for h in range(nhead):
            oslab_ref[:, h * hd:(h + 1) * hd] = (
                o_hb[h * batch:(h + 1) * batch].reshape(n, hd))
        attn = jnp.dot(oslab_ref[...].astype(jnp.bfloat16), wo_ref[l],
                       preferred_element_type=jnp.float32) + bo_ref[l]

        x1 = _layernorm(x + attn, ln1g_ref[l], ln1b_ref[l])

        # ---- feed-forward ----
        h1 = jnp.dot(x1.astype(jnp.bfloat16), w1_ref[l],
                     preferred_element_type=jnp.float32) + b1_ref[l]
        h1 = jnp.maximum(h1, 0.0)
        ff = jnp.dot(h1.astype(jnp.bfloat16), w2_ref[l],
                     preferred_element_type=jnp.float32) + b2_ref[l]

        x = _layernorm(x1 + ff, ln2g_ref[l], ln2b_ref[l])

    out_ref[...] = x


def _stack_layer_params(layer_params):
    """Stack per-layer params along a leading layer axis; fuse Q|K and fold the
    1/sqrt(head_dim) scale.  All repacking / bf16 casts happen once here (plain XLA)."""
    scale = 1.0 / math.sqrt(HEAD_DIM)

    def stack(name):
        return jnp.stack([p[name] for p in layer_params], axis=0)

    wqk = jnp.concatenate([stack("wq") * scale, stack("wk")],
                          axis=-1).astype(jnp.bfloat16)        # (L, D, 2D)
    bqk = jnp.concatenate([stack("bq") * scale, stack("bk")], axis=-1)  # (L, 1, 2D)
    wv = stack("wv").astype(jnp.bfloat16)                      # (L, D, D)
    bv = stack("bv")
    wo = stack("wo").astype(jnp.bfloat16)                      # (L, D, D) heads on rows
    bo = stack("bo")
    ln1_g, ln1_b = stack("ln1_g"), stack("ln1_b")
    w1 = stack("w1").astype(jnp.bfloat16)                      # (L, D, FF)
    b1 = stack("b1")
    w2 = stack("w2").astype(jnp.bfloat16)                      # (L, FF, D)
    b2 = stack("b2")
    ln2_g, ln2_b = stack("ln2_g"), stack("ln2_b")
    return (wqk, bqk, wv, bv, wo, bo, ln1_g, ln1_b,
            w1, b1, w2, b2, ln2_g, ln2_b)


def transformer_encoder(src, pos, src_shape, src_start_idx, ref_windows, layer_params):
    """Mirrors TransformerEncoder.forward: loop layers, feed output forward."""
    del src_shape, src_start_idx, ref_windows   # unused by this layer variant
    B, S, D = src.shape
    N = B * S
    L = len(layer_params)

    packed = _stack_layer_params(layer_params)

    kernel = partial(encoder_stack_kernel, batch=B, seq=S, nhead=NHEAD, num_layers=L)

    # Single invocation, no grid: every input/output is a whole-array VMEM block.
    out = pl.pallas_call(
        kernel,
        out_shape=jax.ShapeDtypeStruct((N, D), jnp.float32),
        scratch_shapes=[pltpu.VMEM((N, D), jnp.float32)],   # head-merge slab
    )(src.reshape(N, D), pos.reshape(N, D), *packed)

    return out.reshape(B, S, D)


def init_layer_params(key):
    keys = jax.random.split(key, 8)

    def lin(k, fan_in, fan_out):
        lim = 1.0 / math.sqrt(fan_in)
        return jax.random.uniform(k, (fan_in, fan_out), jnp.float32, -lim, lim)

    return {
        "wq": lin(keys[0], D_MODEL, D_MODEL), "bq": jnp.zeros((1, D_MODEL), jnp.float32),
        "wk": lin(keys[1], D_MODEL, D_MODEL), "bk": jnp.zeros((1, D_MODEL), jnp.float32),
        "wv": lin(keys[2], D_MODEL, D_MODEL), "bv": jnp.zeros((1, D_MODEL), jnp.float32),
        "wo": lin(keys[3], D_MODEL, D_MODEL), "bo": jnp.zeros((1, D_MODEL), jnp.float32),
        "ln1_g": jnp.ones((1, D_MODEL), jnp.float32),
        "ln1_b": jnp.zeros((1, D_MODEL), jnp.float32),
        "w1": lin(keys[4], D_MODEL, DIM_FF), "b1": jnp.zeros((1, DIM_FF), jnp.float32),
        "w2": lin(keys[5], DIM_FF, D_MODEL), "b2": jnp.zeros((1, D_MODEL), jnp.float32),
        "ln2_g": jnp.ones((1, D_MODEL), jnp.float32),
        "ln2_b": jnp.zeros((1, D_MODEL), jnp.float32),
    }


if __name__ == "__main__":
    key = jax.random.PRNGKey(0)
    k_src, k_pos, k_ref, *k_layers = jax.random.split(key, 3 + NUM_LAYERS)

    B, S = 2, 8
    src = jax.random.normal(k_src, (B, S, D_MODEL), jnp.float32)
    pos = jax.random.normal(k_pos, (B, S, D_MODEL), jnp.float32)

    # Auxiliary args carried through (as in the reference forward signature).
    src_shape = jnp.array([[4, 2]], jnp.int32)          # (num_levels, 2)
    src_start_idx = jnp.array([0], jnp.int32)
    ref_windows = jax.random.uniform(k_ref, (B, S, 4), jnp.float32)

    layer_params = [init_layer_params(k) for k in k_layers]

    out = transformer_encoder(src, pos, src_shape, src_start_idx, ref_windows,
                              layer_params)
    jax.block_until_ready(out)
    assert out.shape == (B, S, D_MODEL) and out.dtype == jnp.float32
    assert bool(jnp.isfinite(out).all())
    print("KERNEL_OK")
</pallas_src>

<mosaic_0001>
module attributes {stable_mosaic.version = 11 : i64} {
  func.func @encoder_stack_kernel(%arg0: memref<16x32xf32, #tpu.memory_space<vmem>>, %arg1: memref<16x32xf32, #tpu.memory_space<vmem>>, %arg2: memref<2x32x64xbf16, #tpu.memory_space<vmem>>, %arg3: memref<2x1x64xf32, #tpu.memory_space<vmem>>, %arg4: memref<2x32x32xbf16, #tpu.memory_space<vmem>>, %arg5: memref<2x1x32xf32, #tpu.memory_space<vmem>>, %arg6: memref<2x32x32xbf16, #tpu.memory_space<vmem>>, %arg7: memref<2x1x32xf32, #tpu.memory_space<vmem>>, %arg8: memref<2x1x32xf32, #tpu.memory_space<vmem>>, %arg9: memref<2x1x32xf32, #tpu.memory_space<vmem>>, %arg10: memref<2x32x64xbf16, #tpu.memory_space<vmem>>, %arg11: memref<2x1x64xf32, #tpu.memory_space<vmem>>, %arg12: memref<2x64x32xbf16, #tpu.memory_space<vmem>>, %arg13: memref<2x1x32xf32, #tpu.memory_space<vmem>>, %arg14: memref<2x1x32xf32, #tpu.memory_space<vmem>>, %arg15: memref<2x1x32xf32, #tpu.memory_space<vmem>>, %arg16: memref<16x32xf32, #tpu.memory_space<vmem>>, %arg17: memref<16x32xf32, #tpu.memory_space<vmem>>) attributes {dimension_semantics = [], scalar_prefetch = 0 : i64, scratch_operands = 1 : i64, tpu.core_type = #tpu.core_type<tc>} {
    %c0 = arith.constant 0 : index
    %c0_0 = arith.constant 0 : index
    %0 = vector.load %arg0[%c0, %c0_0] : memref<16x32xf32, #tpu.memory_space<vmem>>, vector<16x32xf32>
    %c0_1 = arith.constant 0 : index
    %c0_2 = arith.constant 0 : index
    %1 = vector.load %arg1[%c0_1, %c0_2] : memref<16x32xf32, #tpu.memory_space<vmem>>, vector<16x32xf32>
    %2 = arith.addf %0, %1 : vector<16x32xf32>
    %3 = arith.truncf %2 : vector<16x32xf32> to vector<16x32xbf16>
    %4 = arith.truncf %0 : vector<16x32xf32> to vector<16x32xbf16>
    %c0_3 = arith.constant 0 : index
    %c0_4 = arith.constant 0 : index
    %c0_5 = arith.constant 0 : index
    %5 = vector.load %arg2[%c0_3, %c0_4, %c0_5] : memref<2x32x64xbf16, #tpu.memory_space<vmem>>, vector<1x32x64xbf16>
    %6 = vector.shape_cast %5 : vector<1x32x64xbf16> to vector<32x64xbf16>
    %cst = arith.constant dense<0.000000e+00> : vector<16x64xf32>
    %7 = tpu.matmul %3, %6, %cst {dimension_numbers = #tpu.dot_dimension_numbers<[1], [0], [0], [1], [0, 0, 1, 1], [], []>} : vector<16x32xbf16>, vector<32x64xbf16>, vector<16x64xf32> -> vector<16x64xf32>
    %c0_6 = arith.constant 0 : index
    %c0_7 = arith.constant 0 : index
    %c0_8 = arith.constant 0 : index
    %8 = vector.load %arg3[%c0_6, %c0_7, %c0_8] : memref<2x1x64xf32, #tpu.memory_space<vmem>>, vector<1x1x64xf32>
    %9 = vector.shape_cast %8 : vector<1x1x64xf32> to vector<1x64xf32>
    %10 = vector.broadcast %9 : vector<1x64xf32> to vector<16x64xf32>
    %11 = arith.addf %7, %10 : vector<16x64xf32>
    %c0_9 = arith.constant 0 : index
    %c0_10 = arith.constant 0 : index
    %c0_11 = arith.constant 0 : index
    %12 = vector.load %arg4[%c0_9, %c0_10, %c0_11] : memref<2x32x32xbf16, #tpu.memory_space<vmem>>, vector<1x32x32xbf16>
    %13 = vector.shape_cast %12 : vector<1x32x32xbf16> to vector<32x32xbf16>
    %cst_12 = arith.constant dense<0.000000e+00> : vector<16x32xf32>
    %14 = tpu.matmul %4, %13, %cst_12 {dimension_numbers = #tpu.dot_dimension_numbers<[1], [0], [0], [1], [0, 0, 1, 1], [], []>} : vector<16x32xbf16>, vector<32x32xbf16>, vector<16x32xf32> -> vector<16x32xf32>
    %c0_13 = arith.constant 0 : index
    %c0_14 = arith.constant 0 : index
    %c0_15 = arith.constant 0 : index
    %15 = vector.load %arg5[%c0_13, %c0_14, %c0_15] : memref<2x1x32xf32, #tpu.memory_space<vmem>>, vector<1x1x32xf32>
    %16 = vector.shape_cast %15 : vector<1x1x32xf32> to vector<1x32xf32>
    %17 = vector.broadcast %16 : vector<1x32xf32> to vector<16x32xf32>
    %18 = arith.addf %14, %17 : vector<16x32xf32>
    %19 = vector.extract_strided_slice %11 {offsets = [0, 0], sizes = [16, 8], strides = [1, 1]} : vector<16x64xf32> to vector<16x8xf32>
    %20 = vector.shape_cast %19 : vector<16x8xf32> to vector<2x8x8xf32>
    %21 = vector.extract_strided_slice %11 {offsets = [0, 8], sizes = [16, 8], strides = [1, 1]} : vector<16x64xf32> to vector<16x8xf32>
    %22 = vector.shape_cast %21 : vector<16x8xf32> to vector<2x8x8xf32>
    %23 = vector.extract_strided_slice %11 {offsets = [0, 16], sizes = [16, 8], strides = [1, 1]} : vector<16x64xf32> to vector<16x8xf32>
    %24 = vector.shape_cast %23 : vector<16x8xf32> to vector<2x8x8xf32>
    %25 = vector.extract_strided_slice %11 {offsets = [0, 24], sizes = [16, 8], strides = [1, 1]} : vector<16x64xf32> to vector<16x8xf32>
    %26 = vector.shape_cast %25 : vector<16x8xf32> to vector<2x8x8xf32>
    %27 = tpu.concatenate %20, %22, %24, %26 in 0 : vector<2x8x8xf32>, vector<2x8x8xf32>, vector<2x8x8xf32>, vector<2x8x8xf32> -> vector<8x8x8xf32>
    %28 = vector.extract_strided_slice %11 {offsets = [0, 32], sizes = [16, 8], strides = [1, 1]} : vector<16x64xf32> to vector<16x8xf32>
    %29 = vector.shape_cast %28 : vector<16x8xf32> to vector<2x8x8xf32>
    %30 = vector.extract_strided_slice %11 {offsets = [0, 40], sizes = [16, 8], strides = [1, 1]} : vector<16x64xf32> to vector<16x8xf32>
    %31 = vector.shape_cast %30 : vector<16x8xf32> to vector<2x8x8xf32>
    %32 = vector.extract_strided_slice %11 {offsets = [0, 48], sizes = [16, 8], strides = [1, 1]} : vector<16x64xf32> to vector<16x8xf32>
    %33 = vector.shape_cast %32 : vector<16x8xf32> to vector<2x8x8xf32>
    %34 = vector.extract_strided_slice %11 {offsets = [0, 56], sizes = [16, 8], strides = [1, 1]} : vector<16x64xf32> to vector<16x8xf32>
    %35 = vector.shape_cast %34 : vector<16x8xf32> to vector<2x8x8xf32>
    %36 = tpu.concatenate %29, %31, %33, %35 in 0 : vector<2x8x8xf32>, vector<2x8x8xf32>, vector<2x8x8xf32>, vector<2x8x8xf32> -> vector<8x8x8xf32>
    %37 = vector.extract_strided_slice %18 {offsets = [0, 0], sizes = [16, 8], strides = [1, 1]} : vector<16x32xf32> to vector<16x8xf32>
    %38 = vector.shape_cast %37 : vector<16x8xf32> to vector<2x8x8xf32>
    %39 = vector.extract_strided_slice %18 {offsets = [0, 8], sizes = [16, 8], strides = [1, 1]} : vector<16x32xf32> to vector<16x8xf32>
    %40 = vector.shape_cast %39 : vector<16x8xf32> to vector<2x8x8xf32>
    %41 = vector.extract_strided_slice %18 {offsets = [0, 16], sizes = [16, 8], strides = [1, 1]} : vector<16x32xf32> to vector<16x8xf32>
    %42 = vector.shape_cast %41 : vector<16x8xf32> to vector<2x8x8xf32>
    %43 = vector.extract_strided_slice %18 {offsets = [0, 24], sizes = [16, 8], strides = [1, 1]} : vector<16x32xf32> to vector<16x8xf32>
    %44 = vector.shape_cast %43 : vector<16x8xf32> to vector<2x8x8xf32>
    %45 = tpu.concatenate %38, %40, %42, %44 in 0 : vector<2x8x8xf32>, vector<2x8x8xf32>, vector<2x8x8xf32>, vector<2x8x8xf32> -> vector<8x8x8xf32>
    %46 = arith.truncf %27 : vector<8x8x8xf32> to vector<8x8x8xbf16>
    %47 = arith.truncf %36 : vector<8x8x8xf32> to vector<8x8x8xbf16>
    "tpu.trace_start"() <{level = 10 : i32, message = "nqd,nkd->nqk"}> : () -> ()
    %cst_16 = arith.constant dense<0.000000e+00> : vector<8x8x8xf32>
    %48 = tpu.matmul %46, %47, %cst_16 {dimension_numbers = #tpu.dot_dimension_numbers<[2], [2], [1], [1], [0, 0, 0, 1, 1, 1], [0], [0]>} : vector<8x8x8xbf16>, vector<8x8x8xbf16>, vector<8x8x8xf32> -> vector<8x8x8xf32>
    "tpu.trace_stop"() : () -> ()
    %cst_17 = arith.constant dense<0xFF800000> : vector<8x8xf32>
    %49 = vector.multi_reduction <maximumf>, %48, %cst_17 [2] : vector<8x8x8xf32> to vector<8x8xf32>
    %50 = vector.shape_cast %49 : vector<8x8xf32> to vector<8x8x1xf32>
    %51 = vector.broadcast %50 : vector<8x8x1xf32> to vector<8x8x8xf32>
    %52 = arith.subf %48, %51 : vector<8x8x8xf32>
    %53 = math.exp %52 : vector<8x8x8xf32>
    %cst_18 = arith.constant dense<0.000000e+00> : vector<8x8xf32>
    %54 = vector.multi_reduction <add>, %53, %cst_18 [2] : vector<8x8x8xf32> to vector<8x8xf32>
    %55 = vector.shape_cast %54 : vector<8x8xf32> to vector<8x8x1xf32>
    %56 = tpu.reciprocal %55 {approx = true} : vector<8x8x1xf32> -> vector<8x8x1xf32>
    %57 = vector.broadcast %56 : vector<8x8x1xf32> to vector<8x8x8xf32>
    %58 = arith.mulf %53, %57 : vector<8x8x8xf32>
    %59 = arith.truncf %58 : vector<8x8x8xf32> to vector<8x8x8xbf16>
    %60 = arith.truncf %45 : vector<8x8x8xf32> to vector<8x8x8xbf16>
    "tpu.trace_start"() <{level = 10 : i32, message = "nqk,nkd->nqd"}> : () -> ()
    %cst_19 = arith.constant dense<0.000000e+00> : vector<8x8x8xf32>
    %61 = tpu.matmul %59, %60, %cst_19 {dimension_numbers = #tpu.dot_dimension_numbers<[2], [1], [1], [2], [0, 0, 0, 1, 1, 2], [0], [0]>} : vector<8x8x8xbf16>, vector<8x8x8xbf16>, vector<8x8x8xf32> -> vector<8x8x8xf32>
    "tpu.trace_stop"() : () -> ()
    %62 = vector.extract_strided_slice %61 {offsets = [0, 0, 0], sizes = [2, 8, 8], strides = [1, 1, 1]} : vector<8x8x8xf32> to vector<2x8x8xf32>
    %63 = vector.shape_cast %62 : vector<2x8x8xf32> to vector<16x8xf32>
    %c0_20 = arith.constant 0 : index
    %c0_21 = arith.constant 0 : index
    %64 = vector.load %arg17[%c0_20, %c0_21] : memref<16x32xf32, #tpu.memory_space<vmem>>, vector<16x8xf32>
    tpu.vector_store %arg17[%c0_20, %c0_21], %63 {strides = array<i32>} : memref<16x32xf32, #tpu.memory_space<vmem>>, vector<16x8xf32>,
    %65 = vector.extract_strided_slice %61 {offsets = [2, 0, 0], sizes = [2, 8, 8], strides = [1, 1, 1]} : vector<8x8x8xf32> to vector<2x8x8xf32>
    %66 = vector.shape_cast %65 : vector<2x8x8xf32> to vector<16x8xf32>
    %c0_22 = arith.constant 0 : index
    %c8 = arith.constant 8 : index
    %67 = vector.load %arg17[%c0_22, %c8] : memref<16x32xf32, #tpu.memory_space<vmem>>, vector<16x8xf32>
    tpu.vector_store %arg17[%c0_22, %c8], %66 {strides = array<i32>} : memref<16x32xf32, #tpu.memory_space<vmem>>, vector<16x8xf32>,
    %68 = vector.extract_strided_slice %61 {offsets = [4, 0, 0], sizes = [2, 8, 8], strides = [1, 1, 1]} : vector<8x8x8xf32> to vector<2x8x8xf32>
    %69 = vector.shape_cast %68 : vector<2x8x8xf32> to vector<16x8xf32>
    %c0_23 = arith.constant 0 : index
    %c16 = arith.constant 16 : index
    %70 = vector.load %arg17[%c0_23, %c16] : memref<16x32xf32, #tpu.memory_space<vmem>>, vector<16x8xf32>
    tpu.vector_store %arg17[%c0_23, %c16], %69 {strides = array<i32>} : memref<16x32xf32, #tpu.memory_space<vmem>>, vector<16x8xf32>,
    %71 = vector.extract_strided_slice %61 {offsets = [6, 0, 0], sizes = [2, 8, 8], strides = [1, 1, 1]} : vector<8x8x8xf32> to vector<2x8x8xf32>
    %72 = vector.shape_cast %71 : vector<2x8x8xf32> to vector<16x8xf32>
    %c0_24 = arith.constant 0 : index
    %c24 = arith.constant 24 : index
    %73 = vector.load %arg17[%c0_24, %c24] : memref<16x32xf32, #tpu.memory_space<vmem>>, vector<16x8xf32>
    tpu.vector_store %arg17[%c0_24, %c24], %72 {strides = array<i32>} : memref<16x32xf32, #tpu.memory_space<vmem>>, vector<16x8xf32>,
    %c0_25 = arith.constant 0 : index
    %c0_26 = arith.constant 0 : index
    %74 = vector.load %arg17[%c0_25, %c0_26] : memref<16x32xf32, #tpu.memory_space<vmem>>, vector<16x32xf32>
    %75 = arith.truncf %74 : vector<16x32xf32> to vector<16x32xbf16>
    %c0_27 = arith.constant 0 : index
    %c0_28 = arith.constant 0 : index
    %c0_29 = arith.constant 0 : index
    %76 = vector.load %arg6[%c0_27, %c0_28, %c0_29] : memref<2x32x32xbf16, #tpu.memory_space<vmem>>, vector<1x32x32xbf16>
    %77 = vector.shape_cast %76 : vector<1x32x32xbf16> to vector<32x32xbf16>
    %cst_30 = arith.constant dense<0.000000e+00> : vector<16x32xf32>
    %78 = tpu.matmul %75, %77, %cst_30 {dimension_numbers = #tpu.dot_dimension_numbers<[1], [0], [0], [1], [0, 0, 1, 1], [], []>} : vector<16x32xbf16>, vector<32x32xbf16>, vector<16x32xf32> -> vector<16x32xf32>
    %c0_31 = arith.constant 0 : index
    %c0_32 = arith.constant 0 : index
    %c0_33 = arith.constant 0 : index
    %79 = vector.load %arg7[%c0_31, %c0_32, %c0_33] : memref<2x1x32xf32, #tpu.memory_space<vmem>>, vector<1x1x32xf32>
    %80 = vector.shape_cast %79 : vector<1x1x32xf32> to vector<1x32xf32>
    %81 = vector.broadcast %80 : vector<1x32xf32> to vector<16x32xf32>
    %82 = arith.addf %78, %81 : vector<16x32xf32>
    %83 = arith.addf %0, %82 : vector<16x32xf32>
    %c0_34 = arith.constant 0 : index
    %c0_35 = arith.constant 0 : index
    %c0_36 = arith.constant 0 : index
    %84 = vector.load %arg8[%c0_34, %c0_35, %c0_36] : memref<2x1x32xf32, #tpu.memory_space<vmem>>, vector<1x1x32xf32>
    %85 = vector.shape_cast %84 : vector<1x1x32xf32> to vector<1x32xf32>
    %c0_37 = arith.constant 0 : index
    %c0_38 = arith.constant 0 : index
    %c0_39 = arith.constant 0 : index
    %86 = vector.load %arg9[%c0_37, %c0_38, %c0_39] : memref<2x1x32xf32, #tpu.memory_space<vmem>>, vector<1x1x32xf32>
    %87 = vector.shape_cast %86 : vector<1x1x32xf32> to vector<1x32xf32>
    %cst_40 = arith.constant dense<0.000000e+00> : vector<16xf32>
    %88 = vector.multi_reduction <add>, %83, %cst_40 [1] : vector<16x32xf32> to vector<16xf32>
    %89 = vector.shape_cast %88 : vector<16xf32> to vector<16x1xf32>
    %cst_41 = arith.constant 3.200000e+01 : f32
    %90 = vector.broadcast %cst_41 : f32 to vector<16x1xf32>
    %91 = arith.divf %89, %90 : vector<16x1xf32>
    %92 = vector.broadcast %91 : vector<16x1xf32> to vector<16x32xf32>
    %93 = arith.subf %83, %92 : vector<16x32xf32>
    %94 = arith.mulf %93, %93 : vector<16x32xf32>
    %cst_42 = arith.constant dense<0.000000e+00> : vector<16xf32>
    %95 = vector.multi_reduction <add>, %94, %cst_42 [1] : vector<16x32xf32> to vector<16xf32>
    %96 = vector.shape_cast %95 : vector<16xf32> to vector<16x1xf32>
    %cst_43 = arith.constant 3.200000e+01 : f32
    %97 = vector.broadcast %cst_43 : f32 to vector<16x1xf32>
    %98 = arith.divf %96, %97 : vector<16x1xf32>
    %cst_44 = arith.constant 9.99999974E-6 : f32
    %99 = vector.broadcast %cst_44 : f32 to vector<16x1xf32>
    %100 = arith.addf %98, %99 : vector<16x1xf32>
    %101 = math.rsqrt %100 : vector<16x1xf32>
    %102 = vector.broadcast %101 : vector<16x1xf32> to vector<16x32xf32>
    %103 = arith.mulf %93, %102 : vector<16x32xf32>
    %104 = vector.broadcast %85 : vector<1x32xf32> to vector<16x32xf32>
    %105 = arith.mulf %103, %104 : vector<16x32xf32>
    %106 = vector.broadcast %87 : vector<1x32xf32> to vector<16x32xf32>
    %107 = arith.addf %105, %106 : vector<16x32xf32>
    %108 = arith.truncf %107 : vector<16x32xf32> to vector<16x32xbf16>
    %c0_45 = arith.constant 0 : index
    %c0_46 = arith.constant 0 : index
    %c0_47 = arith.constant 0 : index
    %109 = vector.load %arg10[%c0_45, %c0_46, %c0_47] : memref<2x32x64xbf16, #tpu.memory_space<vmem>>, vector<1x32x64xbf16>
    %110 = vector.shape_cast %109 : vector<1x32x64xbf16> to vector<32x64xbf16>
    %cst_48 = arith.constant dense<0.000000e+00> : vector<16x64xf32>
    %111 = tpu.matmul %108, %110, %cst_48 {dimension_numbers = #tpu.dot_dimension_numbers<[1], [0], [0], [1], [0, 0, 1, 1], [], []>} : vector<16x32xbf16>, vector<32x64xbf16>, vector<16x64xf32> -> vector<16x64xf32>
    %c0_49 = arith.constant 0 : index
    %c0_50 = arith.constant 0 : index
    %c0_51 = arith.constant 0 : index
    %112 = vector.load %arg11[%c0_49, %c0_50, %c0_51] : memref<2x1x64xf32, #tpu.memory_space<vmem>>, vector<1x1x64xf32>
    %113 = vector.shape_cast %112 : vector<1x1x64xf32> to vector<1x64xf32>
    %114 = vector.broadcast %113 : vector<1x64xf32> to vector<16x64xf32>
    %115 = arith.addf %111, %114 : vector<16x64xf32>
    %cst_52 = arith.constant 0.000000e+00 : f32
    %116 = vector.broadcast %cst_52 : f32 to vector<16x64xf32>
    %117 = arith.maximumf %115, %116 : vector<16x64xf32>
    %118 = arith.truncf %117 : vector<16x64xf32> to vector<16x64xbf16>
    %c0_53 = arith.constant 0 : index
    %c0_54 = arith.constant 0 : index
    %c0_55 = arith.constant 0 : index
    %119 = vector.load %arg12[%c0_53, %c0_54, %c0_55] : memref<2x64x32xbf16, #tpu.memory_space<vmem>>, vector<1x64x32xbf16>
    %120 = vector.shape_cast %119 : vector<1x64x32xbf16> to vector<64x32xbf16>
    %cst_56 = arith.constant dense<0.000000e+00> : vector<16x32xf32>
    %121 = tpu.matmul %118, %120, %cst_56 {dimension_numbers = #tpu.dot_dimension_numbers<[1], [0], [0], [1], [0, 0, 1, 1], [], []>} : vector<16x64xbf16>, vector<64x32xbf16>, vector<16x32xf32> -> vector<16x32xf32>
    %c0_57 = arith.constant 0 : index
    %c0_58 = arith.constant 0 : index
    %c0_59 = arith.constant 0 : index
    %122 = vector.load %arg13[%c0_57, %c0_58, %c0_59] : memref<2x1x32xf32, #tpu.memory_space<vmem>>, vector<1x1x32xf32>
    %123 = vector.shape_cast %122 : vector<1x1x32xf32> to vector<1x32xf32>
    %124 = vector.broadcast %123 : vector<1x32xf32> to vector<16x32xf32>
    %125 = arith.addf %121, %124 : vector<16x32xf32>
    %126 = arith.addf %107, %125 : vector<16x32xf32>
    %c0_60 = arith.constant 0 : index
    %c0_61 = arith.constant 0 : index
    %c0_62 = arith.constant 0 : index
    %127 = vector.load %arg14[%c0_60, %c0_61, %c0_62] : memref<2x1x32xf32, #tpu.memory_space<vmem>>, vector<1x1x32xf32>
    %128 = vector.shape_cast %127 : vector<1x1x32xf32> to vector<1x32xf32>
    %c0_63 = arith.constant 0 : index
    %c0_64 = arith.constant 0 : index
    %c0_65 = arith.constant 0 : index
    %129 = vector.load %arg15[%c0_63, %c0_64, %c0_65] : memref<2x1x32xf32, #tpu.memory_space<vmem>>, vector<1x1x32xf32>
    %130 = vector.shape_cast %129 : vector<1x1x32xf32> to vector<1x32xf32>
    %cst_66 = arith.constant dense<0.000000e+00> : vector<16xf32>
    %131 = vector.multi_reduction <add>, %126, %cst_66 [1] : vector<16x32xf32> to vector<16xf32>
    %132 = vector.shape_cast %131 : vector<16xf32> to vector<16x1xf32>
    %cst_67 = arith.constant 3.200000e+01 : f32
    %133 = vector.broadcast %cst_67 : f32 to vector<16x1xf32>
    %134 = arith.divf %132, %133 : vector<16x1xf32>
    %135 = vector.broadcast %134 : vector<16x1xf32> to vector<16x32xf32>
    %136 = arith.subf %126, %135 : vector<16x32xf32>
    %137 = arith.mulf %136, %136 : vector<16x32xf32>
    %cst_68 = arith.constant dense<0.000000e+00> : vector<16xf32>
    %138 = vector.multi_reduction <add>, %137, %cst_68 [1] : vector<16x32xf32> to vector<16xf32>
    %139 = vector.shape_cast %138 : vector<16xf32> to vector<16x1xf32>
    %cst_69 = arith.constant 3.200000e+01 : f32
    %140 = vector.broadcast %cst_69 : f32 to vector<16x1xf32>
    %141 = arith.divf %139, %140 : vector<16x1xf32>
    %cst_70 = arith.constant 9.99999974E-6 : f32
    %142 = vector.broadcast %cst_70 : f32 to vector<16x1xf32>
    %143 = arith.addf %141, %142 : vector<16x1xf32>
    %144 = math.rsqrt %143 : vector<16x1xf32>
    %145 = vector.broadcast %144 : vector<16x1xf32> to vector<16x32xf32>
    %146 = arith.mulf %136, %145 : vector<16x32xf32>
    %147 = vector.broadcast %128 : vector<1x32xf32> to vector<16x32xf32>
    %148 = arith.mulf %146, %147 : vector<16x32xf32>
    %149 = vector.broadcast %130 : vector<1x32xf32> to vector<16x32xf32>
    %150 = arith.addf %148, %149 : vector<16x32xf32>
    %151 = arith.addf %150, %1 : vector<16x32xf32>
    %152 = arith.truncf %151 : vector<16x32xf32> to vector<16x32xbf16>
    %153 = arith.truncf %150 : vector<16x32xf32> to vector<16x32xbf16>
    %c1 = arith.constant 1 : index
    %c0_71 = arith.constant 0 : index
    %c0_72 = arith.constant 0 : index
    %154 = vector.load %arg2[%c1, %c0_71, %c0_72] : memref<2x32x64xbf16, #tpu.memory_space<vmem>>, vector<1x32x64xbf16>
    %155 = vector.shape_cast %154 : vector<1x32x64xbf16> to vector<32x64xbf16>
    %cst_73 = arith.constant dense<0.000000e+00> : vector<16x64xf32>
    %156 = tpu.matmul %152, %155, %cst_73 {dimension_numbers = #tpu.dot_dimension_numbers<[1], [0], [0], [1], [0, 0, 1, 1], [], []>} : vector<16x32xbf16>, vector<32x64xbf16>, vector<16x64xf32> -> vector<16x64xf32>
    %c1_74 = arith.constant 1 : index
    %c0_75 = arith.constant 0 : index
    %c0_76 = arith.constant 0 : index
    %157 = vector.load %arg3[%c1_74, %c0_75, %c0_76] : memref<2x1x64xf32, #tpu.memory_space<vmem>>, vector<1x1x64xf32>
    %158 = vector.shape_cast %157 : vector<1x1x64xf32> to vector<1x64xf32>
    %159 = vector.broadcast %158 : vector<1x64xf32> to vector<16x64xf32>
    %160 = arith.addf %156, %159 : vector<16x64xf32>
    %c1_77 = arith.constant 1 : index
    %c0_78 = arith.constant 0 : index
    %c0_79 = arith.constant 0 : index
    %161 = vector.load %arg4[%c1_77, %c0_78, %c0_79] : memref<2x32x32xbf16, #tpu.memory_space<vmem>>, vector<1x32x32xbf16>
    %162 = vector.shape_cast %161 : vector<1x32x32xbf16> to vector<32x32xbf16>
    %cst_80 = arith.constant dense<0.000000e+00> : vector<16x32xf32>
    %163 = tpu.matmul %153, %162, %cst_80 {dimension_numbers = #tpu.dot_dimension_numbers<[1], [0], [0], [1], [0, 0, 1, 1], [], []>} : vector<16x32xbf16>, vector<32x32xbf16>, vector<16x32xf32> -> vector<16x32xf32>
    %c1_81 = arith.constant 1 : index
    %c0_82 = arith.constant 0 : index
    %c0_83 = arith.constant 0 : index
    %164 = vector.load %arg5[%c1_81, %c0_82, %c0_83] : memref<2x1x32xf32, #tpu.memory_space<vmem>>, vector<1x1x32xf32>
    %165 = vector.shape_cast %164 : vector<1x1x32xf32> to vector<1x32xf32>
    %166 = vector.broadcast %165 : vector<1x32xf32> to vector<16x32xf32>
    %167 = arith.addf %163, %166 : vector<16x32xf32>
    %168 = vector.extract_strided_slice %160 {offsets = [0, 0], sizes = [16, 8], strides = [1, 1]} : vector<16x64xf32> to vector<16x8xf32>
    %169 = vector.shape_cast %168 : vector<16x8xf32> to vector<2x8x8xf32>
    %170 = vector.extract_strided_slice %160 {offsets = [0, 8], sizes = [16, 8], strides = [1, 1]} : vector<16x64xf32> to vector<16x8xf32>
    %171 = vector.shape_cast %170 : vector<16x8xf32> to vector<2x8x8xf32>
    %172 = vector.extract_strided_slice %160 {offsets = [0, 16], sizes = [16, 8], strides = [1, 1]} : vector<16x64xf32> to vector<16x8xf32>
    %173 = vector.shape_cast %172 : vector<16x8xf32> to vector<2x8x8xf32>
    %174 = vector.extract_strided_slice %160 {offsets = [0, 24], sizes = [16, 8], strides = [1, 1]} : vector<16x64xf32> to vector<16x8xf32>
    %175 = vector.shape_cast %174 : vector<16x8xf32> to vector<2x8x8xf32>
    %176 = tpu.concatenate %169, %171, %173, %175 in 0 : vector<2x8x8xf32>, vector<2x8x8xf32>, vector<2x8x8xf32>, vector<2x8x8xf32> -> vector<8x8x8xf32>
    %177 = vector.extract_strided_slice %160 {offsets = [0, 32], sizes = [16, 8], strides = [1, 1]} : vector<16x64xf32> to vector<16x8xf32>
    %178 = vector.shape_cast %177 : vector<16x8xf32> to vector<2x8x8xf32>
    %179 = vector.extract_strided_slice %160 {offsets = [0, 40], sizes = [16, 8], strides = [1, 1]} : vector<16x64xf32> to vector<16x8xf32>
    %180 = vector.shape_cast %179 : vector<16x8xf32> to vector<2x8x8xf32>
    %181 = vector.extract_strided_slice %160 {offsets = [0, 48], sizes = [16, 8], strides = [1, 1]} : vector<16x64xf32> to vector<16x8xf32>
    %182 = vector.shape_cast %181 : vector<16x8xf32> to vector<2x8x8xf32>
    %183 = vector.extract_strided_slice %160 {offsets = [0, 56], sizes = [16, 8], strides = [1, 1]} : vector<16x64xf32> to vector<16x8xf32>
    %184 = vector.shape_cast %183 : vector<16x8xf32> to vector<2x8x8xf32>
    %185 = tpu.concatenate %178, %180, %182, %184 in 0 : vector<2x8x8xf32>, vector<2x8x8xf32>, vector<2x8x8xf32>, vector<2x8x8xf32> -> vector<8x8x8xf32>
    %186 = vector.extract_strided_slice %167 {offsets = [0, 0], sizes = [16, 8], strides = [1, 1]} : vector<16x32xf32> to vector<16x8xf32>
    %187 = vector.shape_cast %186 : vector<16x8xf32> to vector<2x8x8xf32>
    %188 = vector.extract_strided_slice %167 {offsets = [0, 8], sizes = [16, 8], strides = [1, 1]} : vector<16x32xf32> to vector<16x8xf32>
    %189 = vector.shape_cast %188 : vector<16x8xf32> to vector<2x8x8xf32>
    %190 = vector.extract_strided_slice %167 {offsets = [0, 16], sizes = [16, 8], strides = [1, 1]} : vector<16x32xf32> to vector<16x8xf32>
    %191 = vector.shape_cast %190 : vector<16x8xf32> to vector<2x8x8xf32>
    %192 = vector.extract_strided_slice %167 {offsets = [0, 24], sizes = [16, 8], strides = [1, 1]} : vector<16x32xf32> to vector<16x8xf32>
    %193 = vector.shape_cast %192 : vector<16x8xf32> to vector<2x8x8xf32>
    %194 = tpu.concatenate %187, %189, %191, %193 in 0 : vector<2x8x8xf32>, vector<2x8x8xf32>, vector<2x8x8xf32>, vector<2x8x8xf32> -> vector<8x8x8xf32>
    %195 = arith.truncf %176 : vector<8x8x8xf32> to vector<8x8x8xbf16>
    %196 = arith.truncf %185 : vector<8x8x8xf32> to vector<8x8x8xbf16>
    "tpu.trace_start"() <{level = 10 : i32, message = "nqd,nkd->nqk"}> : () -> ()
    %cst_84 = arith.constant dense<0.000000e+00> : vector<8x8x8xf32>
    %197 = tpu.matmul %195, %196, %cst_84 {dimension_numbers = #tpu.dot_dimension_numbers<[2], [2], [1], [1], [0, 0, 0, 1, 1, 1], [0], [0]>} : vector<8x8x8xbf16>, vector<8x8x8xbf16>, vector<8x8x8xf32> -> vector<8x8x8xf32>
    "tpu.trace_stop"() : () -> ()
    %cst_85 = arith.constant dense<0xFF800000> : vector<8x8xf32>
    %198 = vector.multi_reduction <maximumf>, %197, %cst_85 [2] : vector<8x8x8xf32> to vector<8x8xf32>
    %199 = vector.shape_cast %198 : vector<8x8xf32> to vector<8x8x1xf32>
    %200 = vector.broadcast %199 : vector<8x8x1xf32> to vector<8x8x8xf32>
    %201 = arith.subf %197, %200 : vector<8x8x8xf32>
    %202 = math.exp %201 : vector<8x8x8xf32>
    %cst_86 = arith.constant dense<0.000000e+00> : vector<8x8xf32>
    %203 = vector.multi_reduction <add>, %202, %cst_86 [2] : vector<8x8x8xf32> to vector<8x8xf32>
    %204 = vector.shape_cast %203 : vector<8x8xf32> to vector<8x8x1xf32>
    %205 = tpu.reciprocal %204 {approx = true} : vector<8x8x1xf32> -> vector<8x8x1xf32>
    %206 = vector.broadcast %205 : vector<8x8x1xf32> to vector<8x8x8xf32>
    %207 = arith.mulf %202, %206 : vector<8x8x8xf32>
    %208 = arith.truncf %207 : vector<8x8x8xf32> to vector<8x8x8xbf16>
    %209 = arith.truncf %194 : vector<8x8x8xf32> to vector<8x8x8xbf16>
    "tpu.trace_start"() <{level = 10 : i32, message = "nqk,nkd->nqd"}> : () -> ()
    %cst_87 = arith.constant dense<0.000000e+00> : vector<8x8x8xf32>
    %210 = tpu.matmul %208, %209, %cst_87 {dimension_numbers = #tpu.dot_dimension_numbers<[2], [1], [1], [2], [0, 0, 0, 1, 1, 2], [0], [0]>} : vector<8x8x8xbf16>, vector<8x8x8xbf16>, vector<8x8x8xf32> -> vector<8x8x8xf32>
    "tpu.trace_stop"() : () -> ()
    %211 = vector.extract_strided_slice %210 {offsets = [0, 0, 0], sizes = [2, 8, 8], strides = [1, 1, 1]} : vector<8x8x8xf32> to vector<2x8x8xf32>
    %212 = vector.shape_cast %211 : vector<2x8x8xf32> to vector<16x8xf32>
    %c0_88 = arith.constant 0 : index
    %c0_89 = arith.constant 0 : index
    %213 = vector.load %arg17[%c0_88, %c0_89] : memref<16x32xf32, #tpu.memory_space<vmem>>, vector<16x8xf32>
    tpu.vector_store %arg17[%c0_88, %c0_89], %212 {strides = array<i32>} : memref<16x32xf32, #tpu.memory_space<vmem>>, vector<16x8xf32>,
    %214 = vector.extract_strided_slice %210 {offsets = [2, 0, 0], sizes = [2, 8, 8], strides = [1, 1, 1]} : vector<8x8x8xf32> to vector<2x8x8xf32>
    %215 = vector.shape_cast %214 : vector<2x8x8xf32> to vector<16x8xf32>
    %c0_90 = arith.constant 0 : index
    %c8_91 = arith.constant 8 : index
    %216 = vector.load %arg17[%c0_90, %c8_91] : memref<16x32xf32, #tpu.memory_space<vmem>>, vector<16x8xf32>
    tpu.vector_store %arg17[%c0_90, %c8_91], %215 {strides = array<i32>} : memref<16x32xf32, #tpu.memory_space<vmem>>, vector<16x8xf32>,
    %217 = vector.extract_strided_slice %210 {offsets = [4, 0, 0], sizes = [2, 8, 8], strides = [1, 1, 1]} : vector<8x8x8xf32> to vector<2x8x8xf32>
    %218 = vector.shape_cast %217 : vector<2x8x8xf32> to vector<16x8xf32>
    %c0_92 = arith.constant 0 : index
    %c16_93 = arith.constant 16 : index
    %219 = vector.load %arg17[%c0_92, %c16_93] : memref<16x32xf32, #tpu.memory_space<vmem>>, vector<16x8xf32>
    tpu.vector_store %arg17[%c0_92, %c16_93], %218 {strides = array<i32>} : memref<16x32xf32, #tpu.memory_space<vmem>>, vector<16x8xf32>,
    %220 = vector.extract_strided_slice %210 {offsets = [6, 0, 0], sizes = [2, 8, 8], strides = [1, 1, 1]} : vector<8x8x8xf32> to vector<2x8x8xf32>
    %221 = vector.shape_cast %220 : vector<2x8x8xf32> to vector<16x8xf32>
    %c0_94 = arith.constant 0 : index
    %c24_95 = arith.constant 24 : index
    %222 = vector.load %arg17[%c0_94, %c24_95] : memref<16x32xf32, #tpu.memory_space<vmem>>, vector<16x8xf32>
    tpu.vector_store %arg17[%c0_94, %c24_95], %221 {strides = array<i32>} : memref<16x32xf32, #tpu.memory_space<vmem>>, vector<16x8xf32>,
    %c0_96 = arith.constant 0 : index
    %c0_97 = arith.constant 0 : index
    %223 = vector.load %arg17[%c0_96, %c0_97] : memref<16x32xf32, #tpu.memory_space<vmem>>, vector<16x32xf32>
    %224 = arith.truncf %223 : vector<16x32xf32> to vector<16x32xbf16>
    %c1_98 = arith.constant 1 : index
    %c0_99 = arith.constant 0 : index
    %c0_100 = arith.constant 0 : index
    %225 = vector.load %arg6[%c1_98, %c0_99, %c0_100] : memref<2x32x32xbf16, #tpu.memory_space<vmem>>, vector<1x32x32xbf16>
    %226 = vector.shape_cast %225 : vector<1x32x32xbf16> to vector<32x32xbf16>
    %cst_101 = arith.constant dense<0.000000e+00> : vector<16x32xf32>
    %227 = tpu.matmul %224, %226, %cst_101 {dimension_numbers = #tpu.dot_dimension_numbers<[1], [0], [0], [1], [0, 0, 1, 1], [], []>} : vector<16x32xbf16>, vector<32x32xbf16>, vector<16x32xf32> -> vector<16x32xf32>
    %c1_102 = arith.constant 1 : index
    %c0_103 = arith.constant 0 : index
    %c0_104 = arith.constant 0 : index
    %228 = vector.load %arg7[%c1_102, %c0_103, %c0_104] : memref<2x1x32xf32, #tpu.memory_space<vmem>>, vector<1x1x32xf32>
    %229 = vector.shape_cast %228 : vector<1x1x32xf32> to vector<1x32xf32>
    %230 = vector.broadcast %229 : vector<1x32xf32> to vector<16x32xf32>
    %231 = arith.addf %227, %230 : vector<16x32xf32>
    %232 = arith.addf %150, %231 : vector<16x32xf32>
    %c1_105 = arith.constant 1 : index
    %c0_106 = arith.constant 0 : index
    %c0_107 = arith.constant 0 : index
    %233 = vector.load %arg8[%c1_105, %c0_106, %c0_107] : memref<2x1x32xf32, #tpu.memory_space<vmem>>, vector<1x1x32xf32>
    %234 = vector.shape_cast %233 : vector<1x1x32xf32> to vector<1x32xf32>
    %c1_108 = arith.constant 1 : index
    %c0_109 = arith.constant 0 : index
    %c0_110 = arith.constant 0 : index
    %235 = vector.load %arg9[%c1_108, %c0_109, %c0_110] : memref<2x1x32xf32, #tpu.memory_space<vmem>>, vector<1x1x32xf32>
    %236 = vector.shape_cast %235 : vector<1x1x32xf32> to vector<1x32xf32>
    %cst_111 = arith.constant dense<0.000000e+00> : vector<16xf32>
    %237 = vector.multi_reduction <add>, %232, %cst_111 [1] : vector<16x32xf32> to vector<16xf32>
    %238 = vector.shape_cast %237 : vector<16xf32> to vector<16x1xf32>
    %cst_112 = arith.constant 3.200000e+01 : f32
    %239 = vector.broadcast %cst_112 : f32 to vector<16x1xf32>
    %240 = arith.divf %238, %239 : vector<16x1xf32>
    %241 = vector.broadcast %240 : vector<16x1xf32> to vector<16x32xf32>
    %242 = arith.subf %232, %241 : vector<16x32xf32>
    %243 = arith.mulf %242, %242 : vector<16x32xf32>
    %cst_113 = arith.constant dense<0.000000e+00> : vector<16xf32>
    %244 = vector.multi_reduction <add>, %243, %cst_113 [1] : vector<16x32xf32> to vector<16xf32>
    %245 = vector.shape_cast %244 : vector<16xf32> to vector<16x1xf32>
    %cst_114 = arith.constant 3.200000e+01 : f32
    %246 = vector.broadcast %cst_114 : f32 to vector<16x1xf32>
    %247 = arith.divf %245, %246 : vector<16x1xf32>
    %cst_115 = arith.constant 9.99999974E-6 : f32
    %248 = vector.broadcast %cst_115 : f32 to vector<16x1xf32>
    %249 = arith.addf %247, %248 : vector<16x1xf32>
    %250 = math.rsqrt %249 : vector<16x1xf32>
    %251 = vector.broadcast %250 : vector<16x1xf32> to vector<16x32xf32>
    %252 = arith.mulf %242, %251 : vector<16x32xf32>
    %253 = vector.broadcast %234 : vector<1x32xf32> to vector<16x32xf32>
    %254 = arith.mulf %252, %253 : vector<16x32xf32>
    %255 = vector.broadcast %236 : vector<1x32xf32> to vector<16x32xf32>
    %256 = arith.addf %254, %255 : vector<16x32xf32>
    %257 = arith.truncf %256 : vector<16x32xf32> to vector<16x32xbf16>
    %c1_116 = arith.constant 1 : index
    %c0_117 = arith.constant 0 : index
    %c0_118 = arith.constant 0 : index
    %258 = vector.load %arg10[%c1_116, %c0_117, %c0_118] : memref<2x32x64xbf16, #tpu.memory_space<vmem>>, vector<1x32x64xbf16>
    %259 = vector.shape_cast %258 : vector<1x32x64xbf16> to vector<32x64xbf16>
    %cst_119 = arith.constant dense<0.000000e+00> : vector<16x64xf32>
    %260 = tpu.matmul %257, %259, %cst_119 {dimension_numbers = #tpu.dot_dimension_numbers<[1], [0], [0], [1], [0, 0, 1, 1], [], []>} : vector<16x32xbf16>, vector<32x64xbf16>, vector<16x64xf32> -> vector<16x64xf32>
    %c1_120 = arith.constant 1 : index
    %c0_121 = arith.constant 0 : index
    %c0_122 = arith.constant 0 : index
    %261 = vector.load %arg11[%c1_120, %c0_121, %c0_122] : memref<2x1x64xf32, #tpu.memory_space<vmem>>, vector<1x1x64xf32>
    %262 = vector.shape_cast %261 : vector<1x1x64xf32> to vector<1x64xf32>
    %263 = vector.broadcast %262 : vector<1x64xf32> to vector<16x64xf32>
    %264 = arith.addf %260, %263 : vector<16x64xf32>
    %cst_123 = arith.constant 0.000000e+00 : f32
    %265 = vector.broadcast %cst_123 : f32 to vector<16x64xf32>
    %266 = arith.maximumf %264, %265 : vector<16x64xf32>
    %267 = arith.truncf %266 : vector<16x64xf32> to vector<16x64xbf16>
    %c1_124 = arith.constant 1 : index
    %c0_125 = arith.constant 0 : index
    %c0_126 = arith.constant 0 : index
    %268 = vector.load %arg12[%c1_124, %c0_125, %c0_126] : memref<2x64x32xbf16, #tpu.memory_space<vmem>>, vector<1x64x32xbf16>
    %269 = vector.shape_cast %268 : vector<1x64x32xbf16> to vector<64x32xbf16>
    %cst_127 = arith.constant dense<0.000000e+00> : vector<16x32xf32>
    %270 = tpu.matmul %267, %269, %cst_127 {dimension_numbers = #tpu.dot_dimension_numbers<[1], [0], [0], [1], [0, 0, 1, 1], [], []>} : vector<16x64xbf16>, vector<64x32xbf16>, vector<16x32xf32> -> vector<16x32xf32>
    %c1_128 = arith.constant 1 : index
    %c0_129 = arith.constant 0 : index
    %c0_130 = arith.constant 0 : index
    %271 = vector.load %arg13[%c1_128, %c0_129, %c0_130] : memref<2x1x32xf32, #tpu.memory_space<vmem>>, vector<1x1x32xf32>
    %272 = vector.shape_cast %271 : vector<1x1x32xf32> to vector<1x32xf32>
    %273 = vector.broadcast %272 : vector<1x32xf32> to vector<16x32xf32>
    %274 = arith.addf %270, %273 : vector<16x32xf32>
    %275 = arith.addf %256, %274 : vector<16x32xf32>
    %c1_131 = arith.constant 1 : index
    %c0_132 = arith.constant 0 : index
    %c0_133 = arith.constant 0 : index
    %276 = vector.load %arg14[%c1_131, %c0_132, %c0_133] : memref<2x1x32xf32, #tpu.memory_space<vmem>>, vector<1x1x32xf32>
    %277 = vector.shape_cast %276 : vector<1x1x32xf32> to vector<1x32xf32>
    %c1_134 = arith.constant 1 : index
    %c0_135 = arith.constant 0 : index
    %c0_136 = arith.constant 0 : index
    %278 = vector.load %arg15[%c1_134, %c0_135, %c0_136] : memref<2x1x32xf32, #tpu.memory_space<vmem>>, vector<1x1x32xf32>
    %279 = vector.shape_cast %278 : vector<1x1x32xf32> to vector<1x32xf32>
    %cst_137 = arith.constant dense<0.000000e+00> : vector<16xf32>
    %280 = vector.multi_reduction <add>, %275, %cst_137 [1] : vector<16x32xf32> to vector<16xf32>
    %281 = vector.shape_cast %280 : vector<16xf32> to vector<16x1xf32>
    %cst_138 = arith.constant 3.200000e+01 : f32
    %282 = vector.broadcast %cst_138 : f32 to vector<16x1xf32>
    %283 = arith.divf %281, %282 : vector<16x1xf32>
    %284 = vector.broadcast %283 : vector<16x1xf32> to vector<16x32xf32>
    %285 = arith.subf %275, %284 : vector<16x32xf32>
    %286 = arith.mulf %285, %285 : vector<16x32xf32>
    %cst_139 = arith.constant dense<0.000000e+00> : vector<16xf32>
    %287 = vector.multi_reduction <add>, %286, %cst_139 [1] : vector<16x32xf32> to vector<16xf32>
    %288 = vector.shape_cast %287 : vector<16xf32> to vector<16x1xf32>
    %cst_140 = arith.constant 3.200000e+01 : f32
    %289 = vector.broadcast %cst_140 : f32 to vector<16x1xf32>
    %290 = arith.divf %288, %289 : vector<16x1xf32>
    %cst_141 = arith.constant 9.99999974E-6 : f32
    %291 = vector.broadcast %cst_141 : f32 to vector<16x1xf32>
    %292 = arith.addf %290, %291 : vector<16x1xf32>
    %293 = math.rsqrt %292 : vector<16x1xf32>
    %294 = vector.broadcast %293 : vector<16x1xf32> to vector<16x32xf32>
    %295 = arith.mulf %285, %294 : vector<16x32xf32>
    %296 = vector.broadcast %277 : vector<1x32xf32> to vector<16x32xf32>
    %297 = arith.mulf %295, %296 : vector<16x32xf32>
    %298 = vector.broadcast %279 : vector<1x32xf32> to vector<16x32xf32>
    %299 = arith.addf %297, %298 : vector<16x32xf32>
    %c0_142 = arith.constant 0 : index
    %c0_143 = arith.constant 0 : index
    %300 = vector.load %arg16[%c0_142, %c0_143] : memref<16x32xf32, #tpu.memory_space<vmem>>, vector<16x32xf32>
    tpu.vector_store %arg16[%c0_142, %c0_143], %299 {strides = array<i32>} : memref<16x32xf32, #tpu.memory_space<vmem>>, vector<16x32xf32>,
    return
  }
}

</mosaic_0001>

<llo_original>
// kernel: tpu_custom_call.1
$region0: #{tpu_custom_call.1}
  #allocation0 [shape = 'u32[]', space=smem, size = 0x4, offset = 0x4, fixed_abs, tag = 'smem constant byte address 0x4 - core index']
  #allocation1 [shape = 'u32[144,128]{1,0:T(1,128)}', space=vmem, size = 0x12000, scoped, tag = 'internal scratch']
  #allocation2 [shape = 'f32[16,32]{1,0:T(8,128)}', space=vmem, size = 0x2000, scoped, tag = 'scratch operand']
  %s0 = inlined_call_operand.hbm [shape: f32[16,32], index: 0, kind: input, shape index: {}]
  %s1 = inlined_call_operand.hbm [shape: f32[16,32], index: 1, kind: input, shape index: {}]
  %s2 = inlined_call_operand.vmem [shape: bf16[2,32,64], index: 2, kind: input, shape index: {}]
  %s3 = inlined_call_operand.vmem [shape: f32[2,1,64], index: 3, kind: input, shape index: {}]
  %s4 = inlined_call_operand.vmem [shape: bf16[2,32,32], index: 4, kind: input, shape index: {}]
  %s5 = inlined_call_operand.vmem [shape: f32[2,1,32], index: 5, kind: input, shape index: {}]
  %s6 = inlined_call_operand.vmem [shape: bf16[2,32,32], index: 6, kind: input, shape index: {}]
  %s7 = inlined_call_operand.vmem [shape: f32[2,1,32], index: 7, kind: input, shape index: {}]
  %s8 = inlined_call_operand.vmem [shape: f32[2,1,32], index: 8, kind: input, shape index: {}]
  %s9 = inlined_call_operand.vmem [shape: f32[2,1,32], index: 9, kind: input, shape index: {}]
  %s10 = inlined_call_operand.hbm [shape: bf16[2,32,64], index: 10, kind: input, shape index: {}]
  %s11 = inlined_call_operand.vmem [shape: f32[2,1,64], index: 11, kind: input, shape index: {}]
  %s12 = inlined_call_operand.vmem [shape: bf16[2,64,32], index: 12, kind: input, shape index: {}]
  %s13 = inlined_call_operand.vmem [shape: f32[2,1,32], index: 13, kind: input, shape index: {}]
  %s14 = inlined_call_operand.vmem [shape: f32[2,1,32], index: 14, kind: input, shape index: {}]
  %s15 = inlined_call_operand.vmem [shape: f32[2,1,32], index: 15, kind: input, shape index: {}]
  %s16 = inlined_call_operand.hbm [shape: f32[16,32], index: 16, kind: output, shape index: {}]
  %s17 = sld [smem:[#allocation0]]
  $region86: #{tpu_custom_call.1} parent=0
    _
  %s19 = ssub.s32 1, %s17
  %s20 = scalar_select 0, %s19, %s17
  $region1: #{tpu_custom_call.1} parent=0
    #allocation3 [shape = 'u8[8192]{0}', space=vmem, size = 0x2000, scoped, tag = 'input window, operand 0, single buffered']
    #allocation4 [shape = 's32[1]{0}', space=sflag, size = 0x4, scoped, tag = 'scoped memory for tpu_custom_call.1']
    #allocation5 [shape = 's32[1]{0}', space=sflag, size = 0x4, scoped, tag = 'scoped memory for tpu_custom_call.1']
    #allocation6 [shape = 'u8[8192]{0}', space=vmem, size = 0x2000, scoped, tag = 'input window, operand 1, single buffered']
    #allocation7 [shape = 's32[1]{0}', space=sflag, size = 0x4, scoped, tag = 'scoped memory for tpu_custom_call.1']
    #allocation8 [shape = 'u8[16384]{0}', space=vmem, size = 0x4000, scoped, tag = 'input window, operand 10, single buffered']
    #allocation9 [shape = 'u8[8192]{0}', space=vmem, size = 0x2000, scoped, tag = 'output window, operand 0, single buffered']
    %21 = vsyncpa [#allocation4], 0
    %22 = vsyncpa [#allocation7], 0
    %23 = vsyncpa [#allocation5], 0
    // Predicated region
    $region2: #{tpu_custom_call.1} parent=1 // pred_check
      _
    $region3: #{tpu_custom_call.1} parent=1 // pred_check_branch
      %25 = sbr.rel (0) target = $region5
    $region4: #{tpu_custom_call.1} parent=1 // pred_region
      %s27 = ssub.s32 256, 256
      %28 = vsyncadd [#allocation4], %s27
      %s29 = sshll.u32 [#allocation3], 4
      %s30 = int_to_ptr.vmem [resolvable:$true] %s29
      %35 = dma.hbm_to_vmem [thread:$0]  %s0, 256, %s30, [#allocation4], 128, 128, 8
    $region5: #{tpu_custom_call.1} parent=1 // pred_fallthru
      _
    // Predicated region
    $region6: #{tpu_custom_call.1} parent=1 // pred_check
      _
    $region7: #{tpu_custom_call.1} parent=1 // pred_check_branch
      %37 = sbr.rel (0) target = $region9
    $region8: #{tpu_custom_call.1} parent=1 // pred_region
      %s39 = ssub.s32 256, 256
      %40 = vsyncadd [#allocation7], %s39
      %s41 = sshll.u32 [#allocation6], 4
      %s42 = int_to_ptr.vmem [resolvable:$true] %s41
      %47 = dma.hbm_to_vmem [thread:$0]  %s1, 256, %s42, [#allocation7], 128, 128, 8
    $region9: #{tpu_custom_call.1} parent=1 // pred_fallthru
      _
    // Predicated region
    $region10: #{tpu_custom_call.1} parent=1 // pred_check
      _
    $region11: #{tpu_custom_call.1} parent=1 // pred_check_branch
      %49 = sbr.rel (0) target = $region13
    $region12: #{tpu_custom_call.1} parent=1 // pred_region
      _
    $region13: #{tpu_custom_call.1} parent=1 // pred_fallthru
      _
    // Predicated region
    $region14: #{tpu_custom_call.1} parent=1 // pred_check
      _
    $region15: #{tpu_custom_call.1} parent=1 // pred_check_branch
      %51 = sbr.rel (0) target = $region17
    $region16: #{tpu_custom_call.1} parent=1 // pred_region
      _
    $region17: #{tpu_custom_call.1} parent=1 // pred_fallthru
      _
    // Predicated region
    $region18: #{tpu_custom_call.1} parent=1 // pred_check
      _
    $region19: #{tpu_custom_call.1} parent=1 // pred_check_branch
      %53 = sbr.rel (0) target = $region21
    $region20: #{tpu_custom_call.1} parent=1 // pred_region
      _
    $region21: #{tpu_custom_call.1} parent=1 // pred_fallthru
      _
    // Predicated region
    $region22: #{tpu_custom_call.1} parent=1 // pred_check
      _
    $region23: #{tpu_custom_call.1} parent=1 // pred_check_branch
      %55 = sbr.rel (0) target = $region25
    $region24: #{tpu_custom_call.1} parent=1 // pred_region
      _
    $region25: #{tpu_custom_call.1} parent=1 // pred_fallthru
      _
    // Predicated region
    $region26: #{tpu_custom_call.1} parent=1 // pred_check
      _
    $region27: #{tpu_custom_call.1} parent=1 // pred_check_branch
      %57 = sbr.rel (0) target = $region29
    $region28: #{tpu_custom_call.1} parent=1 // pred_region
      _
    $region29: #{tpu_custom_call.1} parent=1 // pred_fallthru
      _
    // Predicated region
    $region30: #{tpu_custom_call.1} parent=1 // pred_check
      _
    $region31: #{tpu_custom_call.1} parent=1 // pred_check_branch
      %59 = sbr.rel (0) target = $region33
    $region32: #{tpu_custom_call.1} parent=1 // pred_region
      _
    $region33: #{tpu_custom_call.1} parent=1 // pred_fallthru
      _
    // Predicated region
    $region34: #{tpu_custom_call.1} parent=1 // pred_check
      _
    $region35: #{tpu_custom_call.1} parent=1 // pred_check_branch
      %61 = sbr.rel (0) target = $region37
    $region36: #{tpu_custom_call.1} parent=1 // pred_region
      _
    $region37: #{tpu_custom_call.1} parent=1 // pred_fallthru
      _
    // Predicated region
    $region38: #{tpu_custom_call.1} parent=1 // pred_check
      _
    $region39: #{tpu_custom_call.1} parent=1 // pred_check_branch
      %63 = sbr.rel (0) target = $region41
    $region40: #{tpu_custom_call.1} parent=1 // pred_region
      _
    $region41: #{tpu_custom_call.1} parent=1 // pred_fallthru
      _
    // Predicated region
    $region42: #{tpu_custom_call.1} parent=1 // pred_check
      _
    $region43: #{tpu_custom_call.1} parent=1 // pred_check_branch
      %65 = sbr.rel (0) target = $region45
    $region44: #{tpu_custom_call.1} parent=1 // pred_region
      %s67 = ssub.s32 512, 512
      %68 = vsyncadd [#allocation7], %s67
      %s69 = sshll.u32 [#allocation8], 4
      %s70 = int_to_ptr.vmem [resolvable:$true] %s69
      %75 = dma.hbm_to_vmem [thread:$0]  %s10, 512, %s70, [#allocation7], 64, 64, 4
    $region45: #{tpu_custom_call.1} parent=1 // pred_fallthru
      _
    // Predicated region
    $region46: #{tpu_custom_call.1} parent=1 // pred_check
      _
    $region47: #{tpu_custom_call.1} parent=1 // pred_check_branch
      %77 = sbr.rel (0) target = $region49
    $region48: #{tpu_custom_call.1} parent=1 // pred_region
      _
    $region49: #{tpu_custom_call.1} parent=1 // pred_fallthru
      _
    // Predicated region
    $region50: #{tpu_custom_call.1} parent=1 // pred_check
      _
    $region51: #{tpu_custom_call.1} parent=1 // pred_check_branch
      %79 = sbr.rel (0) target = $region53
    $region52: #{tpu_custom_call.1} parent=1 // pred_region
      _
    $region53: #{tpu_custom_call.1} parent=1 // pred_fallthru
      _
    // Predicated region
    $region54: #{tpu_custom_call.1} parent=1 // pred_check
      _
    $region55: #{tpu_custom_call.1} parent=1 // pred_check_branch
      %81 = sbr.rel (0) target = $region57
    $region56: #{tpu_custom_call.1} parent=1 // pred_region
      _
    $region57: #{tpu_custom_call.1} parent=1 // pred_fallthru
      _
    // Predicated region
    $region58: #{tpu_custom_call.1} parent=1 // pred_check
      _
    $region59: #{tpu_custom_call.1} parent=1 // pred_check_branch
      %83 = sbr.rel (0) target = $region61
    $region60: #{tpu_custom_call.1} parent=1 // pred_region
      _
    $region61: #{tpu_custom_call.1} parent=1 // pred_fallthru
      _
    // Predicated region
    $region62: #{tpu_custom_call.1} parent=1 // pred_check
      _
    $region63: #{tpu_custom_call.1} parent=1 // pred_check_branch
      %85 = sbr.rel (0) target = $region65
    $region64: #{tpu_custom_call.1} parent=1 // pred_region
      _
    $region65: #{tpu_custom_call.1} parent=1 // pred_fallthru
      _
    // Predicated region
    $region66: #{tpu_custom_call.1} parent=1 // pred_check
      _
    $region67: #{tpu_custom_call.1} parent=1 // pred_check_branch
      %87 = sbr.rel (0) target = $region69
    $region68: #{tpu_custom_call.1} parent=1 // pred_region
      %88 = dma.done [#allocation4], 256
    $region69: #{tpu_custom_call.1} parent=1 // pred_fallthru
      _
    // Predicated region
    $region70: #{tpu_custom_call.1} parent=1 // pred_check
      _
    $region71: #{tpu_custom_call.1} parent=1 // pred_check_branch
      %90 = sbr.rel (0) target = $region73
    $region72: #{tpu_custom_call.1} parent=1 // pred_region
      %91 = dma.done [#allocation7], 256
    $region73: #{tpu_custom_call.1} parent=1 // pred_fallthru
      _
    // Predicated region
    $region74: #{tpu_custom_call.1} parent=1 // pred_check
      _
    $region75: #{tpu_custom_call.1} parent=1 // pred_check_branch
      %93 = sbr.rel (0) target = $region77
    $region76: #{tpu_custom_call.1} parent=1 // pred_region
      %94 = dma.done [#allocation7], 512
    $region77: #{tpu_custom_call.1} parent=1 // pred_fallthru
      _
    %v96 = vld [vmem:[#allocation3] sm:$0xff]
    %v97 = vld [vmem:[#allocation3 + $0x8] sm:$0xff]
    %v98 = vld [vmem:[#allocation6] sm:$0xff]
    %v99 = vld [vmem:[#allocation6 + $0x8] sm:$0xff]
    %v100 = vadd.f32 %v96, %v98
    %v101 = vadd.f32 %v97, %v99
    %v102 = vpack.c.bf16 %v101, %v100
    %v103 = vpack.c.bf16 %v97, %v96
    %v104 = vld [vmem:[%s2] sm:$0xf]
    %v105 = vld [vmem:[%s2 + $0x4] sm:$0xf]
    %v106 = vld [vmem:[%s2 + $0x8] sm:$0xf]
    %v107 = vld [vmem:[%s2 + $0xc] sm:$0xf]
    %v108 = vld [vmem:[%s3] sm:$0x1]
    %v110 = vlaneseq
    %v111 = vshrl.u32 %v110, 7
    %v112 = vsub.s32 0, %v111
    %v113 = vrot.slane %v108, %v112
    %v119 = vunpack.c.l.b16 %v104
    %v120 = vunpack.c.l.b16 %v105
    %v121 = vunpack.c.l.b16 %v106
    %v122 = vunpack.c.l.b16 %v107
    %v123 = vpack.c.b16 %v120, %v119
    %v124 = vpack.c.b16 %v122, %v121
    %vm127 = vcmask 261120
    %v129 = vsel %vm127, %v102, 0
    %131 = vmatprep.subr.bf16.mxu0 0
    %132 = vmatpush1.bf16.msra.mxu0 %v123
    %133 = vmatprep.subr.bf16.mxu0 0
    %134 = vmatpush1.bf16.msra.mxu0 %v124
    %135 = vmatprep.subr.bf16.mxu0 0
    %136 = vmatpush1.bf16.msra.mxu0 0
    %137 = vmatprep.subr.bf16.mxu0 0
    %138 = vmatpush1.bf16.msra.mxu0 0
    %139 = vmatprep.subr.bf16.mxu0 0
    %140 = vmatpush1.bf16.msra.mxu0 0
    %141 = vmatprep.subr.bf16.mxu0 0
    %142 = vmatpush1.bf16.msra.mxu0 0
    %143 = vmatprep.subr.bf16.mxu0 0
    %144 = vmatpush1.bf16.msra.mxu0 0
    %145 = vmatprep.subr.bf16.mxu0 0
    %146 = vmatpush1.bf16.msra.mxu0 0
    %147 = vmatprep.subr.bf16.mxu0 0
    %148 = vmatpush1.bf16.msra.mxu0 0
    %149 = vmatprep.subr.bf16.mxu0 0
    %150 = vmatpush1.bf16.msra.mxu0 0
    %151 = vmatprep.subr.bf16.mxu0 0
    %152 = vmatpush1.bf16.msra.mxu0 0
    %153 = vmatprep.subr.bf16.mxu0 0
    %154 = vmatpush1.bf16.msra.mxu0 0
    %155 = vmatprep.subr.bf16.mxu0 0
    %156 = vmatpush1.bf16.msra.mxu0 0
    %157 = vmatprep.subr.bf16.mxu0 0
    %158 = vmatpush1.bf16.msra.mxu0 0
    %159 = vmatprep.subr.bf16.mxu0 0
    %160 = vmatpush1.bf16.msra.mxu0 0
    %161 = vmatprep.subr.bf16.mxu0 0
    %162 = vmatpush1.bf16.msra.mxu0 0
    %163 = vmatprep.mubr.bf16.mxu0 0
    %164 = vmatmul.mubr.bf16.gmra.mrb[0].mxu0 %v129
    %v165 = vpop.f32.mrb[0].mxu0
    %v166 = vadd.f32 %v113, %v165
    %v167 = vpop.f32.mrb[0].mxu0
    %v168 = vpop.f32.mrb[0].mxu0
    %v169 = vadd.f32 %v113, %v168
    %v170 = vpop.f32.mrb[0].mxu0
    %171 = vdwg.mxu0
    %v172 = vld [vmem:[%s4] sm:$0xf]
    %v173 = vld [vmem:[%s4 + $0x4] sm:$0xf]
    %v174 = vld [vmem:[%s4 + $0x8] sm:$0xf]
    %v175 = vld [vmem:[%s4 + $0xc] sm:$0xf]
    %v176 = vld [vmem:[%s5] sm:$0x1]
    %v178 = vlaneseq
    %v179 = vshrl.u32 %v178, 7
    %v180 = vsub.s32 0, %v179
    %v181 = vrot.slane %v176, %v180
    %v187 = vunpack.c.l.b16 %v172
    %v188 = vunpack.c.l.b16 %v173
    %v189 = vunpack.c.l.b16 %v174
    %v190 = vunpack.c.l.b16 %v175
    %v191 = vpack.c.b16 %v188, %v187
    %v192 = vpack.c.b16 %v190, %v189
    %v196 = vsel %vm127, %v103, 0
    %198 = vmatprep.subr.bf16.mxu0 0
    %199 = vmatpush1.bf16.msra.mxu0 %v191
    %200 = vmatprep.subr.bf16.mxu0 0
    %201 = vmatpush1.bf16.msra.mxu0 %v192
    %202 = vmatprep.subr.bf16.mxu0 0
    %203 = vmatpush1.bf16.msra.mxu0 0
    %204 = vmatprep.subr.bf16.mxu0 0
    %205 = vmatpush1.bf16.msra.mxu0 0
    %206 = vmatprep.subr.bf16.mxu0 0
    %207 = vmatpush1.bf16.msra.mxu0 0
    %208 = vmatprep.subr.bf16.mxu0 0
    %209 = vmatpush1.bf16.msra.mxu0 0
    %210 = vmatprep.subr.bf16.mxu0 0
    %211 = vmatpush1.bf16.msra.mxu0 0
    %212 = vmatprep.subr.bf16.mxu0 0
    %213 = vmatpush1.bf16.msra.mxu0 0
    %214 = vmatprep.subr.bf16.mxu0 0
    %215 = vmatpush1.bf16.msra.mxu0 0
    %216 = vmatprep.subr.bf16.mxu0 0
    %217 = vmatpush1.bf16.msra.mxu0 0
    %218 = vmatprep.subr.bf16.mxu0 0
    %219 = vmatpush1.bf16.msra.mxu0 0
    %220 = vmatprep.subr.bf16.mxu0 0
    %221 = vmatpush1.bf16.msra.mxu0 0
    %222 = vmatprep.subr.bf16.mxu0 0
    %223 = vmatpush1.bf16.msra.mxu0 0
    %224 = vmatprep.subr.bf16.mxu0 0
    %225 = vmatpush1.bf16.msra.mxu0 0
    %226 = vmatprep.subr.bf16.mxu0 0
    %227 = vmatpush1.bf16.msra.mxu0 0
    %228 = vmatprep.subr.bf16.mxu0 0
    %229 = vmatpush1.bf16.msra.mxu0 0
    %230 = vmatprep.mubr.bf16.mxu0 0
    %231 = vmatmul.mubr.bf16.gmra.mrb[0].mxu0 %v196
    %v232 = vpop.f32.mrb[0].mxu0
    %v233 = vadd.f32 %v181, %v232
    %v234 = vpop.f32.mrb[0].mxu0
    %v235 = vpop.f32.mrb[0].mxu0
    %v236 = vadd.f32 %v181, %v235
    %v237 = vpop.f32.mrb[0].mxu0
    %238 = vdwg.mxu0
    %241 = vrot.lane.b32.xlu0 %v166, 120
    %v242 = vpop.permute.xlu0 %241
    %243 = vrot.lane.b32.xlu0 %v169, 120
    %v244 = vpop.permute.xlu0 %243
    %247 = vrot.lane.b32.xlu0 %v166, 112
    %v248 = vpop.permute.xlu0 %247
    %249 = vrot.lane.b32.xlu0 %v169, 112
    %v250 = vpop.permute.xlu0 %249
    %253 = vrot.lane.b32.xlu0 %v166, 104
    %v254 = vpop.permute.xlu0 %253
    %255 = vrot.lane.b32.xlu0 %v169, 104
    %v256 = vpop.permute.xlu0 %255
    %261 = vrot.lane.b32.xlu0 %v233, 120
    %v262 = vpop.permute.xlu0 %261
    %263 = vrot.lane.b32.xlu0 %v236, 120
    %v264 = vpop.permute.xlu0 %263
    %267 = vrot.lane.b32.xlu0 %v233, 112
    %v268 = vpop.permute.xlu0 %267
    %269 = vrot.lane.b32.xlu0 %v236, 112
    %v270 = vpop.permute.xlu0 %269
    %273 = vrot.lane.b32.xlu0 %v233, 104
    %v274 = vpop.permute.xlu0 %273
    %275 = vrot.lane.b32.xlu0 %v236, 104
    %v276 = vpop.permute.xlu0 %275
    %v279 = vpack.c.bf16 %v166, %v166
    %v280 = vpack.c.bf16 %v169, %v169
    %v281 = vpack.c.bf16 %v242, %v242
    %v282 = vpack.c.bf16 %v244, %v244
    %v283 = vpack.c.bf16 %v248, %v248
    %v284 = vpack.c.bf16 %v250, %v250
    %v285 = vpack.c.bf16 %v254, %v254
    %v286 = vpack.c.bf16 %v256, %v256
    %288 = vrot.lane.b32.xlu0 %v279, 96
    %v289 = vpop.permute.xlu0 %288
    %vm290 = vcmask 64512
    %v292 = vsel %vm290, %v279, 0
    %v295 = vsel %vm290, %v289, 0
    %297 = vmatprep.subr.bf16.mxu0 0
    %298 = vmatpush1.bf16.xpose.msra.mxu0 %v295
    %299 = vmatprep.subr.bf16.mxu0 0
    %300 = vmatpush1.bf16.xpose.msra.mxu0 0
    %301 = vmatprep.subr.bf16.mxu0 0
    %302 = vmatpush1.bf16.xpose.msra.mxu0 0
    %303 = vmatprep.subr.bf16.mxu0 0
    %304 = vmatpush1.bf16.xpose.msra.mxu0 0
    %305 = vmatprep.subr.bf16.mxu0 0
    %306 = vmatpush1.bf16.xpose.msra.mxu0 0
    %307 = vmatprep.subr.bf16.mxu0 0
    %308 = vmatpush1.bf16.xpose.msra.mxu0 0
    %309 = vmatprep.subr.bf16.mxu0 0
    %310 = vmatpush1.bf16.xpose.msra.mxu0 0
    %311 = vmatprep.subr.bf16.mxu0 0
    %312 = vmatpush1.bf16.xpose.msra.mxu0 0
    %313 = vmatprep.subr.bf16.mxu0 0
    %314 = vmatpush1.bf16.xpose.msra.mxu0 0
    %315 = vmatprep.subr.bf16.mxu0 0
    %316 = vmatpush1.bf16.xpose.msra.mxu0 0
    %317 = vmatprep.subr.bf16.mxu0 0
    %318 = vmatpush1.bf16.xpose.msra.mxu0 0
    %319 = vmatprep.subr.bf16.mxu0 0
    %320 = vmatpush1.bf16.xpose.msra.mxu0 0
    %321 = vmatprep.subr.bf16.mxu0 0
    %322 = vmatpush1.bf16.xpose.msra.mxu0 0
    %323 = vmatprep.subr.bf16.mxu0 0
    %324 = vmatpush1.bf16.xpose.msra.mxu0 0
    %325 = vmatprep.subr.bf16.mxu0 0
    %326 = vmatpush1.bf16.xpose.msra.mxu0 0
    %327 = vmatprep.subr.bf16.mxu0 0
    %328 = vmatpush1.bf16.xpose.msra.mxu0 0
    %329 = vmatprep.mubr.bf16.mxu0 0
    %330 = vmatmul.mubr.bf16.gmra.mrb[0].mxu0 %v292
    %v331 = vpop.f32.mrb[0].mxu0
    %v332 = vadd.f32 0.0, %v331
    %v333 = vpop.f32.mrb[0].mxu0
    %v334 = vpop.f32.mrb[0].mxu0
    %v335 = vpop.f32.mrb[0].mxu0
    %336 = vdwg.mxu0
    %338 = vrot.lane.b32.xlu0 %v280, 96
    %v339 = vpop.permute.xlu0 %338
    %v341 = vsel %vm290, %v280, 0
    %v344 = vsel %vm290, %v339, 0
    %346 = vmatprep.subr.bf16.mxu0 0
    %347 = vmatpush1.bf16.xpose.msra.mxu0 %v344
    %348 = vmatprep.subr.bf16.mxu0 0
    %349 = vmatpush1.bf16.xpose.msra.mxu0 0
    %350 = vmatprep.subr.bf16.mxu0 0
    %351 = vmatpush1.bf16.xpose.msra.mxu0 0
    %352 = vmatprep.subr.bf16.mxu0 0
    %353 = vmatpush1.bf16.xpose.msra.mxu0 0
    %354 = vmatprep.subr.bf16.mxu0 0
    %355 = vmatpush1.bf16.xpose.msra.mxu0 0
    %356 = vmatprep.subr.bf16.mxu0 0
    %357 = vmatpush1.bf16.xpose.msra.mxu0 0
    %358 = vmatprep.subr.bf16.mxu0 0
    %359 = vmatpush1.bf16.xpose.msra.mxu0 0
    %360 = vmatprep.subr.bf16.mxu0 0
    %361 = vmatpush1.bf16.xpose.msra.mxu0 0
    %362 = vmatprep.subr.bf16.mxu0 0
    %363 = vmatpush1.bf16.xpose.msra.mxu0 0
    %364 = vmatprep.subr.bf16.mxu0 0
    %365 = vmatpush1.bf16.xpose.msra.mxu0 0
    %366 = vmatprep.subr.bf16.mxu0 0
    %367 = vmatpush1.bf16.xpose.msra.mxu0 0
    %368 = vmatprep.subr.bf16.mxu0 0
    %369 = vmatpush1.bf16.xpose.msra.mxu0 0
    %370 = vmatprep.subr.bf16.mxu0 0
    %371 = vmatpush1.bf16.xpose.msra.mxu0 0
    %372 = vmatprep.subr.bf16.mxu0 0
    %373 = vmatpush1.bf16.xpose.msra.mxu0 0
    %374 = vmatprep.subr.bf16.mxu0 0
    %375 = vmatpush1.bf16.xpose.msra.mxu0 0
    %376 = vmatprep.subr.bf16.mxu0 0
    %377 = vmatpush1.bf16.xpose.msra.mxu0 0
    %378 = vmatprep.mubr.bf16.mxu0 0
    %379 = vmatmul.mubr.bf16.gmra.mrb[0].mxu0 %v341
    %v380 = vpop.f32.mrb[0].mxu0
    %v381 = vadd.f32 0.0, %v380
    %v382 = vpop.f32.mrb[0].mxu0
    %v383 = vpop.f32.mrb[0].mxu0
    %v384 = vpop.f32.mrb[0].mxu0
    %385 = vdwg.mxu0
    %387 = vrot.lane.b32.xlu0 %v281, 96
    %v388 = vpop.permute.xlu0 %387
    %v390 = vsel %vm290, %v281, 0
    %v393 = vsel %vm290, %v388, 0
    %395 = vmatprep.subr.bf16.mxu0 0
    %396 = vmatpush1.bf16.xpose.msra.mxu0 %v393
    %397 = vmatprep.subr.bf16.mxu0 0
    %398 = vmatpush1.bf16.xpose.msra.mxu0 0
    %399 = vmatprep.subr.bf16.mxu0 0
    %400 = vmatpush1.bf16.xpose.msra.mxu0 0
    %401 = vmatprep.subr.bf16.mxu0 0
    %402 = vmatpush1.bf16.xpose.msra.mxu0 0
    %403 = vmatprep.subr.bf16.mxu0 0
    %404 = vmatpush1.bf16.xpose.msra.mxu0 0
    %405 = vmatprep.subr.bf16.mxu0 0
    %406 = vmatpush1.bf16.xpose.msra.mxu0 0
    %407 = vmatprep.subr.bf16.mxu0 0
    %408 = vmatpush1.bf16.xpose.msra.mxu0 0
    %409 = vmatprep.subr.bf16.mxu0 0
    %410 = vmatpush1.bf16.xpose.msra.mxu0 0
    %411 = vmatprep.subr.bf16.mxu0 0
    %412 = vmatpush1.bf16.xpose.msra.mxu0 0
    %413 = vmatprep.subr.bf16.mxu0 0
    %414 = vmatpush1.bf16.xpose.msra.mxu0 0
    %415 = vmatprep.subr.bf16.mxu0 0
    %416 = vmatpush1.bf16.xpose.msra.mxu0 0
    %417 = vmatprep.subr.bf16.mxu0 0
    %418 = vmatpush1.bf16.xpose.msra.mxu0 0
    %419 = vmatprep.subr.bf16.mxu0 0
    %420 = vmatpush1.bf16.xpose.msra.mxu0 0
    %421 = vmatprep.subr.bf16.mxu0 0
    %422 = vmatpush1.bf16.xpose.msra.mxu0 0
    %423 = vmatprep.subr.bf16.mxu0 0
    %424 = vmatpush1.bf16.xpose.msra.mxu0 0
    %425 = vmatprep.subr.bf16.mxu0 0
    %426 = vmatpush1.bf16.xpose.msra.mxu0 0
    %427 = vmatprep.mubr.bf16.mxu0 0
    %428 = vmatmul.mubr.bf16.gmra.mrb[0].mxu0 %v390
    %v429 = vpop.f32.mrb[0].mxu0
    %v430 = vadd.f32 0.0, %v429
    %v431 = vpop.f32.mrb[0].mxu0
    %v432 = vpop.f32.mrb[0].mxu0
    %v433 = vpop.f32.mrb[0].mxu0
    %434 = vdwg.mxu0
    %436 = vrot.lane.b32.xlu0 %v282, 96
    %v437 = vpop.permute.xlu0 %436
    %v439 = vsel %vm290, %v282, 0
    %v442 = vsel %vm290, %v437, 0
    %444 = vmatprep.subr.bf16.mxu0 0
    %445 = vmatpush1.bf16.xpose.msra.mxu0 %v442
    %446 = vmatprep.subr.bf16.mxu0 0
    %447 = vmatpush1.bf16.xpose.msra.mxu0 0
    %448 = vmatprep.subr.bf16.mxu0 0
    %449 = vmatpush1.bf16.xpose.msra.mxu0 0
    %450 = vmatprep.subr.bf16.mxu0 0
    %451 = vmatpush1.bf16.xpose.msra.mxu0 0
    %452 = vmatprep.subr.bf16.mxu0 0
    %453 = vmatpush1.bf16.xpose.msra.mxu0 0
    %454 = vmatprep.subr.bf16.mxu0 0
    %455 = vmatpush1.bf16.xpose.msra.mxu0 0
    %456 = vmatprep.subr.bf16.mxu0 0
    %457 = vmatpush1.bf16.xpose.msra.mxu0 0
    %458 = vmatprep.subr.bf16.mxu0 0
    %459 = vmatpush1.bf16.xpose.msra.mxu0 0
    %460 = vmatprep.subr.bf16.mxu0 0
    %461 = vmatpush1.bf16.xpose.msra.mxu0 0
    %462 = vmatprep.subr.bf16.mxu0 0
    %463 = vmatpush1.bf16.xpose.msra.mxu0 0
    %464 = vmatprep.subr.bf16.mxu0 0
    %465 = vmatpush1.bf16.xpose.msra.mxu0 0
    %466 = vmatprep.subr.bf16.mxu0 0
    %467 = vmatpush1.bf16.xpose.msra.mxu0 0
    %468 = vmatprep.subr.bf16.mxu0 0
    %469 = vmatpush1.bf16.xpose.msra.mxu0 0
    %470 = vmatprep.subr.bf16.mxu0 0
    %471 = vmatpush1.bf16.xpose.msra.mxu0 0
    %472 = vmatprep.subr.bf16.mxu0 0
    %473 = vmatpush1.bf16.xpose.msra.mxu0 0
    %474 = vmatprep.subr.bf16.mxu0 0
    %475 = vmatpush1.bf16.xpose.msra.mxu0 0
    %476 = vmatprep.mubr.bf16.mxu0 0
    %477 = vmatmul.mubr.bf16.gmra.mrb[0].mxu0 %v439
    %v478 = vpop.f32.mrb[0].mxu0
    %v479 = vadd.f32 0.0, %v478
    %v480 = vpop.f32.mrb[0].mxu0
    %v481 = vpop.f32.mrb[0].mxu0
    %v482 = vpop.f32.mrb[0].mxu0
    %483 = vdwg.mxu0
    %485 = vrot.lane.b32.xlu0 %v283, 96
    %v486 = vpop.permute.xlu0 %485
    %v488 = vsel %vm290, %v283, 0
    %v491 = vsel %vm290, %v486, 0
    %493 = vmatprep.subr.bf16.mxu0 0
    %494 = vmatpush1.bf16.xpose.msra.mxu0 %v491
    %495 = vmatprep.subr.bf16.mxu0 0
    %496 = vmatpush1.bf16.xpose.msra.mxu0 0
    %497 = vmatprep.subr.bf16.mxu0 0
    %498 = vmatpush1.bf16.xpose.msra.mxu0 0
    %499 = vmatprep.subr.bf16.mxu0 0
    %500 = vmatpush1.bf16.xpose.msra.mxu0 0
    %501 = vmatprep.subr.bf16.mxu0 0
    %502 = vmatpush1.bf16.xpose.msra.mxu0 0
    %503 = vmatprep.subr.bf16.mxu0 0
    %504 = vmatpush1.bf16.xpose.msra.mxu0 0
    %505 = vmatprep.subr.bf16.mxu0 0
    %506 = vmatpush1.bf16.xpose.msra.mxu0 0
    %507 = vmatprep.subr.bf16.mxu0 0
    %508 = vmatpush1.bf16.xpose.msra.mxu0 0
    %509 = vmatprep.subr.bf16.mxu0 0
    %510 = vmatpush1.bf16.xpose.msra.mxu0 0
    %511 = vmatprep.subr.bf16.mxu0 0
    %512 = vmatpush1.bf16.xpose.msra.mxu0 0
    %513 = vmatprep.subr.bf16.mxu0 0
    %514 = vmatpush1.bf16.xpose.msra.mxu0 0
    %515 = vmatprep.subr.bf16.mxu0 0
    %516 = vmatpush1.bf16.xpose.msra.mxu0 0
    %517 = vmatprep.subr.bf16.mxu0 0
    %518 = vmatpush1.bf16.xpose.msra.mxu0 0
    %519 = vmatprep.subr.bf16.mxu0 0
    %520 = vmatpush1.bf16.xpose.msra.mxu0 0
    %521 = vmatprep.subr.bf16.mxu0 0
    %522 = vmatpush1.bf16.xpose.msra.mxu0 0
    %523 = vmatprep.subr.bf16.mxu0 0
    %524 = vmatpush1.bf16.xpose.msra.mxu0 0
    %525 = vmatprep.mubr.bf16.mxu0 0
    %526 = vmatmul.mubr.bf16.gmra.mrb[0].mxu0 %v488
    %v527 = vpop.f32.mrb[0].mxu0
    %v528 = vadd.f32 0.0, %v527
    %v529 = vpop.f32.mrb[0].mxu0
    %v530 = vpop.f32.mrb[0].mxu0
    %v531 = vpop.f32.mrb[0].mxu0
    %532 = vdwg.mxu0
    %534 = vrot.lane.b32.xlu0 %v284, 96
    %v535 = vpop.permute.xlu0 %534
    %v537 = vsel %vm290, %v284, 0
    %v540 = vsel %vm290, %v535, 0
    %542 = vmatprep.subr.bf16.mxu0 0
    %543 = vmatpush1.bf16.xpose.msra.mxu0 %v540
    %544 = vmatprep.subr.bf16.mxu0 0
    %545 = vmatpush1.bf16.xpose.msra.mxu0 0
    %546 = vmatprep.subr.bf16.mxu0 0
    %547 = vmatpush1.bf16.xpose.msra.mxu0 0
    %548 = vmatprep.subr.bf16.mxu0 0
    %549 = vmatpush1.bf16.xpose.msra.mxu0 0
    %550 = vmatprep.subr.bf16.mxu0 0
    %551 = vmatpush1.bf16.xpose.msra.mxu0 0
    %552 = vmatprep.subr.bf16.mxu0 0
    %553 = vmatpush1.bf16.xpose.msra.mxu0 0
    %554 = vmatprep.subr.bf16.mxu0 0
    %555 = vmatpush1.bf16.xpose.msra.mxu0 0
    %556 = vmatprep.subr.bf16.mxu0 0
    %557 = vmatpush1.bf16.xpose.msra.mxu0 0
    %558 = vmatprep.subr.bf16.mxu0 0
    %559 = vmatpush1.bf16.xpose.msra.mxu0 0
    %560 = vmatprep.subr.bf16.mxu0 0
    %561 = vmatpush1.bf16.xpose.msra.mxu0 0
    %562 = vmatprep.subr.bf16.mxu0 0
    %563 = vmatpush1.bf16.xpose.msra.mxu0 0
    %564 = vmatprep.subr.bf16.mxu0 0
    %565 = vmatpush1.bf16.xpose.msra.mxu0 0
    %566 = vmatprep.subr.bf16.mxu0 0
    %567 = vmatpush1.bf16.xpose.msra.mxu0 0
    %568 = vmatprep.subr.bf16.mxu0 0
    %569 = vmatpush1.bf16.xpose.msra.mxu0 0
    %570 = vmatprep.subr.bf16.mxu0 0
    %571 = vmatpush1.bf16.xpose.msra.mxu0 0
    %572 = vmatprep.subr.bf16.mxu0 0
    %573 = vmatpush1.bf16.xpose.msra.mxu0 0
    %574 = vmatprep.mubr.bf16.mxu0 0
    %575 = vmatmul.mubr.bf16.gmra.mrb[0].mxu0 %v537
    %v576 = vpop.f32.mrb[0].mxu0
    %v577 = vadd.f32 0.0, %v576
    %v578 = vpop.f32.mrb[0].mxu0
    %v579 = vpop.f32.mrb[0].mxu0
    %v580 = vpop.f32.mrb[0].mxu0
    %581 = vdwg.mxu0
    %583 = vrot.lane.b32.xlu0 %v285, 96
    %v584 = vpop.permute.xlu0 %583
    %v586 = vsel %vm290, %v285, 0
    %v589 = vsel %vm290, %v584, 0
    %591 = vmatprep.subr.bf16.mxu0 0
    %592 = vmatpush1.bf16.xpose.msra.mxu0 %v589
    %593 = vmatprep.subr.bf16.mxu0 0
    %594 = vmatpush1.bf16.xpose.msra.mxu0 0
    %595 = vmatprep.subr.bf16.mxu0 0
    %596 = vmatpush1.bf16.xpose.msra.mxu0 0
    %597 = vmatprep.subr.bf16.mxu0 0
    %598 = vmatpush1.bf16.xpose.msra.mxu0 0
    %599 = vmatprep.subr.bf16.mxu0 0
    %600 = vmatpush1.bf16.xpose.msra.mxu0 0
    %601 = vmatprep.subr.bf16.mxu0 0
    %602 = vmatpush1.bf16.xpose.msra.mxu0 0
    %603 = vmatprep.subr.bf16.mxu0 0
    %604 = vmatpush1.bf16.xpose.msra.mxu0 0
    %605 = vmatprep.subr.bf16.mxu0 0
    %606 = vmatpush1.bf16.xpose.msra.mxu0 0
    %607 = vmatprep.subr.bf16.mxu0 0
    %608 = vmatpush1.bf16.xpose.msra.mxu0 0
    %609 = vmatprep.subr.bf16.mxu0 0
    %610 = vmatpush1.bf16.xpose.msra.mxu0 0
    %611 = vmatprep.subr.bf16.mxu0 0
    %612 = vmatpush1.bf16.xpose.msra.mxu0 0
    %613 = vmatprep.subr.bf16.mxu0 0
    %614 = vmatpush1.bf16.xpose.msra.mxu0 0
    %615 = vmatprep.subr.bf16.mxu0 0
    %616 = vmatpush1.bf16.xpose.msra.mxu0 0
    %617 = vmatprep.subr.bf16.mxu0 0
    %618 = vmatpush1.bf16.xpose.msra.mxu0 0
    %619 = vmatprep.subr.bf16.mxu0 0
    %620 = vmatpush1.bf16.xpose.msra.mxu0 0
    %621 = vmatprep.subr.bf16.mxu0 0
    %622 = vmatpush1.bf16.xpose.msra.mxu0 0
    %623 = vmatprep.mubr.bf16.mxu0 0
    %624 = vmatmul.mubr.bf16.gmra.mrb[0].mxu0 %v586
    %v625 = vpop.f32.mrb[0].mxu0
    %v626 = vadd.f32 0.0, %v625
    %v627 = vpop.f32.mrb[0].mxu0
    %v628 = vpop.f32.mrb[0].mxu0
    %v629 = vpop.f32.mrb[0].mxu0
    %630 = vdwg.mxu0
    %632 = vrot.lane.b32.xlu0 %v286, 96
    %v633 = vpop.permute.xlu0 %632
    %v635 = vsel %vm290, %v286, 0
    %v638 = vsel %vm290, %v633, 0
    %640 = vmatprep.subr.bf16.mxu0 0
    %641 = vmatpush1.bf16.xpose.msra.mxu0 %v638
    %642 = vmatprep.subr.bf16.mxu0 0
    %643 = vmatpush1.bf16.xpose.msra.mxu0 0
    %644 = vmatprep.subr.bf16.mxu0 0
    %645 = vmatpush1.bf16.xpose.msra.mxu0 0
    %646 = vmatprep.subr.bf16.mxu0 0
    %647 = vmatpush1.bf16.xpose.msra.mxu0 0
    %648 = vmatprep.subr.bf16.mxu0 0
    %649 = vmatpush1.bf16.xpose.msra.mxu0 0
    %650 = vmatprep.subr.bf16.mxu0 0
    %651 = vmatpush1.bf16.xpose.msra.mxu0 0
    %652 = vmatprep.subr.bf16.mxu0 0
    %653 = vmatpush1.bf16.xpose.msra.mxu0 0
    %654 = vmatprep.subr.bf16.mxu0 0
    %655 = vmatpush1.bf16.xpose.msra.mxu0 0
    %656 = vmatprep.subr.bf16.mxu0 0
    %657 = vmatpush1.bf16.xpose.msra.mxu0 0
    %658 = vmatprep.subr.bf16.mxu0 0
    %659 = vmatpush1.bf16.xpose.msra.mxu0 0
    %660 = vmatprep.subr.bf16.mxu0 0
    %661 = vmatpush1.bf16.xpose.msra.mxu0 0
    %662 = vmatprep.subr.bf16.mxu0 0
    %663 = vmatpush1.bf16.xpose.msra.mxu0 0
    %664 = vmatprep.subr.bf16.mxu0 0
    %665 = vmatpush1.bf16.xpose.msra.mxu0 0
    %666 = vmatprep.subr.bf16.mxu0 0
    %667 = vmatpush1.bf16.xpose.msra.mxu0 0
    %668 = vmatprep.subr.bf16.mxu0 0
    %669 = vmatpush1.bf16.xpose.msra.mxu0 0
    %670 = vmatprep.subr.bf16.mxu0 0
    %671 = vmatpush1.bf16.xpose.msra.mxu0 0
    %672 = vmatprep.mubr.bf16.mxu0 0
    %673 = vmatmul.mubr.bf16.gmra.mrb[0].mxu0 %v635
    %v674 = vpop.f32.mrb[0].mxu0
    %v675 = vadd.f32 0.0, %v674
    %v676 = vpop.f32.mrb[0].mxu0
    %v677 = vpop.f32.mrb[0].mxu0
    %v678 = vpop.f32.mrb[0].mxu0
    %679 = vdwg.mxu0
    %v680 = vsel %vm290, %v332, -inf
    %681 = vmax.xlane.f32.xlu0 %v680
    %v682 = vpop.xlane.xlu0 %681
    %v683 = vsel %vm290, %v381, -inf
    %684 = vmax.xlane.f32.xlu0 %v683
    %v685 = vpop.xlane.xlu0 %684
    %v686 = vsel %vm290, %v430, -inf
    %687 = vmax.xlane.f32.xlu0 %v686
    %v688 = vpop.xlane.xlu0 %687
    %v689 = vsel %vm290, %v479, -inf
    %690 = vmax.xlane.f32.xlu0 %v689
    %v691 = vpop.xlane.xlu0 %690
    %v692 = vsel %vm290, %v528, -inf
    %693 = vmax.xlane.f32.xlu0 %v692
    %v694 = vpop.xlane.xlu0 %693
    %v695 = vsel %vm290, %v577, -inf
    %696 = vmax.xlane.f32.xlu0 %v695
    %v697 = vpop.xlane.xlu0 %696
    %v698 = vsel %vm290, %v626, -inf
    %699 = vmax.xlane.f32.xlu0 %v698
    %v700 = vpop.xlane.xlu0 %699
    %v701 = vsel %vm290, %v675, -inf
    %702 = vmax.xlane.f32.xlu0 %v701
    %v703 = vpop.xlane.xlu0 %702
    %v704 = vsub.f32 %v332, %v682
    %v705 = vsub.f32 %v381, %v685
    %v706 = vsub.f32 %v430, %v688
    %v707 = vsub.f32 %v479, %v691
    %v708 = vsub.f32 %v528, %v694
    %v709 = vsub.f32 %v577, %v697
    %v710 = vsub.f32 %v626, %v700
    %v711 = vsub.f32 %v675, %v703
    %v712 = vmul.f32 %v704, 1.442695
    %v713 = vpow.pop %v712
    %v714 = vmul.f32 %v705, 1.442695
    %v715 = vpow.pop %v714
    %v716 = vmul.f32 %v706, 1.442695
    %v717 = vpow.pop %v716
    %v718 = vmul.f32 %v707, 1.442695
    %v719 = vpow.pop %v718
    %v720 = vmul.f32 %v708, 1.442695
    %v721 = vpow.pop %v720
    %v722 = vmul.f32 %v709, 1.442695
    %v723 = vpow.pop %v722
    %v724 = vmul.f32 %v710, 1.442695
    %v725 = vpow.pop %v724
    %v726 = vmul.f32 %v711, 1.442695
    %v727 = vpow.pop %v726
    %v728 = vsel %vm290, %v713, 0.0
    %729 = vadd.xlane.f32.xlu0 %v728
    %v730 = vpop.xlane.xlu0 %729
    %v731 = vsel %vm290, %v715, 0.0
    %732 = vadd.xlane.f32.xlu0 %v731
    %v733 = vpop.xlane.xlu0 %732
    %v734 = vsel %vm290, %v717, 0.0
    %735 = vadd.xlane.f32.xlu0 %v734
    %v736 = vpop.xlane.xlu0 %735
    %v737 = vsel %vm290, %v719, 0.0
    %738 = vadd.xlane.f32.xlu0 %v737
    %v739 = vpop.xlane.xlu0 %738
    %v740 = vsel %vm290, %v721, 0.0
    %741 = vadd.xlane.f32.xlu0 %v740
    %v742 = vpop.xlane.xlu0 %741
    %v743 = vsel %vm290, %v723, 0.0
    %744 = vadd.xlane.f32.xlu0 %v743
    %v745 = vpop.xlane.xlu0 %744
    %v746 = vsel %vm290, %v725, 0.0
    %747 = vadd.xlane.f32.xlu0 %v746
    %v748 = vpop.xlane.xlu0 %747
    %v749 = vsel %vm290, %v727, 0.0
    %750 = vadd.xlane.f32.xlu0 %v749
    %v751 = vpop.xlane.xlu0 %750
    %v752 = vrcp.pop %v730
    %v753 = vrcp.pop %v733
    %v754 = vrcp.pop %v736
    %v755 = vrcp.pop %v739
    %v756 = vrcp.pop %v742
    %v757 = vrcp.pop %v745
    %v758 = vrcp.pop %v748
    %v759 = vrcp.pop %v751
    %v760 = vmul.f32 %v713, %v752
    %v761 = vmul.f32 %v715, %v753
    %v762 = vmul.f32 %v717, %v754
    %v763 = vmul.f32 %v719, %v755
    %v764 = vmul.f32 %v721, %v756
    %v765 = vmul.f32 %v723, %v757
    %v766 = vmul.f32 %v725, %v758
    %v767 = vmul.f32 %v727, %v759
    %v768 = vpack.c.bf16 %v760, %v760
    %v769 = vpack.c.bf16 %v761, %v761
    %v770 = vpack.c.bf16 %v762, %v762
    %v771 = vpack.c.bf16 %v763, %v763
    %v772 = vpack.c.bf16 %v764, %v764
    %v773 = vpack.c.bf16 %v765, %v765
    %v774 = vpack.c.bf16 %v766, %v766
    %v775 = vpack.c.bf16 %v767, %v767
    %v776 = vpack.c.bf16 %v233, %v233
    %v777 = vpack.c.bf16 %v236, %v236
    %v778 = vpack.c.bf16 %v262, %v262
    %v779 = vpack.c.bf16 %v264, %v264
    %v780 = vpack.c.bf16 %v268, %v268
    %v781 = vpack.c.bf16 %v270, %v270
    %v782 = vpack.c.bf16 %v274, %v274
    %v783 = vpack.c.bf16 %v276, %v276
    %v785 = vsel %vm290, %v768, 0
    %vm787 = vcmask 1043456
    %v789 = vsel %vm787, %v776, 0
    %791 = vmatprep.subr.bf16.mxu0 0
    %792 = vmatpush1.bf16.msra.mxu0 %v789
    %793 = vmatprep.subr.bf16.mxu0 0
    %794 = vmatpush1.bf16.msra.mxu0 0
    %795 = vmatprep.subr.bf16.mxu0 0
    %796 = vmatpush1.bf16.msra.mxu0 0
    %797 = vmatprep.subr.bf16.mxu0 0
    %798 = vmatpush1.bf16.msra.mxu0 0
    %799 = vmatprep.subr.bf16.mxu0 0
    %800 = vmatpush1.bf16.msra.mxu0 0
    %801 = vmatprep.subr.bf16.mxu0 0
    %802 = vmatpush1.bf16.msra.mxu0 0
    %803 = vmatprep.subr.bf16.mxu0 0
    %804 = vmatpush1.bf16.msra.mxu0 0
    %805 = vmatprep.subr.bf16.mxu0 0
    %806 = vmatpush1.bf16.msra.mxu0 0
    %807 = vmatprep.subr.bf16.mxu0 0
    %808 = vmatpush1.bf16.msra.mxu0 0
    %809 = vmatprep.subr.bf16.mxu0 0
    %810 = vmatpush1.bf16.msra.mxu0 0
    %811 = vmatprep.subr.bf16.mxu0 0
    %812 = vmatpush1.bf16.msra.mxu0 0
    %813 = vmatprep.subr.bf16.mxu0 0
    %814 = vmatpush1.bf16.msra.mxu0 0
    %815 = vmatprep.subr.bf16.mxu0 0
    %816 = vmatpush1.bf16.msra.mxu0 0
    %817 = vmatprep.subr.bf16.mxu0 0
    %818 = vmatpush1.bf16.msra.mxu0 0
    %819 = vmatprep.subr.bf16.mxu0 0
    %820 = vmatpush1.bf16.msra.mxu0 0
    %821 = vmatprep.subr.bf16.mxu0 0
    %822 = vmatpush1.bf16.msra.mxu0 0
    %823 = vmatprep.mubr.bf16.mxu0 0
    %824 = vmatmul.mubr.bf16.gmra.mrb[0].mxu0 %v785
    %v825 = vpop.f32.mrb[0].mxu0
    %v826 = vadd.f32 0.0, %v825
    %v827 = vpop.f32.mrb[0].mxu0
    %v828 = vpop.f32.mrb[0].mxu0
    %v829 = vpop.f32.mrb[0].mxu0
    %830 = vdwg.mxu0
    %v832 = vsel %vm290, %v769, 0
    %v835 = vsel %vm787, %v777, 0
    %837 = vmatprep.subr.bf16.mxu0 0
    %838 = vmatpush1.bf16.msra.mxu0 %v835
    %839 = vmatprep.subr.bf16.mxu0 0
    %840 = vmatpush1.bf16.msra.mxu0 0
    %841 = vmatprep.subr.bf16.mxu0 0
    %842 = vmatpush1.bf16.msra.mxu0 0
    %843 = vmatprep.subr.bf16.mxu0 0
    %844 = vmatpush1.bf16.msra.mxu0 0
    %845 = vmatprep.subr.bf16.mxu0 0
    %846 = vmatpush1.bf16.msra.mxu0 0
    %847 = vmatprep.subr.bf16.mxu0 0
    %848 = vmatpush1.bf16.msra.mxu0 0
    %849 = vmatprep.subr.bf16.mxu0 0
    %850 = vmatpush1.bf16.msra.mxu0 0
    %851 = vmatprep.subr.bf16.mxu0 0
    %852 = vmatpush1.bf16.msra.mxu0 0
    %853 = vmatprep.subr.bf16.mxu0 0
    %854 = vmatpush1.bf16.msra.mxu0 0
    %855 = vmatprep.subr.bf16.mxu0 0
    %856 = vmatpush1.bf16.msra.mxu0 0
    %857 = vmatprep.subr.bf16.mxu0 0
    %858 = vmatpush1.bf16.msra.mxu0 0
    %859 = vmatprep.subr.bf16.mxu0 0
    %860 = vmatpush1.bf16.msra.mxu0 0
    %861 = vmatprep.subr.bf16.mxu0 0
    %862 = vmatpush1.bf16.msra.mxu0 0
    %863 = vmatprep.subr.bf16.mxu0 0
    %864 = vmatpush1.bf16.msra.mxu0 0
    %865 = vmatprep.subr.bf16.mxu0 0
    %866 = vmatpush1.bf16.msra.mxu0 0
    %867 = vmatprep.subr.bf16.mxu0 0
    %868 = vmatpush1.bf16.msra.mxu0 0
    %869 = vmatprep.mubr.bf16.mxu0 0
    %870 = vmatmul.mubr.bf16.gmra.mrb[0].mxu0 %v832
    %v871 = vpop.f32.mrb[0].mxu0
    %v872 = vadd.f32 0.0, %v871
    %v873 = vpop.f32.mrb[0].mxu0
    %v874 = vpop.f32.mrb[0].mxu0
    %v875 = vpop.f32.mrb[0].mxu0
    %876 = vdwg.mxu0
    %v878 = vsel %vm290, %v770, 0
    %v881 = vsel %vm787, %v778, 0
    %883 = vmatprep.subr.bf16.mxu0 0
    %884 = vmatpush1.bf16.msra.mxu0 %v881
    %885 = vmatprep.subr.bf16.mxu0 0
    %886 = vmatpush1.bf16.msra.mxu0 0
    %887 = vmatprep.subr.bf16.mxu0 0
    %888 = vmatpush1.bf16.msra.mxu0 0
    %889 = vmatprep.subr.bf16.mxu0 0
    %890 = vmatpush1.bf16.msra.mxu0 0
    %891 = vmatprep.subr.bf16.mxu0 0
    %892 = vmatpush1.bf16.msra.mxu0 0
    %893 = vmatprep.subr.bf16.mxu0 0
    %894 = vmatpush1.bf16.msra.mxu0 0
    %895 = vmatprep.subr.bf16.mxu0 0
    %896 = vmatpush1.bf16.msra.mxu0 0
    %897 = vmatprep.subr.bf16.mxu0 0
    %898 = vmatpush1.bf16.msra.mxu0 0
    %899 = vmatprep.subr.bf16.mxu0 0
    %900 = vmatpush1.bf16.msra.mxu0 0
    %901 = vmatprep.subr.bf16.mxu0 0
    %902 = vmatpush1.bf16.msra.mxu0 0
    %903 = vmatprep.subr.bf16.mxu0 0
    %904 = vmatpush1.bf16.msra.mxu0 0
    %905 = vmatprep.subr.bf16.mxu0 0
    %906 = vmatpush1.bf16.msra.mxu0 0
    %907 = vmatprep.subr.bf16.mxu0 0
    %908 = vmatpush1.bf16.msra.mxu0 0
    %909 = vmatprep.subr.bf16.mxu0 0
    %910 = vmatpush1.bf16.msra.mxu0 0
    %911 = vmatprep.subr.bf16.mxu0 0
    %912 = vmatpush1.bf16.msra.mxu0 0
    %913 = vmatprep.subr.bf16.mxu0 0
    %914 = vmatpush1.bf16.msra.mxu0 0
    %915 = vmatprep.mubr.bf16.mxu0 0
    %916 = vmatmul.mubr.bf16.gmra.mrb[0].mxu0 %v878
    %v917 = vpop.f32.mrb[0].mxu0
    %v918 = vadd.f32 0.0, %v917
    %v919 = vpop.f32.mrb[0].mxu0
    %v920 = vpop.f32.mrb[0].mxu0
    %v921 = vpop.f32.mrb[0].mxu0
    %922 = vdwg.mxu0
    %v924 = vsel %vm290, %v771, 0
    %v927 = vsel %vm787, %v779, 0
    %929 = vmatprep.subr.bf16.mxu0 0
    %930 = vmatpush1.bf16.msra.mxu0 %v927
    %931 = vmatprep.subr.bf16.mxu0 0
    %932 = vmatpush1.bf16.msra.mxu0 0
    %933 = vmatprep.subr.bf16.mxu0 0
    %934 = vmatpush1.bf16.msra.mxu0 0
    %935 = vmatprep.subr.bf16.mxu0 0
    %936 = vmatpush1.bf16.msra.mxu0 0
    %937 = vmatprep.subr.bf16.mxu0 0
    %938 = vmatpush1.bf16.msra.mxu0 0
    %939 = vmatprep.subr.bf16.mxu0 0
    %940 = vmatpush1.bf16.msra.mxu0 0
    %941 = vmatprep.subr.bf16.mxu0 0
    %942 = vmatpush1.bf16.msra.mxu0 0
    %943 = vmatprep.subr.bf16.mxu0 0
    %944 = vmatpush1.bf16.msra.mxu0 0
    %945 = vmatprep.subr.bf16.mxu0 0
    %946 = vmatpush1.bf16.msra.mxu0 0
    %947 = vmatprep.subr.bf16.mxu0 0
    %948 = vmatpush1.bf16.msra.mxu0 0
    %949 = vmatprep.subr.bf16.mxu0 0
    %950 = vmatpush1.bf16.msra.mxu0 0
    %951 = vmatprep.subr.bf16.mxu0 0
    %952 = vmatpush1.bf16.msra.mxu0 0
    %953 = vmatprep.subr.bf16.mxu0 0
    %954 = vmatpush1.bf16.msra.mxu0 0
    %955 = vmatprep.subr.bf16.mxu0 0
    %956 = vmatpush1.bf16.msra.mxu0 0
    %957 = vmatprep.subr.bf16.mxu0 0
    %958 = vmatpush1.bf16.msra.mxu0 0
    %959 = vmatprep.subr.bf16.mxu0 0
    %960 = vmatpush1.bf16.msra.mxu0 0
    %961 = vmatprep.mubr.bf16.mxu0 0
    %962 = vmatmul.mubr.bf16.gmra.mrb[0].mxu0 %v924
    %v963 = vpop.f32.mrb[0].mxu0
    %v964 = vadd.f32 0.0, %v963
    %v965 = vpop.f32.mrb[0].mxu0
    %v966 = vpop.f32.mrb[0].mxu0
    %v967 = vpop.f32.mrb[0].mxu0
    %968 = vdwg.mxu0
    %v970 = vsel %vm290, %v772, 0
    %v973 = vsel %vm787, %v780, 0
    %975 = vmatprep.subr.bf16.mxu0 0
    %976 = vmatpush1.bf16.msra.mxu0 %v973
    %977 = vmatprep.subr.bf16.mxu0 0
    %978 = vmatpush1.bf16.msra.mxu0 0
    %979 = vmatprep.subr.bf16.mxu0 0
    %980 = vmatpush1.bf16.msra.mxu0 0
    %981 = vmatprep.subr.bf16.mxu0 0
    %982 = vmatpush1.bf16.msra.mxu0 0
    %983 = vmatprep.subr.bf16.mxu0 0
    %984 = vmatpush1.bf16.msra.mxu0 0
    %985 = vmatprep.subr.bf16.mxu0 0
    %986 = vmatpush1.bf16.msra.mxu0 0
    %987 = vmatprep.subr.bf16.mxu0 0
    %988 = vmatpush1.bf16.msra.mxu0 0
    %989 = vmatprep.subr.bf16.mxu0 0
    %990 = vmatpush1.bf16.msra.mxu0 0
    %991 = vmatprep.subr.bf16.mxu0 0
    %992 = vmatpush1.bf16.msra.mxu0 0
    %993 = vmatprep.subr.bf16.mxu0 0
    %994 = vmatpush1.bf16.msra.mxu0 0
    %995 = vmatprep.subr.bf16.mxu0 0
    %996 = vmatpush1.bf16.msra.mxu0 0
    %997 = vmatprep.subr.bf16.mxu0 0
    %998 = vmatpush1.bf16.msra.mxu0 0
    %999 = vmatprep.subr.bf16.mxu0 0
    %1000 = vmatpush1.bf16.msra.mxu0 0
    %1001 = vmatprep.subr.bf16.mxu0 0
    %1002 = vmatpush1.bf16.msra.mxu0 0
    %1003 = vmatprep.subr.bf16.mxu0 0
    %1004 = vmatpush1.bf16.msra.mxu0 0
    %1005 = vmatprep.subr.bf16.mxu0 0
    %1006 = vmatpush1.bf16.msra.mxu0 0
    %1007 = vmatprep.mubr.bf16.mxu0 0
    %1008 = vmatmul.mubr.bf16.gmra.mrb[0].mxu0 %v970
    %v1009 = vpop.f32.mrb[0].mxu0
    %v1010 = vadd.f32 0.0, %v1009
    %v1011 = vpop.f32.mrb[0].mxu0
    %v1012 = vpop.f32.mrb[0].mxu0
    %v1013 = vpop.f32.mrb[0].mxu0
    %1014 = vdwg.mxu0
    %v1016 = vsel %vm290, %v773, 0
    %v1019 = vsel %vm787, %v781, 0
    %1021 = vmatprep.subr.bf16.mxu0 0
    %1022 = vmatpush1.bf16.msra.mxu0 %v1019
    %1023 = vmatprep.subr.bf16.mxu0 0
    %1024 = vmatpush1.bf16.msra.mxu0 0
    %1025 = vmatprep.subr.bf16.mxu0 0
    %1026 = vmatpush1.bf16.msra.mxu0 0
    %1027 = vmatprep.subr.bf16.mxu0 0
    %1028 = vmatpush1.bf16.msra.mxu0 0
    %1029 = vmatprep.subr.bf16.mxu0 0
    %1030 = vmatpush1.bf16.msra.mxu0 0
    %1031 = vmatprep.subr.bf16.mxu0 0
    %1032 = vmatpush1.bf16.msra.mxu0 0
    %1033 = vmatprep.subr.bf16.mxu0 0
    %1034 = vmatpush1.bf16.msra.mxu0 0
    %1035 = vmatprep.subr.bf16.mxu0 0
    %1036 = vmatpush1.bf16.msra.mxu0 0
    %1037 = vmatprep.subr.bf16.mxu0 0
    %1038 = vmatpush1.bf16.msra.mxu0 0
    %1039 = vmatprep.subr.bf16.mxu0 0
    %1040 = vmatpush1.bf16.msra.mxu0 0
    %1041 = vmatprep.subr.bf16.mxu0 0
    %1042 = vmatpush1.bf16.msra.mxu0 0
    %1043 = vmatprep.subr.bf16.mxu0 0
    %1044 = vmatpush1.bf16.msra.mxu0 0
    %1045 = vmatprep.subr.bf16.mxu0 0
    %1046 = vmatpush1.bf16.msra.mxu0 0
    %1047 = vmatprep.subr.bf16.mxu0 0
    %1048 = vmatpush1.bf16.msra.mxu0 0
    %1049 = vmatprep.subr.bf16.mxu0 0
    %1050 = vmatpush1.bf16.msra.mxu0 0
    %1051 = vmatprep.subr.bf16.mxu0 0
    %1052 = vmatpush1.bf16.msra.mxu0 0
    %1053 = vmatprep.mubr.bf16.mxu0 0
    %1054 = vmatmul.mubr.bf16.gmra.mrb[0].mxu0 %v1016
    %v1055 = vpop.f32.mrb[0].mxu0
    %v1056 = vadd.f32 0.0, %v1055
    %v1057 = vpop.f32.mrb[0].mxu0
    %v1058 = vpop.f32.mrb[0].mxu0
    %v1059 = vpop.f32.mrb[0].mxu0
    %1060 = vdwg.mxu0
    %v1062 = vsel %vm290, %v774, 0
    %v1065 = vsel %vm787, %v782, 0
    %1067 = vmatprep.subr.bf16.mxu0 0
    %1068 = vmatpush1.bf16.msra.mxu0 %v1065
    %1069 = vmatprep.subr.bf16.mxu0 0
    %1070 = vmatpush1.bf16.msra.mxu0 0
    %1071 = vmatprep.subr.bf16.mxu0 0
    %1072 = vmatpush1.bf16.msra.mxu0 0
    %1073 = vmatprep.subr.bf16.mxu0 0
    %1074 = vmatpush1.bf16.msra.mxu0 0
    %1075 = vmatprep.subr.bf16.mxu0 0
    %1076 = vmatpush1.bf16.msra.mxu0 0
    %1077 = vmatprep.subr.bf16.mxu0 0
    %1078 = vmatpush1.bf16.msra.mxu0 0
    %1079 = vmatprep.subr.bf16.mxu0 0
    %1080 = vmatpush1.bf16.msra.mxu0 0
    %1081 = vmatprep.subr.bf16.mxu0 0
    %1082 = vmatpush1.bf16.msra.mxu0 0
    %1083 = vmatprep.subr.bf16.mxu0 0
    %1084 = vmatpush1.bf16.msra.mxu0 0
    %1085 = vmatprep.subr.bf16.mxu0 0
    %1086 = vmatpush1.bf16.msra.mxu0 0
    %1087 = vmatprep.subr.bf16.mxu0 0
    %1088 = vmatpush1.bf16.msra.mxu0 0
    %1089 = vmatprep.subr.bf16.mxu0 0
    %1090 = vmatpush1.bf16.msra.mxu0 0
    %1091 = vmatprep.subr.bf16.mxu0 0
    %1092 = vmatpush1.bf16.msra.mxu0 0
    %1093 = vmatprep.subr.bf16.mxu0 0
    %1094 = vmatpush1.bf16.msra.mxu0 0
    %1095 = vmatprep.subr.bf16.mxu0 0
    %1096 = vmatpush1.bf16.msra.mxu0 0
    %1097 = vmatprep.subr.bf16.mxu0 0
    %1098 = vmatpush1.bf16.msra.mxu0 0
    %1099 = vmatprep.mubr.bf16.mxu0 0
    %1100 = vmatmul.mubr.bf16.gmra.mrb[0].mxu0 %v1062
    %v1101 = vpop.f32.mrb[0].mxu0
    %v1102 = vadd.f32 0.0, %v1101
    %v1103 = vpop.f32.mrb[0].mxu0
    %v1104 = vpop.f32.mrb[0].mxu0
    %v1105 = vpop.f32.mrb[0].mxu0
    %1106 = vdwg.mxu0
    %v1108 = vsel %vm290, %v775, 0
    %v1111 = vsel %vm787, %v783, 0
    %1113 = vmatprep.subr.bf16.mxu0 0
    %1114 = vmatpush1.bf16.msra.mxu0 %v1111
    %1115 = vmatprep.subr.bf16.mxu0 0
    %1116 = vmatpush1.bf16.msra.mxu0 0
    %1117 = vmatprep.subr.bf16.mxu0 0
    %1118 = vmatpush1.bf16.msra.mxu0 0
    %1119 = vmatprep.subr.bf16.mxu0 0
    %1120 = vmatpush1.bf16.msra.mxu0 0
    %1121 = vmatprep.subr.bf16.mxu0 0
    %1122 = vmatpush1.bf16.msra.mxu0 0
    %1123 = vmatprep.subr.bf16.mxu0 0
    %1124 = vmatpush1.bf16.msra.mxu0 0
    %1125 = vmatprep.subr.bf16.mxu0 0
    %1126 = vmatpush1.bf16.msra.mxu0 0
    %1127 = vmatprep.subr.bf16.mxu0 0
    %1128 = vmatpush1.bf16.msra.mxu0 0
    %1129 = vmatprep.subr.bf16.mxu0 0
    %1130 = vmatpush1.bf16.msra.mxu0 0
    %1131 = vmatprep.subr.bf16.mxu0 0
    %1132 = vmatpush1.bf16.msra.mxu0 0
    %1133 = vmatprep.subr.bf16.mxu0 0
    %1134 = vmatpush1.bf16.msra.mxu0 0
    %1135 = vmatprep.subr.bf16.mxu0 0
    %1136 = vmatpush1.bf16.msra.mxu0 0
    %1137 = vmatprep.subr.bf16.mxu0 0
    %1138 = vmatpush1.bf16.msra.mxu0 0
    %1139 = vmatprep.subr.bf16.mxu0 0
    %1140 = vmatpush1.bf16.msra.mxu0 0
    %1141 = vmatprep.subr.bf16.mxu0 0
    %1142 = vmatpush1.bf16.msra.mxu0 0
    %1143 = vmatprep.subr.bf16.mxu0 0
    %1144 = vmatpush1.bf16.msra.mxu0 0
    %1145 = vmatprep.mubr.bf16.mxu0 0
    %1146 = vmatmul.mubr.bf16.gmra.mrb[0].mxu0 %v1108
    %v1147 = vpop.f32.mrb[0].mxu0
    %v1148 = vadd.f32 0.0, %v1147
    %v1149 = vpop.f32.mrb[0].mxu0
    %v1150 = vpop.f32.mrb[0].mxu0
    %v1151 = vpop.f32.mrb[0].mxu0
    %1152 = vdwg.mxu0
    %1153 = vst.msk [vmem:[#allocation2] sm:$0xff] %vm290, %v826
    %1154 = vst.msk [vmem:[#allocation2 + $0x8] sm:$0xff] %vm290, %v872
    %1157 = vrot.lane.b32.xlu0 %v918, 8
    %v1158 = vpop.permute.xlu0 %1157
    %1159 = vrot.lane.b32.xlu0 %v964, 8
    %v1160 = vpop.permute.xlu0 %1159
    %vm1163 = vcmask 130112
    %1164 = vst.msk [vmem:[#allocation2] sm:$0xff] %vm1163, %v1158
    %1165 = vst.msk [vmem:[#allocation2 + $0x8] sm:$0xff] %vm1163, %v1160
    %1168 = vrot.lane.b32.xlu0 %v1010, 16
    %v1169 = vpop.permute.xlu0 %1168
    %1170 = vrot.lane.b32.xlu0 %v1056, 16
    %v1171 = vpop.permute.xlu0 %1170
    %vm1174 = vcmask 195712
    %1175 = vst.msk [vmem:[#allocation2] sm:$0xff] %vm1174, %v1169
    %1176 = vst.msk [vmem:[#allocation2 + $0x8] sm:$0xff] %vm1174, %v1171
    %1179 = vrot.lane.b32.xlu0 %v1102, 24
    %v1180 = vpop.permute.xlu0 %1179
    %1181 = vrot.lane.b32.xlu0 %v1148, 24
    %v1182 = vpop.permute.xlu0 %1181
    %vm1185 = vcmask 261312
    %1186 = vst.msk [vmem:[#allocation2] sm:$0xff] %vm1185, %v1180
    %1187 = vst.msk [vmem:[#allocation2 + $0x8] sm:$0xff] %vm1185, %v1182
    %v1188 = vld [vmem:[#allocation2] sm:$0xff]
    %v1189 = vld [vmem:[#allocation2 + $0x8] sm:$0xff]
    %v1190 = vpack.c.bf16 %v1189, %v1188
    %v1191 = vld [vmem:[%s6] sm:$0xf]
    %v1192 = vld [vmem:[%s6 + $0x4] sm:$0xf]
    %v1193 = vld [vmem:[%s6 + $0x8] sm:$0xf]
    %v1194 = vld [vmem:[%s6 + $0xc] sm:$0xf]
    %v1195 = vld [vmem:[%s7] sm:$0x1]
    %v1197 = vlaneseq
    %v1198 = vshrl.u32 %v1197, 7
    %v1199 = vsub.s32 0, %v1198
    %v1200 = vrot.slane %v1195, %v1199
    %v1206 = vunpack.c.l.b16 %v1191
    %v1207 = vunpack.c.l.b16 %v1192
    %v1208 = vunpack.c.l.b16 %v1193
    %v1209 = vunpack.c.l.b16 %v1194
    %v1210 = vpack.c.b16 %v1207, %v1206
    %v1211 = vpack.c.b16 %v1209, %v1208
    %v1215 = vsel %vm127, %v1190, 0
    %1217 = vmatprep.subr.bf16.mxu0 0
    %1218 = vmatpush1.bf16.msra.mxu0 %v1210
    %1219 = vmatprep.subr.bf16.mxu0 0
    %1220 = vmatpush1.bf16.msra.mxu0 %v1211
    %1221 = vmatprep.subr.bf16.mxu0 0
    %1222 = vmatpush1.bf16.msra.mxu0 0
    %1223 = vmatprep.subr.bf16.mxu0 0
    %1224 = vmatpush1.bf16.msra.mxu0 0
    %1225 = vmatprep.subr.bf16.mxu0 0
    %1226 = vmatpush1.bf16.msra.mxu0 0
    %1227 = vmatprep.subr.bf16.mxu0 0
    %1228 = vmatpush1.bf16.msra.mxu0 0
    %1229 = vmatprep.subr.bf16.mxu0 0
    %1230 = vmatpush1.bf16.msra.mxu0 0
    %1231 = vmatprep.subr.bf16.mxu0 0
    %1232 = vmatpush1.bf16.msra.mxu0 0
    %1233 = vmatprep.subr.bf16.mxu0 0
    %1234 = vmatpush1.bf16.msra.mxu0 0
    %1235 = vmatprep.subr.bf16.mxu0 0
    %1236 = vmatpush1.bf16.msra.mxu0 0
    %1237 = vmatprep.subr.bf16.mxu0 0
    %1238 = vmatpush1.bf16.msra.mxu0 0
    %1239 = vmatprep.subr.bf16.mxu0 0
    %1240 = vmatpush1.bf16.msra.mxu0 0
    %1241 = vmatprep.subr.bf16.mxu0 0
    %1242 = vmatpush1.bf16.msra.mxu0 0
    %1243 = vmatprep.subr.bf16.mxu0 0
    %1244 = vmatpush1.bf16.msra.mxu0 0
    %1245 = vmatprep.subr.bf16.mxu0 0
    %1246 = vmatpush1.bf16.msra.mxu0 0
    %1247 = vmatprep.subr.bf16.mxu0 0
    %1248 = vmatpush1.bf16.msra.mxu0 0
    %1249 = vmatprep.mubr.bf16.mxu0 0
    %1250 = vmatmul.mubr.bf16.gmra.mrb[0].mxu0 %v1215
    %v1251 = vpop.f32.mrb[0].mxu0
    %v1252 = vadd.f32 %v1200, %v1251
    %v1253 = vpop.f32.mrb[0].mxu0
    %v1254 = vpop.f32.mrb[0].mxu0
    %v1255 = vadd.f32 %v1200, %v1254
    %v1256 = vpop.f32.mrb[0].mxu0
    %1257 = vdwg.mxu0
    %v1258 = vadd.f32 %v96, %v1252
    %v1259 = vadd.f32 %v97, %v1255
    %v1260 = vld [vmem:[%s8] sm:$0x1]
    %v1261 = vld [vmem:[%s9] sm:$0x1]
    %v1262 = vsel %vm127, %v1258, 0.0
    %1263 = vadd.xlane.f32.xlu0 %v1262
    %v1264 = vpop.xlane.xlu0 %1263
    %v1265 = vsel %vm127, %v1259, 0.0
    %1266 = vadd.xlane.f32.xlu0 %v1265
    %v1267 = vpop.xlane.xlu0 %1266
    %v1268 = vrcp.pop 32.0
    %v1269 = vmul.f32 %v1264, %v1268
    %v1270 = vmul.f32 %v1267, %v1268
    %v1271 = vsub.f32 %v1258, %v1269
    %v1272 = vsub.f32 %v1259, %v1270
    %v1273 = vmul.f32 %v1271, %v1271
    %v1274 = vmul.f32 %v1272, %v1272
    %v1275 = vsel %vm127, %v1273, 0.0
    %1276 = vadd.xlane.f32.xlu0 %v1275
    %v1277 = vpop.xlane.xlu0 %1276
    %v1278 = vsel %vm127, %v1274, 0.0
    %1279 = vadd.xlane.f32.xlu0 %v1278
    %v1280 = vpop.xlane.xlu0 %1279
    %v1281 = vmul.f32 %v1277, %v1268
    %v1282 = vmul.f32 %v1280, %v1268
    %v1283 = vadd.f32 %v1281, 1e-05
    %v1284 = vadd.f32 %v1282, 1e-05
    %v1285 = vrsqrt.pop %v1283
    %v1286 = vrsqrt.pop %v1284
    %v1287 = vmul.f32 %v1271, %v1285
    %v1288 = vmul.f32 %v1272, %v1286
    %v1290 = vlaneseq
    %v1291 = vshrl.u32 %v1290, 7
    %v1292 = vsub.s32 0, %v1291
    %v1293 = vrot.slane %v1260, %v1292
    %v1295 = vmul.f32 %v1287, %v1293
    %v1296 = vmul.f32 %v1288, %v1293
    %v1298 = vlaneseq
    %v1299 = vshrl.u32 %v1298, 7
    %v1300 = vsub.s32 0, %v1299
    %v1301 = vrot.slane %v1261, %v1300
    %v1303 = vadd.f32 %v1295, %v1301
    %v1304 = vadd.f32 %v1296, %v1301
    %v1305 = vpack.c.bf16 %v1304, %v1303
    %v1306 = vld [vmem:[#allocation8] sm:$0xf]
    %v1307 = vld [vmem:[#allocation8 + $0x4] sm:$0xf]
    %v1308 = vld [vmem:[#allocation8 + $0x8] sm:$0xf]
    %v1309 = vld [vmem:[#allocation8 + $0xc] sm:$0xf]
    %v1310 = vld [vmem:[%s11] sm:$0x1]
    %v1312 = vlaneseq
    %v1313 = vshrl.u32 %v1312, 7
    %v1314 = vsub.s32 0, %v1313
    %v1315 = vrot.slane %v1310, %v1314
    %v1321 = vunpack.c.l.b16 %v1306
    %v1322 = vunpack.c.l.b16 %v1307
    %v1323 = vunpack.c.l.b16 %v1308
    %v1324 = vunpack.c.l.b16 %v1309
    %v1325 = vpack.c.b16 %v1322, %v1321
    %v1326 = vpack.c.b16 %v1324, %v1323
    %v1330 = vsel %vm127, %v1305, 0
    %1332 = vmatprep.subr.bf16.mxu0 0
    %1333 = vmatpush1.bf16.msra.mxu0 %v1325
    %1334 = vmatprep.subr.bf16.mxu0 0
    %1335 = vmatpush1.bf16.msra.mxu0 %v1326
    %1336 = vmatprep.subr.bf16.mxu0 0
    %1337 = vmatpush1.bf16.msra.mxu0 0
    %1338 = vmatprep.subr.bf16.mxu0 0
    %1339 = vmatpush1.bf16.msra.mxu0 0
    %1340 = vmatprep.subr.bf16.mxu0 0
    %1341 = vmatpush1.bf16.msra.mxu0 0
    %1342 = vmatprep.subr.bf16.mxu0 0
    %1343 = vmatpush1.bf16.msra.mxu0 0
    %1344 = vmatprep.subr.bf16.mxu0 0
    %1345 = vmatpush1.bf16.msra.mxu0 0
    %1346 = vmatprep.subr.bf16.mxu0 0
    %1347 = vmatpush1.bf16.msra.mxu0 0
    %1348 = vmatprep.subr.bf16.mxu0 0
    %1349 = vmatpush1.bf16.msra.mxu0 0
    %1350 = vmatprep.subr.bf16.mxu0 0
    %1351 = vmatpush1.bf16.msra.mxu0 0
    %1352 = vmatprep.subr.bf16.mxu0 0
    %1353 = vmatpush1.bf16.msra.mxu0 0
    %1354 = vmatprep.subr.bf16.mxu0 0
    %1355 = vmatpush1.bf16.msra.mxu0 0
    %1356 = vmatprep.subr.bf16.mxu0 0
    %1357 = vmatpush1.bf16.msra.mxu0 0
    %1358 = vmatprep.subr.bf16.mxu0 0
    %1359 = vmatpush1.bf16.msra.mxu0 0
    %1360 = vmatprep.subr.bf16.mxu0 0
    %1361 = vmatpush1.bf16.msra.mxu0 0
    %1362 = vmatprep.subr.bf16.mxu0 0
    %1363 = vmatpush1.bf16.msra.mxu0 0
    %1364 = vmatprep.mubr.bf16.mxu0 0
    %1365 = vmatmul.mubr.bf16.gmra.mrb[0].mxu0 %v1330
    %v1366 = vpop.f32.mrb[0].mxu0
    %v1367 = vadd.f32 %v1315, %v1366
    %v1368 = vpop.f32.mrb[0].mxu0
    %v1369 = vpop.f32.mrb[0].mxu0
    %v1370 = vadd.f32 %v1315, %v1369
    %v1371 = vpop.f32.mrb[0].mxu0
    %1372 = vdwg.mxu0
    %v1373 = vmax.f32 %v1367, 0.0
    %v1374 = vmax.f32 %v1370, 0.0
    %v1375 = vpack.c.bf16 %v1374, %v1373
    %v1376 = vld [vmem:[%s12] sm:$0xf]
    %v1377 = vld [vmem:[%s12 + $0x4] sm:$0xf]
    %v1378 = vld [vmem:[%s12 + $0x8] sm:$0xf]
    %v1379 = vld [vmem:[%s12 + $0xc] sm:$0xf]
    %v1380 = vld [vmem:[%s12 + $0x10] sm:$0xf]
    %v1381 = vld [vmem:[%s12 + $0x14] sm:$0xf]
    %v1382 = vld [vmem:[%s12 + $0x18] sm:$0xf]
    %v1383 = vld [vmem:[%s12 + $0x1c] sm:$0xf]
    %v1384 = vld [vmem:[%s13] sm:$0x1]
    %v1386 = vlaneseq
    %v1387 = vshrl.u32 %v1386, 7
    %v1388 = vsub.s32 0, %v1387
    %v1389 = vrot.slane %v1384, %v1388
    %v1399 = vunpack.c.l.b16 %v1376
    %v1400 = vunpack.c.l.b16 %v1377
    %v1401 = vunpack.c.l.b16 %v1378
    %v1402 = vunpack.c.l.b16 %v1379
    %v1403 = vunpack.c.l.b16 %v1380
    %v1404 = vunpack.c.l.b16 %v1381
    %v1405 = vunpack.c.l.b16 %v1382
    %v1406 = vunpack.c.l.b16 %v1383
    %v1407 = vpack.c.b16 %v1400, %v1399
    %v1408 = vpack.c.b16 %v1402, %v1401
    %v1409 = vpack.c.b16 %v1404, %v1403
    %v1410 = vpack.c.b16 %v1406, %v1405
    %vm1415 = vcmask 523264
    %v1417 = vsel %vm1415, %v1375, 0
    %1419 = vmatprep.subr.bf16.mxu0 0
    %1420 = vmatpush1.bf16.msra.mxu0 %v1407
    %1421 = vmatprep.subr.bf16.mxu0 0
    %1422 = vmatpush1.bf16.msra.mxu0 %v1408
    %1423 = vmatprep.subr.bf16.mxu0 0
    %1424 = vmatpush1.bf16.msra.mxu0 %v1409
    %1425 = vmatprep.subr.bf16.mxu0 0
    %1426 = vmatpush1.bf16.msra.mxu0 %v1410
    %1427 = vmatprep.subr.bf16.mxu0 0
    %1428 = vmatpush1.bf16.msra.mxu0 0
    %1429 = vmatprep.subr.bf16.mxu0 0
    %1430 = vmatpush1.bf16.msra.mxu0 0
    %1431 = vmatprep.subr.bf16.mxu0 0
    %1432 = vmatpush1.bf16.msra.mxu0 0
    %1433 = vmatprep.subr.bf16.mxu0 0
    %1434 = vmatpush1.bf16.msra.mxu0 0
    %1435 = vmatprep.subr.bf16.mxu0 0
    %1436 = vmatpush1.bf16.msra.mxu0 0
    %1437 = vmatprep.subr.bf16.mxu0 0
    %1438 = vmatpush1.bf16.msra.mxu0 0
    %1439 = vmatprep.subr.bf16.mxu0 0
    %1440 = vmatpush1.bf16.msra.mxu0 0
    %1441 = vmatprep.subr.bf16.mxu0 0
    %1442 = vmatpush1.bf16.msra.mxu0 0
    %1443 = vmatprep.subr.bf16.mxu0 0
    %1444 = vmatpush1.bf16.msra.mxu0 0
    %1445 = vmatprep.subr.bf16.mxu0 0
    %1446 = vmatpush1.bf16.msra.mxu0 0
    %1447 = vmatprep.subr.bf16.mxu0 0
    %1448 = vmatpush1.bf16.msra.mxu0 0
    %1449 = vmatprep.subr.bf16.mxu0 0
    %1450 = vmatpush1.bf16.msra.mxu0 0
    %1451 = vmatprep.mubr.bf16.mxu0 0
    %1452 = vmatmul.mubr.bf16.gmra.mrb[0].mxu0 %v1417
    %v1453 = vpop.f32.mrb[0].mxu0
    %v1454 = vadd.f32 %v1389, %v1453
    %v1455 = vpop.f32.mrb[0].mxu0
    %v1456 = vpop.f32.mrb[0].mxu0
    %v1457 = vadd.f32 %v1389, %v1456
    %v1458 = vpop.f32.mrb[0].mxu0
    %1459 = vdwg.mxu0
    %v1460 = vadd.f32 %v1303, %v1454
    %v1461 = vadd.f32 %v1304, %v1457
    %v1462 = vld [vmem:[%s14] sm:$0x1]
    %v1463 = vld [vmem:[%s15] sm:$0x1]
    %v1464 = vsel %vm127, %v1460, 0.0
    %1465 = vadd.xlane.f32.xlu0 %v1464
    %v1466 = vpop.xlane.xlu0 %1465
    %v1467 = vsel %vm127, %v1461, 0.0
    %1468 = vadd.xlane.f32.xlu0 %v1467
    %v1469 = vpop.xlane.xlu0 %1468
    %v1470 = vmul.f32 %v1466, %v1268
    %v1471 = vmul.f32 %v1469, %v1268
    %v1472 = vsub.f32 %v1460, %v1470
    %v1473 = vsub.f32 %v1461, %v1471
    %v1474 = vmul.f32 %v1472, %v1472
    %v1475 = vmul.f32 %v1473, %v1473
    %v1476 = vsel %vm127, %v1474, 0.0
    %1477 = vadd.xlane.f32.xlu0 %v1476
    %v1478 = vpop.xlane.xlu0 %1477
    %v1479 = vsel %vm127, %v1475, 0.0
    %1480 = vadd.xlane.f32.xlu0 %v1479
    %v1481 = vpop.xlane.xlu0 %1480
    %v1482 = vmul.f32 %v1478, %v1268
    %v1483 = vmul.f32 %v1481, %v1268
    %v1484 = vadd.f32 %v1482, 1e-05
    %v1485 = vadd.f32 %v1483, 1e-05
    %v1486 = vrsqrt.pop %v1484
    %v1487 = vrsqrt.pop %v1485
    %v1488 = vmul.f32 %v1472, %v1486
    %v1489 = vmul.f32 %v1473, %v1487
    %v1491 = vlaneseq
    %v1492 = vshrl.u32 %v1491, 7
    %v1493 = vsub.s32 0, %v1492
    %v1494 = vrot.slane %v1462, %v1493
    %v1496 = vmul.f32 %v1488, %v1494
    %v1497 = vmul.f32 %v1489, %v1494
    %v1499 = vlaneseq
    %v1500 = vshrl.u32 %v1499, 7
    %v1501 = vsub.s32 0, %v1500
    %v1502 = vrot.slane %v1463, %v1501
    %v1504 = vadd.f32 %v1496, %v1502
    %v1505 = vadd.f32 %v1497, %v1502
    %v1506 = vadd.f32 %v1504, %v98
    %v1507 = vadd.f32 %v1505, %v99
    %v1508 = vpack.c.bf16 %v1507, %v1506
    %v1509 = vpack.c.bf16 %v1505, %v1504
    %s1510 = scalar_lea.vmem %s2, 16
    %v1511 = vld [vmem:[%s1510] sm:$0xf]
    %v1512 = vld [vmem:[%s1510 + $0x4] sm:$0xf]
    %v1513 = vld [vmem:[%s1510 + $0x8] sm:$0xf]
    %v1514 = vld [vmem:[%s1510 + $0xc] sm:$0xf]
    %s1515 = scalar_lea.vmem %s3, 1
    %v1516 = vld [vmem:[%s1515] sm:$0x1]
    %v1518 = vlaneseq
    %v1519 = vshrl.u32 %v1518, 7
    %v1520 = vsub.s32 0, %v1519
    %v1521 = vrot.slane %v1516, %v1520
    %v1527 = vunpack.c.l.b16 %v1511
    %v1528 = vunpack.c.l.b16 %v1512
    %v1529 = vunpack.c.l.b16 %v1513
    %v1530 = vunpack.c.l.b16 %v1514
    %v1531 = vpack.c.b16 %v1528, %v1527
    %v1532 = vpack.c.b16 %v1530, %v1529
    %v1536 = vsel %vm127, %v1508, 0
    %1538 = vmatprep.subr.bf16.mxu0 0
    %1539 = vmatpush1.bf16.msra.mxu0 %v1531
    %1540 = vmatprep.subr.bf16.mxu0 0
    %1541 = vmatpush1.bf16.msra.mxu0 %v1532
    %1542 = vmatprep.subr.bf16.mxu0 0
    %1543 = vmatpush1.bf16.msra.mxu0 0
    %1544 = vmatprep.subr.bf16.mxu0 0
    %1545 = vmatpush1.bf16.msra.mxu0 0
    %1546 = vmatprep.subr.bf16.mxu0 0
    %1547 = vmatpush1.bf16.msra.mxu0 0
    %1548 = vmatprep.subr.bf16.mxu0 0
    %1549 = vmatpush1.bf16.msra.mxu0 0
    %1550 = vmatprep.subr.bf16.mxu0 0
    %1551 = vmatpush1.bf16.msra.mxu0 0
    %1552 = vmatprep.subr.bf16.mxu0 0
    %1553 = vmatpush1.bf16.msra.mxu0 0
    %1554 = vmatprep.subr.bf16.mxu0 0
    %1555 = vmatpush1.bf16.msra.mxu0 0
    %1556 = vmatprep.subr.bf16.mxu0 0
    %1557 = vmatpush1.bf16.msra.mxu0 0
    %1558 = vmatprep.subr.bf16.mxu0 0
    %1559 = vmatpush1.bf16.msra.mxu0 0
    %1560 = vmatprep.subr.bf16.mxu0 0
    %1561 = vmatpush1.bf16.msra.mxu0 0
    %1562 = vmatprep.subr.bf16.mxu0 0
    %1563 = vmatpush1.bf16.msra.mxu0 0
    %1564 = vmatprep.subr.bf16.mxu0 0
    %1565 = vmatpush1.bf16.msra.mxu0 0
    %1566 = vmatprep.subr.bf16.mxu0 0
    %1567 = vmatpush1.bf16.msra.mxu0 0
    %1568 = vmatprep.subr.bf16.mxu0 0
    %1569 = vmatpush1.bf16.msra.mxu0 0
    %1570 = vmatprep.mubr.bf16.mxu0 0
    %1571 = vmatmul.mubr.bf16.gmra.mrb[0].mxu0 %v1536
    %v1572 = vpop.f32.mrb[0].mxu0
    %v1573 = vadd.f32 %v1521, %v1572
    %v1574 = vpop.f32.mrb[0].mxu0
    %v1575 = vpop.f32.mrb[0].mxu0
    %v1576 = vadd.f32 %v1521, %v1575
    %v1577 = vpop.f32.mrb[0].mxu0
    %1578 = vdwg.mxu0
    %s1579 = scalar_lea.vmem %s4, 16
    %v1580 = vld [vmem:[%s1579] sm:$0xf]
    %v1581 = vld [vmem:[%s1579 + $0x4] sm:$0xf]
    %v1582 = vld [vmem:[%s1579 + $0x8] sm:$0xf]
    %v1583 = vld [vmem:[%s1579 + $0xc] sm:$0xf]
    %s1584 = scalar_lea.vmem %s5, 1
    %v1585 = vld [vmem:[%s1584] sm:$0x1]
    %v1587 = vlaneseq
    %v1588 = vshrl.u32 %v1587, 7
    %v1589 = vsub.s32 0, %v1588
    %v1590 = vrot.slane %v1585, %v1589
    %v1596 = vunpack.c.l.b16 %v1580
    %v1597 = vunpack.c.l.b16 %v1581
    %v1598 = vunpack.c.l.b16 %v1582
    %v1599 = vunpack.c.l.b16 %v1583
    %v1600 = vpack.c.b16 %v1597, %v1596
    %v1601 = vpack.c.b16 %v1599, %v1598
    %v1605 = vsel %vm127, %v1509, 0
    %1607 = vmatprep.subr.bf16.mxu0 0
    %1608 = vmatpush1.bf16.msra.mxu0 %v1600
    %1609 = vmatprep.subr.bf16.mxu0 0
    %1610 = vmatpush1.bf16.msra.mxu0 %v1601
    %1611 = vmatprep.subr.bf16.mxu0 0
    %1612 = vmatpush1.bf16.msra.mxu0 0
    %1613 = vmatprep.subr.bf16.mxu0 0
    %1614 = vmatpush1.bf16.msra.mxu0 0
    %1615 = vmatprep.subr.bf16.mxu0 0
    %1616 = vmatpush1.bf16.msra.mxu0 0
    %1617 = vmatprep.subr.bf16.mxu0 0
    %1618 = vmatpush1.bf16.msra.mxu0 0
    %1619 = vmatprep.subr.bf16.mxu0 0
    %1620 = vmatpush1.bf16.msra.mxu0 0
    %1621 = vmatprep.subr.bf16.mxu0 0
    %1622 = vmatpush1.bf16.msra.mxu0 0
    %1623 = vmatprep.subr.bf16.mxu0 0
    %1624 = vmatpush1.bf16.msra.mxu0 0
    %1625 = vmatprep.subr.bf16.mxu0 0
    %1626 = vmatpush1.bf16.msra.mxu0 0
    %1627 = vmatprep.subr.bf16.mxu0 0
    %1628 = vmatpush1.bf16.msra.mxu0 0
    %1629 = vmatprep.subr.bf16.mxu0 0
    %1630 = vmatpush1.bf16.msra.mxu0 0
    %1631 = vmatprep.subr.bf16.mxu0 0
    %1632 = vmatpush1.bf16.msra.mxu0 0
    %1633 = vmatprep.subr.bf16.mxu0 0
    %1634 = vmatpush1.bf16.msra.mxu0 0
    %1635 = vmatprep.subr.bf16.mxu0 0
    %1636 = vmatpush1.bf16.msra.mxu0 0
    %1637 = vmatprep.subr.bf16.mxu0 0
    %1638 = vmatpush1.bf16.msra.mxu0 0
    %1639 = vmatprep.mubr.bf16.mxu0 0
    %1640 = vmatmul.mubr.bf16.gmra.mrb[0].mxu0 %v1605
    %v1641 = vpop.f32.mrb[0].mxu0
    %v1642 = vadd.f32 %v1590, %v1641
    %v1643 = vpop.f32.mrb[0].mxu0
    %v1644 = vpop.f32.mrb[0].mxu0
    %v1645 = vadd.f32 %v1590, %v1644
    %v1646 = vpop.f32.mrb[0].mxu0
    %1647 = vdwg.mxu0
    %1650 = vrot.lane.b32.xlu0 %v1573, 120
    %v1651 = vpop.permute.xlu0 %1650
    %1652 = vrot.lane.b32.xlu0 %v1576, 120
    %v1653 = vpop.permute.xlu0 %1652
    %1656 = vrot.lane.b32.xlu0 %v1573, 112
    %v1657 = vpop.permute.xlu0 %1656
    %1658 = vrot.lane.b32.xlu0 %v1576, 112
    %v1659 = vpop.permute.xlu0 %1658
    %1662 = vrot.lane.b32.xlu0 %v1573, 104
    %v1663 = vpop.permute.xlu0 %1662
    %1664 = vrot.lane.b32.xlu0 %v1576, 104
    %v1665 = vpop.permute.xlu0 %1664
    %1670 = vrot.lane.b32.xlu0 %v1642, 120
    %v1671 = vpop.permute.xlu0 %1670
    %1672 = vrot.lane.b32.xlu0 %v1645, 120
    %v1673 = vpop.permute.xlu0 %1672
    %1676 = vrot.lane.b32.xlu0 %v1642, 112
    %v1677 = vpop.permute.xlu0 %1676
    %1678 = vrot.lane.b32.xlu0 %v1645, 112
    %v1679 = vpop.permute.xlu0 %1678
    %1682 = vrot.lane.b32.xlu0 %v1642, 104
    %v1683 = vpop.permute.xlu0 %1682
    %1684 = vrot.lane.b32.xlu0 %v1645, 104
    %v1685 = vpop.permute.xlu0 %1684
    %v1688 = vpack.c.bf16 %v1573, %v1573
    %v1689 = vpack.c.bf16 %v1576, %v1576
    %v1690 = vpack.c.bf16 %v1651, %v1651
    %v1691 = vpack.c.bf16 %v1653, %v1653
    %v1692 = vpack.c.bf16 %v1657, %v1657
    %v1693 = vpack.c.bf16 %v1659, %v1659
    %v1694 = vpack.c.bf16 %v1663, %v1663
    %v1695 = vpack.c.bf16 %v1665, %v1665
    %1697 = vrot.lane.b32.xlu0 %v1688, 96
    %v1698 = vpop.permute.xlu0 %1697
    %v1700 = vsel %vm290, %v1688, 0
    %v1703 = vsel %vm290, %v1698, 0
    %1705 = vmatprep.subr.bf16.mxu0 0
    %1706 = vmatpush1.bf16.xpose.msra.mxu0 %v1703
    %1707 = vmatprep.subr.bf16.mxu0 0
    %1708 = vmatpush1.bf16.xpose.msra.mxu0 0
    %1709 = vmatprep.subr.bf16.mxu0 0
    %1710 = vmatpush1.bf16.xpose.msra.mxu0 0
    %1711 = vmatprep.subr.bf16.mxu0 0
    %1712 = vmatpush1.bf16.xpose.msra.mxu0 0
    %1713 = vmatprep.subr.bf16.mxu0 0
    %1714 = vmatpush1.bf16.xpose.msra.mxu0 0
    %1715 = vmatprep.subr.bf16.mxu0 0
    %1716 = vmatpush1.bf16.xpose.msra.mxu0 0
    %1717 = vmatprep.subr.bf16.mxu0 0
    %1718 = vmatpush1.bf16.xpose.msra.mxu0 0
    %1719 = vmatprep.subr.bf16.mxu0 0
    %1720 = vmatpush1.bf16.xpose.msra.mxu0 0
    %1721 = vmatprep.subr.bf16.mxu0 0
    %1722 = vmatpush1.bf16.xpose.msra.mxu0 0
    %1723 = vmatprep.subr.bf16.mxu0 0
    %1724 = vmatpush1.bf16.xpose.msra.mxu0 0
    %1725 = vmatprep.subr.bf16.mxu0 0
    %1726 = vmatpush1.bf16.xpose.msra.mxu0 0
    %1727 = vmatprep.subr.bf16.mxu0 0
    %1728 = vmatpush1.bf16.xpose.msra.mxu0 0
    %1729 = vmatprep.subr.bf16.mxu0 0
    %1730 = vmatpush1.bf16.xpose.msra.mxu0 0
    %1731 = vmatprep.subr.bf16.mxu0 0
    %1732 = vmatpush1.bf16.xpose.msra.mxu0 0
    %1733 = vmatprep.subr.bf16.mxu0 0
    %1734 = vmatpush1.bf16.xpose.msra.mxu0 0
    %1735 = vmatprep.subr.bf16.mxu0 0
    %1736 = vmatpush1.bf16.xpose.msra.mxu0 0
    %1737 = vmatprep.mubr.bf16.mxu0 0
    %1738 = vmatmul.mubr.bf16.gmra.mrb[0].mxu0 %v1700
    %v1739 = vpop.f32.mrb[0].mxu0
    %v1740 = vadd.f32 0.0, %v1739
    %v1741 = vpop.f32.mrb[0].mxu0
    %v1742 = vpop.f32.mrb[0].mxu0
    %v1743 = vpop.f32.mrb[0].mxu0
    %1744 = vdwg.mxu0
    %1746 = vrot.lane.b32.xlu0 %v1689, 96
    %v1747 = vpop.permute.xlu0 %1746
    %v1749 = vsel %vm290, %v1689, 0
    %v1752 = vsel %vm290, %v1747, 0
    %1754 = vmatprep.subr.bf16.mxu0 0
    %1755 = vmatpush1.bf16.xpose.msra.mxu0 %v1752
    %1756 = vmatprep.subr.bf16.mxu0 0
    %1757 = vmatpush1.bf16.xpose.msra.mxu0 0
    %1758 = vmatprep.subr.bf16.mxu0 0
    %1759 = vmatpush1.bf16.xpose.msra.mxu0 0
    %1760 = vmatprep.subr.bf16.mxu0 0
    %1761 = vmatpush1.bf16.xpose.msra.mxu0 0
    %1762 = vmatprep.subr.bf16.mxu0 0
    %1763 = vmatpush1.bf16.xpose.msra.mxu0 0
    %1764 = vmatprep.subr.bf16.mxu0 0
    %1765 = vmatpush1.bf16.xpose.msra.mxu0 0
    %1766 = vmatprep.subr.bf16.mxu0 0
    %1767 = vmatpush1.bf16.xpose.msra.mxu0 0
    %1768 = vmatprep.subr.bf16.mxu0 0
    %1769 = vmatpush1.bf16.xpose.msra.mxu0 0
    %1770 = vmatprep.subr.bf16.mxu0 0
    %1771 = vmatpush1.bf16.xpose.msra.mxu0 0
    %1772 = vmatprep.subr.bf16.mxu0 0
    %1773 = vmatpush1.bf16.xpose.msra.mxu0 0
    %1774 = vmatprep.subr.bf16.mxu0 0
    %1775 = vmatpush1.bf16.xpose.msra.mxu0 0
    %1776 = vmatprep.subr.bf16.mxu0 0
    %1777 = vmatpush1.bf16.xpose.msra.mxu0 0
    %1778 = vmatprep.subr.bf16.mxu0 0
    %1779 = vmatpush1.bf16.xpose.msra.mxu0 0
    %1780 = vmatprep.subr.bf16.mxu0 0
    %1781 = vmatpush1.bf16.xpose.msra.mxu0 0
    %1782 = vmatprep.subr.bf16.mxu0 0
    %1783 = vmatpush1.bf16.xpose.msra.mxu0 0
    %1784 = vmatprep.subr.bf16.mxu0 0
    %1785 = vmatpush1.bf16.xpose.msra.mxu0 0
    %1786 = vmatprep.mubr.bf16.mxu0 0
    %1787 = vmatmul.mubr.bf16.gmra.mrb[0].mxu0 %v1749
    %v1788 = vpop.f32.mrb[0].mxu0
    %v1789 = vadd.f32 0.0, %v1788
    %v1790 = vpop.f32.mrb[0].mxu0
    %v1791 = vpop.f32.mrb[0].mxu0
    %v1792 = vpop.f32.mrb[0].mxu0
    %1793 = vdwg.mxu0
    %1795 = vrot.lane.b32.xlu0 %v1690, 96
    %v1796 = vpop.permute.xlu0 %1795
    %v1798 = vsel %vm290, %v1690, 0
    %v1801 = vsel %vm290, %v1796, 0
    %1803 = vmatprep.subr.bf16.mxu0 0
    %1804 = vmatpush1.bf16.xpose.msra.mxu0 %v1801
    %1805 = vmatprep.subr.bf16.mxu0 0
    %1806 = vmatpush1.bf16.xpose.msra.mxu0 0
    %1807 = vmatprep.subr.bf16.mxu0 0
    %1808 = vmatpush1.bf16.xpose.msra.mxu0 0
    %1809 = vmatprep.subr.bf16.mxu0 0
    %1810 = vmatpush1.bf16.xpose.msra.mxu0 0
    %1811 = vmatprep.subr.bf16.mxu0 0
    %1812 = vmatpush1.bf16.xpose.msra.mxu0 0
    %1813 = vmatprep.subr.bf16.mxu0 0
    %1814 = vmatpush1.bf16.xpose.msra.mxu0 0
    %1815 = vmatprep.subr.bf16.mxu0 0
    %1816 = vmatpush1.bf16.xpose.msra.mxu0 0
    %1817 = vmatprep.subr.bf16.mxu0 0
    %1818 = vmatpush1.bf16.xpose.msra.mxu0 0
    %1819 = vmatprep.subr.bf16.mxu0 0
    %1820 = vmatpush1.bf16.xpose.msra.mxu0 0
    %1821 = vmatprep.subr.bf16.mxu0 0
    %1822 = vmatpush1.bf16.xpose.msra.mxu0 0
    %1823 = vmatprep.subr.bf16.mxu0 0
    %1824 = vmatpush1.bf16.xpose.msra.mxu0 0
    %1825 = vmatprep.subr.bf16.mxu0 0
    %1826 = vmatpush1.bf16.xpose.msra.mxu0 0
    %1827 = vmatprep.subr.bf16.mxu0 0
    %1828 = vmatpush1.bf16.xpose.msra.mxu0 0
    %1829 = vmatprep.subr.bf16.mxu0 0
    %1830 = vmatpush1.bf16.xpose.msra.mxu0 0
    %1831 = vmatprep.subr.bf16.mxu0 0
    %1832 = vmatpush1.bf16.xpose.msra.mxu0 0
    %1833 = vmatprep.subr.bf16.mxu0 0
    %1834 = vmatpush1.bf16.xpose.msra.mxu0 0
    %1835 = vmatprep.mubr.bf16.mxu0 0
    %1836 = vmatmul.mubr.bf16.gmra.mrb[0].mxu0 %v1798
    %v1837 = vpop.f32.mrb[0].mxu0
    %v1838 = vadd.f32 0.0, %v1837
    %v1839 = vpop.f32.mrb[0].mxu0
    %v1840 = vpop.f32.mrb[0].mxu0
    %v1841 = vpop.f32.mrb[0].mxu0
    %1842 = vdwg.mxu0
    %1844 = vrot.lane.b32.xlu0 %v1691, 96
    %v1845 = vpop.permute.xlu0 %1844
    %v1847 = vsel %vm290, %v1691, 0
    %v1850 = vsel %vm290, %v1845, 0
    %1852 = vmatprep.subr.bf16.mxu0 0
    %1853 = vmatpush1.bf16.xpose.msra.mxu0 %v1850
    %1854 = vmatprep.subr.bf16.mxu0 0
    %1855 = vmatpush1.bf16.xpose.msra.mxu0 0
    %1856 = vmatprep.subr.bf16.mxu0 0
    %1857 = vmatpush1.bf16.xpose.msra.mxu0 0
    %1858 = vmatprep.subr.bf16.mxu0 0
    %1859 = vmatpush1.bf16.xpose.msra.mxu0 0
    %1860 = vmatprep.subr.bf16.mxu0 0
    %1861 = vmatpush1.bf16.xpose.msra.mxu0 0
    %1862 = vmatprep.subr.bf16.mxu0 0
    %1863 = vmatpush1.bf16.xpose.msra.mxu0 0
    %1864 = vmatprep.subr.bf16.mxu0 0
    %1865 = vmatpush1.bf16.xpose.msra.mxu0 0
    %1866 = vmatprep.subr.bf16.mxu0 0
    %1867 = vmatpush1.bf16.xpose.msra.mxu0 0
    %1868 = vmatprep.subr.bf16.mxu0 0
    %1869 = vmatpush1.bf16.xpose.msra.mxu0 0
    %1870 = vmatprep.subr.bf16.mxu0 0
    %1871 = vmatpush1.bf16.xpose.msra.mxu0 0
    %1872 = vmatprep.subr.bf16.mxu0 0
    %1873 = vmatpush1.bf16.xpose.msra.mxu0 0
    %1874 = vmatprep.subr.bf16.mxu0 0
    %1875 = vmatpush1.bf16.xpose.msra.mxu0 0
    %1876 = vmatprep.subr.bf16.mxu0 0
    %1877 = vmatpush1.bf16.xpose.msra.mxu0 0
    %1878 = vmatprep.subr.bf16.mxu0 0
    %1879 = vmatpush1.bf16.xpose.msra.mxu0 0
    %1880 = vmatprep.subr.bf16.mxu0 0
    %1881 = vmatpush1.bf16.xpose.msra.mxu0 0
    %1882 = vmatprep.subr.bf16.mxu0 0
    %1883 = vmatpush1.bf16.xpose.msra.mxu0 0
    %1884 = vmatprep.mubr.bf16.mxu0 0
    %1885 = vmatmul.mubr.bf16.gmra.mrb[0].mxu0 %v1847
    %v1886 = vpop.f32.mrb[0].mxu0
    %v1887 = vadd.f32 0.0, %v1886
    %v1888 = vpop.f32.mrb[0].mxu0
    %v1889 = vpop.f32.mrb[0].mxu0
    %v1890 = vpop.f32.mrb[0].mxu0
    %1891 = vdwg.mxu0
    %1893 = vrot.lane.b32.xlu0 %v1692, 96
    %v1894 = vpop.permute.xlu0 %1893
    %v1896 = vsel %vm290, %v1692, 0
    %v1899 = vsel %vm290, %v1894, 0
    %1901 = vmatprep.subr.bf16.mxu0 0
    %1902 = vmatpush1.bf16.xpose.msra.mxu0 %v1899
    %1903 = vmatprep.subr.bf16.mxu0 0
    %1904 = vmatpush1.bf16.xpose.msra.mxu0 0
    %1905 = vmatprep.subr.bf16.mxu0 0
    %1906 = vmatpush1.bf16.xpose.msra.mxu0 0
    %1907 = vmatprep.subr.bf16.mxu0 0
    %1908 = vmatpush1.bf16.xpose.msra.mxu0 0
    %1909 = vmatprep.subr.bf16.mxu0 0
    %1910 = vmatpush1.bf16.xpose.msra.mxu0 0
    %1911 = vmatprep.subr.bf16.mxu0 0
    %1912 = vmatpush1.bf16.xpose.msra.mxu0 0
    %1913 = vmatprep.subr.bf16.mxu0 0
    %1914 = vmatpush1.bf16.xpose.msra.mxu0 0
    %1915 = vmatprep.subr.bf16.mxu0 0
    %1916 = vmatpush1.bf16.xpose.msra.mxu0 0
    %1917 = vmatprep.subr.bf16.mxu0 0
    %1918 = vmatpush1.bf16.xpose.msra.mxu0 0
    %1919 = vmatprep.subr.bf16.mxu0 0
    %1920 = vmatpush1.bf16.xpose.msra.mxu0 0
    %1921 = vmatprep.subr.bf16.mxu0 0
    %1922 = vmatpush1.bf16.xpose.msra.mxu0 0
    %1923 = vmatprep.subr.bf16.mxu0 0
    %1924 = vmatpush1.bf16.xpose.msra.mxu0 0
    %1925 = vmatprep.subr.bf16.mxu0 0
    %1926 = vmatpush1.bf16.xpose.msra.mxu0 0
    %1927 = vmatprep.subr.bf16.mxu0 0
    %1928 = vmatpush1.bf16.xpose.msra.mxu0 0
    %1929 = vmatprep.subr.bf16.mxu0 0
    %1930 = vmatpush1.bf16.xpose.msra.mxu0 0
    %1931 = vmatprep.subr.bf16.mxu0 0
    %1932 = vmatpush1.bf16.xpose.msra.mxu0 0
    %1933 = vmatprep.mubr.bf16.mxu0 0
    %1934 = vmatmul.mubr.bf16.gmra.mrb[0].mxu0 %v1896
    %v1935 = vpop.f32.mrb[0].mxu0
    %v1936 = vadd.f32 0.0, %v1935
    %v1937 = vpop.f32.mrb[0].mxu0
    %v1938 = vpop.f32.mrb[0].mxu0
    %v1939 = vpop.f32.mrb[0].mxu0
    %1940 = vdwg.mxu0
    %1942 = vrot.lane.b32.xlu0 %v1693, 96
    %v1943 = vpop.permute.xlu0 %1942
    %v1945 = vsel %vm290, %v1693, 0
    %v1948 = vsel %vm290, %v1943, 0
    %1950 = vmatprep.subr.bf16.mxu0 0
    %1951 = vmatpush1.bf16.xpose.msra.mxu0 %v1948
    %1952 = vmatprep.subr.bf16.mxu0 0
    %1953 = vmatpush1.bf16.xpose.msra.mxu0 0
    %1954 = vmatprep.subr.bf16.mxu0 0
    %1955 = vmatpush1.bf16.xpose.msra.mxu0 0
    %1956 = vmatprep.subr.bf16.mxu0 0
    %1957 = vmatpush1.bf16.xpose.msra.mxu0 0
    %1958 = vmatprep.subr.bf16.mxu0 0
    %1959 = vmatpush1.bf16.xpose.msra.mxu0 0
    %1960 = vmatprep.subr.bf16.mxu0 0
    %1961 = vmatpush1.bf16.xpose.msra.mxu0 0
    %1962 = vmatprep.subr.bf16.mxu0 0
    %1963 = vmatpush1.bf16.xpose.msra.mxu0 0
    %1964 = vmatprep.subr.bf16.mxu0 0
    %1965 = vmatpush1.bf16.xpose.msra.mxu0 0
    %1966 = vmatprep.subr.bf16.mxu0 0
    %1967 = vmatpush1.bf16.xpose.msra.mxu0 0
    %1968 = vmatprep.subr.bf16.mxu0 0
    %1969 = vmatpush1.bf16.xpose.msra.mxu0 0
    %1970 = vmatprep.subr.bf16.mxu0 0
    %1971 = vmatpush1.bf16.xpose.msra.mxu0 0
    %1972 = vmatprep.subr.bf16.mxu0 0
    %1973 = vmatpush1.bf16.xpose.msra.mxu0 0
    %1974 = vmatprep.subr.bf16.mxu0 0
    %1975 = vmatpush1.bf16.xpose.msra.mxu0 0
    %1976 = vmatprep.subr.bf16.mxu0 0
    %1977 = vmatpush1.bf16.xpose.msra.mxu0 0
    %1978 = vmatprep.subr.bf16.mxu0 0
    %1979 = vmatpush1.bf16.xpose.msra.mxu0 0
    %1980 = vmatprep.subr.bf16.mxu0 0
    %1981 = vmatpush1.bf16.xpose.msra.mxu0 0
    %1982 = vmatprep.mubr.bf16.mxu0 0
    %1983 = vmatmul.mubr.bf16.gmra.mrb[0].mxu0 %v1945
    %v1984 = vpop.f32.mrb[0].mxu0
    %v1985 = vadd.f32 0.0, %v1984
    %v1986 = vpop.f32.mrb[0].mxu0
    %v1987 = vpop.f32.mrb[0].mxu0
    %v1988 = vpop.f32.mrb[0].mxu0
    %1989 = vdwg.mxu0
    %1991 = vrot.lane.b32.xlu0 %v1694, 96
    %v1992 = vpop.permute.xlu0 %1991
    %v1994 = vsel %vm290, %v1694, 0
    %v1997 = vsel %vm290, %v1992, 0
    %1999 = vmatprep.subr.bf16.mxu0 0
    %2000 = vmatpush1.bf16.xpose.msra.mxu0 %v1997
    %2001 = vmatprep.subr.bf16.mxu0 0
    %2002 = vmatpush1.bf16.xpose.msra.mxu0 0
    %2003 = vmatprep.subr.bf16.mxu0 0
    %2004 = vmatpush1.bf16.xpose.msra.mxu0 0
    %2005 = vmatprep.subr.bf16.mxu0 0
    %2006 = vmatpush1.bf16.xpose.msra.mxu0 0
    %2007 = vmatprep.subr.bf16.mxu0 0
    %2008 = vmatpush1.bf16.xpose.msra.mxu0 0
    %2009 = vmatprep.subr.bf16.mxu0 0
    %2010 = vmatpush1.bf16.xpose.msra.mxu0 0
    %2011 = vmatprep.subr.bf16.mxu0 0
    %2012 = vmatpush1.bf16.xpose.msra.mxu0 0
    %2013 = vmatprep.subr.bf16.mxu0 0
    %2014 = vmatpush1.bf16.xpose.msra.mxu0 0
    %2015 = vmatprep.subr.bf16.mxu0 0
    %2016 = vmatpush1.bf16.xpose.msra.mxu0 0
    %2017 = vmatprep.subr.bf16.mxu0 0
    %2018 = vmatpush1.bf16.xpose.msra.mxu0 0
    %2019 = vmatprep.subr.bf16.mxu0 0
    %2020 = vmatpush1.bf16.xpose.msra.mxu0 0
    %2021 = vmatprep.subr.bf16.mxu0 0
    %2022 = vmatpush1.bf16.xpose.msra.mxu0 0
    %2023 = vmatprep.subr.bf16.mxu0 0
    %2024 = vmatpush1.bf16.xpose.msra.mxu0 0
    %2025 = vmatprep.subr.bf16.mxu0 0
    %2026 = vmatpush1.bf16.xpose.msra.mxu0 0
    %2027 = vmatprep.subr.bf16.mxu0 0
    %2028 = vmatpush1.bf16.xpose.msra.mxu0 0
    %2029 = vmatprep.subr.bf16.mxu0 0
    %2030 = vmatpush1.bf16.xpose.msra.mxu0 0
    %2031 = vmatprep.mubr.bf16.mxu0 0
    %2032 = vmatmul.mubr.bf16.gmra.mrb[0].mxu0 %v1994
    %v2033 = vpop.f32.mrb[0].mxu0
    %v2034 = vadd.f32 0.0, %v2033
    %v2035 = vpop.f32.mrb[0].mxu0
    %v2036 = vpop.f32.mrb[0].mxu0
    %v2037 = vpop.f32.mrb[0].mxu0
    %2038 = vdwg.mxu0
    %2040 = vrot.lane.b32.xlu0 %v1695, 96
    %v2041 = vpop.permute.xlu0 %2040
    %v2043 = vsel %vm290, %v1695, 0
    %v2046 = vsel %vm290, %v2041, 0
    %2048 = vmatprep.subr.bf16.mxu0 0
    %2049 = vmatpush1.bf16.xpose.msra.mxu0 %v2046
    %2050 = vmatprep.subr.bf16.mxu0 0
    %2051 = vmatpush1.bf16.xpose.msra.mxu0 0
    %2052 = vmatprep.subr.bf16.mxu0 0
    %2053 = vmatpush1.bf16.xpose.msra.mxu0 0
    %2054 = vmatprep.subr.bf16.mxu0 0
    %2055 = vmatpush1.bf16.xpose.msra.mxu0 0
    %2056 = vmatprep.subr.bf16.mxu0 0
    %2057 = vmatpush1.bf16.xpose.msra.mxu0 0
    %2058 = vmatprep.subr.bf16.mxu0 0
    %2059 = vmatpush1.bf16.xpose.msra.mxu0 0
    %2060 = vmatprep.subr.bf16.mxu0 0
    %2061 = vmatpush1.bf16.xpose.msra.mxu0 0
    %2062 = vmatprep.subr.bf16.mxu0 0
    %2063 = vmatpush1.bf16.xpose.msra.mxu0 0
    %2064 = vmatprep.subr.bf16.mxu0 0
    %2065 = vmatpush1.bf16.xpose.msra.mxu0 0
    %2066 = vmatprep.subr.bf16.mxu0 0
    %2067 = vmatpush1.bf16.xpose.msra.mxu0 0
    %2068 = vmatprep.subr.bf16.mxu0 0
    %2069 = vmatpush1.bf16.xpose.msra.mxu0 0
    %2070 = vmatprep.subr.bf16.mxu0 0
    %2071 = vmatpush1.bf16.xpose.msra.mxu0 0
    %2072 = vmatprep.subr.bf16.mxu0 0
    %2073 = vmatpush1.bf16.xpose.msra.mxu0 0
    %2074 = vmatprep.subr.bf16.mxu0 0
    %2075 = vmatpush1.bf16.xpose.msra.mxu0 0
    %2076 = vmatprep.subr.bf16.mxu0 0
    %2077 = vmatpush1.bf16.xpose.msra.mxu0 0
    %2078 = vmatprep.subr.bf16.mxu0 0
    %2079 = vmatpush1.bf16.xpose.msra.mxu0 0
    %2080 = vmatprep.mubr.bf16.mxu0 0
    %2081 = vmatmul.mubr.bf16.gmra.mrb[0].mxu0 %v2043
    %v2082 = vpop.f32.mrb[0].mxu0
    %v2083 = vadd.f32 0.0, %v2082
    %v2084 = vpop.f32.mrb[0].mxu0
    %v2085 = vpop.f32.mrb[0].mxu0
    %v2086 = vpop.f32.mrb[0].mxu0
    %2087 = vdwg.mxu0
    %v2088 = vsel %vm290, %v1740, -inf
    %2089 = vmax.xlane.f32.xlu0 %v2088
    %v2090 = vpop.xlane.xlu0 %2089
    %v2091 = vsel %vm290, %v1789, -inf
    %2092 = vmax.xlane.f32.xlu0 %v2091
    %v2093 = vpop.xlane.xlu0 %2092
    %v2094 = vsel %vm290, %v1838, -inf
    %2095 = vmax.xlane.f32.xlu0 %v2094
    %v2096 = vpop.xlane.xlu0 %2095
    %v2097 = vsel %vm290, %v1887, -inf
    %2098 = vmax.xlane.f32.xlu0 %v2097
    %v2099 = vpop.xlane.xlu0 %2098
    %v2100 = vsel %vm290, %v1936, -inf
    %2101 = vmax.xlane.f32.xlu0 %v2100
    %v2102 = vpop.xlane.xlu0 %2101
    %v2103 = vsel %vm290, %v1985, -inf
    %2104 = vmax.xlane.f32.xlu0 %v2103
    %v2105 = vpop.xlane.xlu0 %2104
    %v2106 = vsel %vm290, %v2034, -inf
    %2107 = vmax.xlane.f32.xlu0 %v2106
    %v2108 = vpop.xlane.xlu0 %2107
    %v2109 = vsel %vm290, %v2083, -inf
    %2110 = vmax.xlane.f32.xlu0 %v2109
    %v2111 = vpop.xlane.xlu0 %2110
    %v2112 = vsub.f32 %v1740, %v2090
    %v2113 = vsub.f32 %v1789, %v2093
    %v2114 = vsub.f32 %v1838, %v2096
    %v2115 = vsub.f32 %v1887, %v2099
    %v2116 = vsub.f32 %v1936, %v2102
    %v2117 = vsub.f32 %v1985, %v2105
    %v2118 = vsub.f32 %v2034, %v2108
    %v2119 = vsub.f32 %v2083, %v2111
    %v2120 = vmul.f32 %v2112, 1.442695
    %v2121 = vpow.pop %v2120
    %v2122 = vmul.f32 %v2113, 1.442695
    %v2123 = vpow.pop %v2122
    %v2124 = vmul.f32 %v2114, 1.442695
    %v2125 = vpow.pop %v2124
    %v2126 = vmul.f32 %v2115, 1.442695
    %v2127 = vpow.pop %v2126
    %v2128 = vmul.f32 %v2116, 1.442695
    %v2129 = vpow.pop %v2128
    %v2130 = vmul.f32 %v2117, 1.442695
    %v2131 = vpow.pop %v2130
    %v2132 = vmul.f32 %v2118, 1.442695
    %v2133 = vpow.pop %v2132
    %v2134 = vmul.f32 %v2119, 1.442695
    %v2135 = vpow.pop %v2134
    %v2136 = vsel %vm290, %v2121, 0.0
    %2137 = vadd.xlane.f32.xlu0 %v2136
    %v2138 = vpop.xlane.xlu0 %2137
    %v2139 = vsel %vm290, %v2123, 0.0
    %2140 = vadd.xlane.f32.xlu0 %v2139
    %v2141 = vpop.xlane.xlu0 %2140
    %v2142 = vsel %vm290, %v2125, 0.0
    %2143 = vadd.xlane.f32.xlu0 %v2142
    %v2144 = vpop.xlane.xlu0 %2143
    %v2145 = vsel %vm290, %v2127, 0.0
    %2146 = vadd.xlane.f32.xlu0 %v2145
    %v2147 = vpop.xlane.xlu0 %2146
    %v2148 = vsel %vm290, %v2129, 0.0
    %2149 = vadd.xlane.f32.xlu0 %v2148
    %v2150 = vpop.xlane.xlu0 %2149
    %v2151 = vsel %vm290, %v2131, 0.0
    %2152 = vadd.xlane.f32.xlu0 %v2151
    %v2153 = vpop.xlane.xlu0 %2152
    %v2154 = vsel %vm290, %v2133, 0.0
    %2155 = vadd.xlane.f32.xlu0 %v2154
    %v2156 = vpop.xlane.xlu0 %2155
    %v2157 = vsel %vm290, %v2135, 0.0
    %2158 = vadd.xlane.f32.xlu0 %v2157
    %v2159 = vpop.xlane.xlu0 %2158
    %v2160 = vrcp.pop %v2138
    %v2161 = vrcp.pop %v2141
    %v2162 = vrcp.pop %v2144
    %v2163 = vrcp.pop %v2147
    %v2164 = vrcp.pop %v2150
    %v2165 = vrcp.pop %v2153
    %v2166 = vrcp.pop %v2156
    %v2167 = vrcp.pop %v2159
    %v2168 = vmul.f32 %v2121, %v2160
    %v2169 = vmul.f32 %v2123, %v2161
    %v2170 = vmul.f32 %v2125, %v2162
    %v2171 = vmul.f32 %v2127, %v2163
    %v2172 = vmul.f32 %v2129, %v2164
    %v2173 = vmul.f32 %v2131, %v2165
    %v2174 = vmul.f32 %v2133, %v2166
    %v2175 = vmul.f32 %v2135, %v2167
    %v2176 = vpack.c.bf16 %v2168, %v2168
    %v2177 = vpack.c.bf16 %v2169, %v2169
    %v2178 = vpack.c.bf16 %v2170, %v2170
    %v2179 = vpack.c.bf16 %v2171, %v2171
    %v2180 = vpack.c.bf16 %v2172, %v2172
    %v2181 = vpack.c.bf16 %v2173, %v2173
    %v2182 = vpack.c.bf16 %v2174, %v2174
    %v2183 = vpack.c.bf16 %v2175, %v2175
    %v2184 = vpack.c.bf16 %v1642, %v1642
    %v2185 = vpack.c.bf16 %v1645, %v1645
    %v2186 = vpack.c.bf16 %v1671, %v1671
    %v2187 = vpack.c.bf16 %v1673, %v1673
    %v2188 = vpack.c.bf16 %v1677, %v1677
    %v2189 = vpack.c.bf16 %v1679, %v1679
    %v2190 = vpack.c.bf16 %v1683, %v1683
    %v2191 = vpack.c.bf16 %v1685, %v1685
    %v2193 = vsel %vm290, %v2176, 0
    %v2196 = vsel %vm787, %v2184, 0
    %2198 = vmatprep.subr.bf16.mxu0 0
    %2199 = vmatpush1.bf16.msra.mxu0 %v2196
    %2200 = vmatprep.subr.bf16.mxu0 0
    %2201 = vmatpush1.bf16.msra.mxu0 0
    %2202 = vmatprep.subr.bf16.mxu0 0
    %2203 = vmatpush1.bf16.msra.mxu0 0
    %2204 = vmatprep.subr.bf16.mxu0 0
    %2205 = vmatpush1.bf16.msra.mxu0 0
    %2206 = vmatprep.subr.bf16.mxu0 0
    %2207 = vmatpush1.bf16.msra.mxu0 0
    %2208 = vmatprep.subr.bf16.mxu0 0
    %2209 = vmatpush1.bf16.msra.mxu0 0
    %2210 = vmatprep.subr.bf16.mxu0 0
    %2211 = vmatpush1.bf16.msra.mxu0 0
    %2212 = vmatprep.subr.bf16.mxu0 0
    %2213 = vmatpush1.bf16.msra.mxu0 0
    %2214 = vmatprep.subr.bf16.mxu0 0
    %2215 = vmatpush1.bf16.msra.mxu0 0
    %2216 = vmatprep.subr.bf16.mxu0 0
    %2217 = vmatpush1.bf16.msra.mxu0 0
    %2218 = vmatprep.subr.bf16.mxu0 0
    %2219 = vmatpush1.bf16.msra.mxu0 0
    %2220 = vmatprep.subr.bf16.mxu0 0
    %2221 = vmatpush1.bf16.msra.mxu0 0
    %2222 = vmatprep.subr.bf16.mxu0 0
    %2223 = vmatpush1.bf16.msra.mxu0 0
    %2224 = vmatprep.subr.bf16.mxu0 0
    %2225 = vmatpush1.bf16.msra.mxu0 0
    %2226 = vmatprep.subr.bf16.mxu0 0
    %2227 = vmatpush1.bf16.msra.mxu0 0
    %2228 = vmatprep.subr.bf16.mxu0 0
    %2229 = vmatpush1.bf16.msra.mxu0 0
    %2230 = vmatprep.mubr.bf16.mxu0 0
    %2231 = vmatmul.mubr.bf16.gmra.mrb[0].mxu0 %v2193
    %v2232 = vpop.f32.mrb[0].mxu0
    %v2233 = vadd.f32 0.0, %v2232
    %v2234 = vpop.f32.mrb[0].mxu0
    %v2235 = vpop.f32.mrb[0].mxu0
    %v2236 = vpop.f32.mrb[0].mxu0
    %2237 = vdwg.mxu0
    %v2239 = vsel %vm290, %v2177, 0
    %v2242 = vsel %vm787, %v2185, 0
    %2244 = vmatprep.subr.bf16.mxu0 0
    %2245 = vmatpush1.bf16.msra.mxu0 %v2242
    %2246 = vmatprep.subr.bf16.mxu0 0
    %2247 = vmatpush1.bf16.msra.mxu0 0
    %2248 = vmatprep.subr.bf16.mxu0 0
    %2249 = vmatpush1.bf16.msra.mxu0 0
    %2250 = vmatprep.subr.bf16.mxu0 0
    %2251 = vmatpush1.bf16.msra.mxu0 0
    %2252 = vmatprep.subr.bf16.mxu0 0
    %2253 = vmatpush1.bf16.msra.mxu0 0
    %2254 = vmatprep.subr.bf16.mxu0 0
    %2255 = vmatpush1.bf16.msra.mxu0 0
    %2256 = vmatprep.subr.bf16.mxu0 0
    %2257 = vmatpush1.bf16.msra.mxu0 0
    %2258 = vmatprep.subr.bf16.mxu0 0
    %2259 = vmatpush1.bf16.msra.mxu0 0
    %2260 = vmatprep.subr.bf16.mxu0 0
    %2261 = vmatpush1.bf16.msra.mxu0 0
    %2262 = vmatprep.subr.bf16.mxu0 0
    %2263 = vmatpush1.bf16.msra.mxu0 0
    %2264 = vmatprep.subr.bf16.mxu0 0
    %2265 = vmatpush1.bf16.msra.mxu0 0
    %2266 = vmatprep.subr.bf16.mxu0 0
    %2267 = vmatpush1.bf16.msra.mxu0 0
    %2268 = vmatprep.subr.bf16.mxu0 0
    %2269 = vmatpush1.bf16.msra.mxu0 0
    %2270 = vmatprep.subr.bf16.mxu0 0
    %2271 = vmatpush1.bf16.msra.mxu0 0
    %2272 = vmatprep.subr.bf16.mxu0 0
    %2273 = vmatpush1.bf16.msra.mxu0 0
    %2274 = vmatprep.subr.bf16.mxu0 0
    %2275 = vmatpush1.bf16.msra.mxu0 0
    %2276 = vmatprep.mubr.bf16.mxu0 0
    %2277 = vmatmul.mubr.bf16.gmra.mrb[0].mxu0 %v2239
    %v2278 = vpop.f32.mrb[0].mxu0
    %v2279 = vadd.f32 0.0, %v2278
    %v2280 = vpop.f32.mrb[0].mxu0
    %v2281 = vpop.f32.mrb[0].mxu0
    %v2282 = vpop.f32.mrb[0].mxu0
    %2283 = vdwg.mxu0
    %v2285 = vsel %vm290, %v2178, 0
    %v2288 = vsel %vm787, %v2186, 0
    %2290 = vmatprep.subr.bf16.mxu0 0
    %2291 = vmatpush1.bf16.msra.mxu0 %v2288
    %2292 = vmatprep.subr.bf16.mxu0 0
    %2293 = vmatpush1.bf16.msra.mxu0 0
    %2294 = vmatprep.subr.bf16.mxu0 0
    %2295 = vmatpush1.bf16.msra.mxu0 0
    %2296 = vmatprep.subr.bf16.mxu0 0
    %2297 = vmatpush1.bf16.msra.mxu0 0
    %2298 = vmatprep.subr.bf16.mxu0 0
    %2299 = vmatpush1.bf16.msra.mxu0 0
    %2300 = vmatprep.subr.bf16.mxu0 0
    %2301 = vmatpush1.bf16.msra.mxu0 0
    %2302 = vmatprep.subr.bf16.mxu0 0
    %2303 = vmatpush1.bf16.msra.mxu0 0
    %2304 = vmatprep.subr.bf16.mxu0 0
    %2305 = vmatpush1.bf16.msra.mxu0 0
    %2306 = vmatprep.subr.bf16.mxu0 0
    %2307 = vmatpush1.bf16.msra.mxu0 0
    %2308 = vmatprep.subr.bf16.mxu0 0
    %2309 = vmatpush1.bf16.msra.mxu0 0
    %2310 = vmatprep.subr.bf16.mxu0 0
    %2311 = vmatpush1.bf16.msra.mxu0 0
    %2312 = vmatprep.subr.bf16.mxu0 0
    %2313 = vmatpush1.bf16.msra.mxu0 0
    %2314 = vmatprep.subr.bf16.mxu0 0
    %2315 = vmatpush1.bf16.msra.mxu0 0
    %2316 = vmatprep.subr.bf16.mxu0 0
    %2317 = vmatpush1.bf16.msra.mxu0 0
    %2318 = vmatprep.subr.bf16.mxu0 0
    %2319 = vmatpush1.bf16.msra.mxu0 0
    %2320 = vmatprep.subr.bf16.mxu0 0
    %2321 = vmatpush1.bf16.msra.mxu0 0
    %2322 = vmatprep.mubr.bf16.mxu0 0
    %2323 = vmatmul.mubr.bf16.gmra.mrb[0].mxu0 %v2285
    %v2324 = vpop.f32.mrb[0].mxu0
    %v2325 = vadd.f32 0.0, %v2324
    %v2326 = vpop.f32.mrb[0].mxu0
    %v2327 = vpop.f32.mrb[0].mxu0
    %v2328 = vpop.f32.mrb[0].mxu0
    %2329 = vdwg.mxu0
    %v2331 = vsel %vm290, %v2179, 0
    %v2334 = vsel %vm787, %v2187, 0
    %2336 = vmatprep.subr.bf16.mxu0 0
    %2337 = vmatpush1.bf16.msra.mxu0 %v2334
    %2338 = vmatprep.subr.bf16.mxu0 0
    %2339 = vmatpush1.bf16.msra.mxu0 0
    %2340 = vmatprep.subr.bf16.mxu0 0
    %2341 = vmatpush1.bf16.msra.mxu0 0
    %2342 = vmatprep.subr.bf16.mxu0 0
    %2343 = vmatpush1.bf16.msra.mxu0 0
    %2344 = vmatprep.subr.bf16.mxu0 0
    %2345 = vmatpush1.bf16.msra.mxu0 0
    %2346 = vmatprep.subr.bf16.mxu0 0
    %2347 = vmatpush1.bf16.msra.mxu0 0
    %2348 = vmatprep.subr.bf16.mxu0 0
    %2349 = vmatpush1.bf16.msra.mxu0 0
    %2350 = vmatprep.subr.bf16.mxu0 0
    %2351 = vmatpush1.bf16.msra.mxu0 0
    %2352 = vmatprep.subr.bf16.mxu0 0
    %2353 = vmatpush1.bf16.msra.mxu0 0
    %2354 = vmatprep.subr.bf16.mxu0 0
    %2355 = vmatpush1.bf16.msra.mxu0 0
    %2356 = vmatprep.subr.bf16.mxu0 0
    %2357 = vmatpush1.bf16.msra.mxu0 0
    %2358 = vmatprep.subr.bf16.mxu0 0
    %2359 = vmatpush1.bf16.msra.mxu0 0
    %2360 = vmatprep.subr.bf16.mxu0 0
    %2361 = vmatpush1.bf16.msra.mxu0 0
    %2362 = vmatprep.subr.bf16.mxu0 0
    %2363 = vmatpush1.bf16.msra.mxu0 0
    %2364 = vmatprep.subr.bf16.mxu0 0
    %2365 = vmatpush1.bf16.msra.mxu0 0
    %2366 = vmatprep.subr.bf16.mxu0 0
    %2367 = vmatpush1.bf16.msra.mxu0 0
    %2368 = vmatprep.mubr.bf16.mxu0 0
    %2369 = vmatmul.mubr.bf16.gmra.mrb[0].mxu0 %v2331
    %v2370 = vpop.f32.mrb[0].mxu0
    %v2371 = vadd.f32 0.0, %v2370
    %v2372 = vpop.f32.mrb[0].mxu0
    %v2373 = vpop.f32.mrb[0].mxu0
    %v2374 = vpop.f32.mrb[0].mxu0
    %2375 = vdwg.mxu0
    %v2377 = vsel %vm290, %v2180, 0
    %v2380 = vsel %vm787, %v2188, 0
    %2382 = vmatprep.subr.bf16.mxu0 0
    %2383 = vmatpush1.bf16.msra.mxu0 %v2380
    %2384 = vmatprep.subr.bf16.mxu0 0
    %2385 = vmatpush1.bf16.msra.mxu0 0
    %2386 = vmatprep.subr.bf16.mxu0 0
    %2387 = vmatpush1.bf16.msra.mxu0 0
    %2388 = vmatprep.subr.bf16.mxu0 0
    %2389 = vmatpush1.bf16.msra.mxu0 0
    %2390 = vmatprep.subr.bf16.mxu0 0
    %2391 = vmatpush1.bf16.msra.mxu0 0
    %2392 = vmatprep.subr.bf16.mxu0 0
    %2393 = vmatpush1.bf16.msra.mxu0 0
    %2394 = vmatprep.subr.bf16.mxu0 0
    %2395 = vmatpush1.bf16.msra.mxu0 0
    %2396 = vmatprep.subr.bf16.mxu0 0
    %2397 = vmatpush1.bf16.msra.mxu0 0
    %2398 = vmatprep.subr.bf16.mxu0 0
    %2399 = vmatpush1.bf16.msra.mxu0 0
    %2400 = vmatprep.subr.bf16.mxu0 0
    %2401 = vmatpush1.bf16.msra.mxu0 0
    %2402 = vmatprep.subr.bf16.mxu0 0
    %2403 = vmatpush1.bf16.msra.mxu0 0
    %2404 = vmatprep.subr.bf16.mxu0 0
    %2405 = vmatpush1.bf16.msra.mxu0 0
    %2406 = vmatprep.subr.bf16.mxu0 0
    %2407 = vmatpush1.bf16.msra.mxu0 0
    %2408 = vmatprep.subr.bf16.mxu0 0
    %2409 = vmatpush1.bf16.msra.mxu0 0
    %2410 = vmatprep.subr.bf16.mxu0 0
    %2411 = vmatpush1.bf16.msra.mxu0 0
    %2412 = vmatprep.subr.bf16.mxu0 0
    %2413 = vmatpush1.bf16.msra.mxu0 0
    %2414 = vmatprep.mubr.bf16.mxu0 0
    %2415 = vmatmul.mubr.bf16.gmra.mrb[0].mxu0 %v2377
    %v2416 = vpop.f32.mrb[0].mxu0
    %v2417 = vadd.f32 0.0, %v2416
    %v2418 = vpop.f32.mrb[0].mxu0
    %v2419 = vpop.f32.mrb[0].mxu0
    %v2420 = vpop.f32.mrb[0].mxu0
    %2421 = vdwg.mxu0
    %v2423 = vsel %vm290, %v2181, 0
    %v2426 = vsel %vm787, %v2189, 0
    %2428 = vmatprep.subr.bf16.mxu0 0
    %2429 = vmatpush1.bf16.msra.mxu0 %v2426
    %2430 = vmatprep.subr.bf16.mxu0 0
    %2431 = vmatpush1.bf16.msra.mxu0 0
    %2432 = vmatprep.subr.bf16.mxu0 0
    %2433 = vmatpush1.bf16.msra.mxu0 0
    %2434 = vmatprep.subr.bf16.mxu0 0
    %2435 = vmatpush1.bf16.msra.mxu0 0
    %2436 = vmatprep.subr.bf16.mxu0 0
    %2437 = vmatpush1.bf16.msra.mxu0 0
    %2438 = vmatprep.subr.bf16.mxu0 0
    %2439 = vmatpush1.bf16.msra.mxu0 0
    %2440 = vmatprep.subr.bf16.mxu0 0
    %2441 = vmatpush1.bf16.msra.mxu0 0
    %2442 = vmatprep.subr.bf16.mxu0 0
    %2443 = vmatpush1.bf16.msra.mxu0 0
    %2444 = vmatprep.subr.bf16.mxu0 0
    %2445 = vmatpush1.bf16.msra.mxu0 0
    %2446 = vmatprep.subr.bf16.mxu0 0
    %2447 = vmatpush1.bf16.msra.mxu0 0
    %2448 = vmatprep.subr.bf16.mxu0 0
    %2449 = vmatpush1.bf16.msra.mxu0 0
    %2450 = vmatprep.subr.bf16.mxu0 0
    %2451 = vmatpush1.bf16.msra.mxu0 0
    %2452 = vmatprep.subr.bf16.mxu0 0
    %2453 = vmatpush1.bf16.msra.mxu0 0
    %2454 = vmatprep.subr.bf16.mxu0 0
    %2455 = vmatpush1.bf16.msra.mxu0 0
    %2456 = vmatprep.subr.bf16.mxu0 0
    %2457 = vmatpush1.bf16.msra.mxu0 0
    %2458 = vmatprep.subr.bf16.mxu0 0
    %2459 = vmatpush1.bf16.msra.mxu0 0
    %2460 = vmatprep.mubr.bf16.mxu0 0
    %2461 = vmatmul.mubr.bf16.gmra.mrb[0].mxu0 %v2423
    %v2462 = vpop.f32.mrb[0].mxu0
    %v2463 = vadd.f32 0.0, %v2462
    %v2464 = vpop.f32.mrb[0].mxu0
    %v2465 = vpop.f32.mrb[0].mxu0
    %v2466 = vpop.f32.mrb[0].mxu0
    %2467 = vdwg.mxu0
    %v2469 = vsel %vm290, %v2182, 0
    %v2472 = vsel %vm787, %v2190, 0
    %2474 = vmatprep.subr.bf16.mxu0 0
    %2475 = vmatpush1.bf16.msra.mxu0 %v2472
    %2476 = vmatprep.subr.bf16.mxu0 0
    %2477 = vmatpush1.bf16.msra.mxu0 0
    %2478 = vmatprep.subr.bf16.mxu0 0
    %2479 = vmatpush1.bf16.msra.mxu0 0
    %2480 = vmatprep.subr.bf16.mxu0 0
    %2481 = vmatpush1.bf16.msra.mxu0 0
    %2482 = vmatprep.subr.bf16.mxu0 0
    %2483 = vmatpush1.bf16.msra.mxu0 0
    %2484 = vmatprep.subr.bf16.mxu0 0
    %2485 = vmatpush1.bf16.msra.mxu0 0
    %2486 = vmatprep.subr.bf16.mxu0 0
    %2487 = vmatpush1.bf16.msra.mxu0 0
    %2488 = vmatprep.subr.bf16.mxu0 0
    %2489 = vmatpush1.bf16.msra.mxu0 0
    %2490 = vmatprep.subr.bf16.mxu0 0
    %2491 = vmatpush1.bf16.msra.mxu0 0
    %2492 = vmatprep.subr.bf16.mxu0 0
    %2493 = vmatpush1.bf16.msra.mxu0 0
    %2494 = vmatprep.subr.bf16.mxu0 0
    %2495 = vmatpush1.bf16.msra.mxu0 0
    %2496 = vmatprep.subr.bf16.mxu0 0
    %2497 = vmatpush1.bf16.msra.mxu0 0
    %2498 = vmatprep.subr.bf16.mxu0 0
    %2499 = vmatpush1.bf16.msra.mxu0 0
    %2500 = vmatprep.subr.bf16.mxu0 0
    %2501 = vmatpush1.bf16.msra.mxu0 0
    %2502 = vmatprep.subr.bf16.mxu0 0
    %2503 = vmatpush1.bf16.msra.mxu0 0
    %2504 = vmatprep.subr.bf16.mxu0 0
    %2505 = vmatpush1.bf16.msra.mxu0 0
    %2506 = vmatprep.mubr.bf16.mxu0 0
    %2507 = vmatmul.mubr.bf16.gmra.mrb[0].mxu0 %v2469
    %v2508 = vpop.f32.mrb[0].mxu0
    %v2509 = vadd.f32 0.0, %v2508
    %v2510 = vpop.f32.mrb[0].mxu0
    %v2511 = vpop.f32.mrb[0].mxu0
    %v2512 = vpop.f32.mrb[0].mxu0
    %2513 = vdwg.mxu0
    %v2515 = vsel %vm290, %v2183, 0
    %v2518 = vsel %vm787, %v2191, 0
    %2520 = vmatprep.subr.bf16.mxu0 0
    %2521 = vmatpush1.bf16.msra.mxu0 %v2518
    %2522 = vmatprep.subr.bf16.mxu0 0
    %2523 = vmatpush1.bf16.msra.mxu0 0
    %2524 = vmatprep.subr.bf16.mxu0 0
    %2525 = vmatpush1.bf16.msra.mxu0 0
    %2526 = vmatprep.subr.bf16.mxu0 0
    %2527 = vmatpush1.bf16.msra.mxu0 0
    %2528 = vmatprep.subr.bf16.mxu0 0
    %2529 = vmatpush1.bf16.msra.mxu0 0
    %2530 = vmatprep.subr.bf16.mxu0 0
    %2531 = vmatpush1.bf16.msra.mxu0 0
    %2532 = vmatprep.subr.bf16.mxu0 0
    %2533 = vmatpush1.bf16.msra.mxu0 0
    %2534 = vmatprep.subr.bf16.mxu0 0
    %2535 = vmatpush1.bf16.msra.mxu0 0
    %2536 = vmatprep.subr.bf16.mxu0 0
    %2537 = vmatpush1.bf16.msra.mxu0 0
    %2538 = vmatprep.subr.bf16.mxu0 0
    %2539 = vmatpush1.bf16.msra.mxu0 0
    %2540 = vmatprep.subr.bf16.mxu0 0
    %2541 = vmatpush1.bf16.msra.mxu0 0
    %2542 = vmatprep.subr.bf16.mxu0 0
    %2543 = vmatpush1.bf16.msra.mxu0 0
    %2544 = vmatprep.subr.bf16.mxu0 0
    %2545 = vmatpush1.bf16.msra.mxu0 0
    %2546 = vmatprep.subr.bf16.mxu0 0
    %2547 = vmatpush1.bf16.msra.mxu0 0
    %2548 = vmatprep.subr.bf16.mxu0 0
    %2549 = vmatpush1.bf16.msra.mxu0 0
    %2550 = vmatprep.subr.bf16.mxu0 0
    %2551 = vmatpush1.bf16.msra.mxu0 0
    %2552 = vmatprep.mubr.bf16.mxu0 0
    %2553 = vmatmul.mubr.bf16.gmra.mrb[0].mxu0 %v2515
    %v2554 = vpop.f32.mrb[0].mxu0
    %v2555 = vadd.f32 0.0, %v2554
    %v2556 = vpop.f32.mrb[0].mxu0
    %v2557 = vpop.f32.mrb[0].mxu0
    %v2558 = vpop.f32.mrb[0].mxu0
    %2559 = vdwg.mxu0
    %2560 = vst.msk [vmem:[#allocation2] sm:$0xff] %vm290, %v2233
    %2561 = vst.msk [vmem:[#allocation2 + $0x8] sm:$0xff] %vm290, %v2279
    %2564 = vrot.lane.b32.xlu0 %v2325, 8
    %v2565 = vpop.permute.xlu0 %2564
    %2566 = vrot.lane.b32.xlu0 %v2371, 8
    %v2567 = vpop.permute.xlu0 %2566
    %2570 = vst.msk [vmem:[#allocation2] sm:$0xff] %vm1163, %v2565
    %2571 = vst.msk [vmem:[#allocation2 + $0x8] sm:$0xff] %vm1163, %v2567
    %2574 = vrot.lane.b32.xlu0 %v2417, 16
    %v2575 = vpop.permute.xlu0 %2574
    %2576 = vrot.lane.b32.xlu0 %v2463, 16
    %v2577 = vpop.permute.xlu0 %2576
    %2580 = vst.msk [vmem:[#allocation2] sm:$0xff] %vm1174, %v2575
    %2581 = vst.msk [vmem:[#allocation2 + $0x8] sm:$0xff] %vm1174, %v2577
    %2584 = vrot.lane.b32.xlu0 %v2509, 24
    %v2585 = vpop.permute.xlu0 %2584
    %2586 = vrot.lane.b32.xlu0 %v2555, 24
    %v2587 = vpop.permute.xlu0 %2586
    %2590 = vst.msk [vmem:[#allocation2] sm:$0xff] %vm1185, %v2585
    %2591 = vst.msk [vmem:[#allocation2 + $0x8] sm:$0xff] %vm1185, %v2587
    %v2592 = vld [vmem:[#allocation2] sm:$0xff]
    %v2593 = vld [vmem:[#allocation2 + $0x8] sm:$0xff]
    %v2594 = vpack.c.bf16 %v2593, %v2592
    %s2595 = scalar_lea.vmem %s6, 16
    %v2596 = vld [vmem:[%s2595] sm:$0xf]
    %v2597 = vld [vmem:[%s2595 + $0x4] sm:$0xf]
    %v2598 = vld [vmem:[%s2595 + $0x8] sm:$0xf]
    %v2599 = vld [vmem:[%s2595 + $0xc] sm:$0xf]
    %s2600 = scalar_lea.vmem %s7, 1
    %v2601 = vld [vmem:[%s2600] sm:$0x1]
    %v2603 = vlaneseq
    %v2604 = vshrl.u32 %v2603, 7
    %v2605 = vsub.s32 0, %v2604
    %v2606 = vrot.slane %v2601, %v2605
    %v2612 = vunpack.c.l.b16 %v2596
    %v2613 = vunpack.c.l.b16 %v2597
    %v2614 = vunpack.c.l.b16 %v2598
    %v2615 = vunpack.c.l.b16 %v2599
    %v2616 = vpack.c.b16 %v2613, %v2612
    %v2617 = vpack.c.b16 %v2615, %v2614
    %v2621 = vsel %vm127, %v2594, 0
    %2623 = vmatprep.subr.bf16.mxu0 0
    %2624 = vmatpush1.bf16.msra.mxu0 %v2616
    %2625 = vmatprep.subr.bf16.mxu0 0
    %2626 = vmatpush1.bf16.msra.mxu0 %v2617
    %2627 = vmatprep.subr.bf16.mxu0 0
    %2628 = vmatpush1.bf16.msra.mxu0 0
    %2629 = vmatprep.subr.bf16.mxu0 0
    %2630 = vmatpush1.bf16.msra.mxu0 0
    %2631 = vmatprep.subr.bf16.mxu0 0
    %2632 = vmatpush1.bf16.msra.mxu0 0
    %2633 = vmatprep.subr.bf16.mxu0 0
    %2634 = vmatpush1.bf16.msra.mxu0 0
    %2635 = vmatprep.subr.bf16.mxu0 0
    %2636 = vmatpush1.bf16.msra.mxu0 0
    %2637 = vmatprep.subr.bf16.mxu0 0
    %2638 = vmatpush1.bf16.msra.mxu0 0
    %2639 = vmatprep.subr.bf16.mxu0 0
    %2640 = vmatpush1.bf16.msra.mxu0 0
    %2641 = vmatprep.subr.bf16.mxu0 0
    %2642 = vmatpush1.bf16.msra.mxu0 0
    %2643 = vmatprep.subr.bf16.mxu0 0
    %2644 = vmatpush1.bf16.msra.mxu0 0
    %2645 = vmatprep.subr.bf16.mxu0 0
    %2646 = vmatpush1.bf16.msra.mxu0 0
    %2647 = vmatprep.subr.bf16.mxu0 0
    %2648 = vmatpush1.bf16.msra.mxu0 0
    %2649 = vmatprep.subr.bf16.mxu0 0
    %2650 = vmatpush1.bf16.msra.mxu0 0
    %2651 = vmatprep.subr.bf16.mxu0 0
    %2652 = vmatpush1.bf16.msra.mxu0 0
    %2653 = vmatprep.subr.bf16.mxu0 0
    %2654 = vmatpush1.bf16.msra.mxu0 0
    %2655 = vmatprep.mubr.bf16.mxu0 0
    %2656 = vmatmul.mubr.bf16.gmra.mrb[0].mxu0 %v2621
    %v2657 = vpop.f32.mrb[0].mxu0
    %v2658 = vadd.f32 %v2606, %v2657
    %v2659 = vpop.f32.mrb[0].mxu0
    %v2660 = vpop.f32.mrb[0].mxu0
    %v2661 = vadd.f32 %v2606, %v2660
    %v2662 = vpop.f32.mrb[0].mxu0
    %2663 = vdwg.mxu0
    %v2664 = vadd.f32 %v1504, %v2658
    %v2665 = vadd.f32 %v1505, %v2661
    %s2666 = scalar_lea.vmem %s8, 1
    %v2667 = vld [vmem:[%s2666] sm:$0x1]
    %s2668 = scalar_lea.vmem %s9, 1
    %v2669 = vld [vmem:[%s2668] sm:$0x1]
    %v2670 = vsel %vm127, %v2664, 0.0
    %2671 = vadd.xlane.f32.xlu0 %v2670
    %v2672 = vpop.xlane.xlu0 %2671
    %v2673 = vsel %vm127, %v2665, 0.0
    %2674 = vadd.xlane.f32.xlu0 %v2673
    %v2675 = vpop.xlane.xlu0 %2674
    %v2676 = vmul.f32 %v2672, %v1268
    %v2677 = vmul.f32 %v2675, %v1268
    %v2678 = vsub.f32 %v2664, %v2676
    %v2679 = vsub.f32 %v2665, %v2677
    %v2680 = vmul.f32 %v2678, %v2678
    %v2681 = vmul.f32 %v2679, %v2679
    %v2682 = vsel %vm127, %v2680, 0.0
    %2683 = vadd.xlane.f32.xlu0 %v2682
    %v2684 = vpop.xlane.xlu0 %2683
    %v2685 = vsel %vm127, %v2681, 0.0
    %2686 = vadd.xlane.f32.xlu0 %v2685
    %v2687 = vpop.xlane.xlu0 %2686
    %v2688 = vmul.f32 %v2684, %v1268
    %v2689 = vmul.f32 %v2687, %v1268
    %v2690 = vadd.f32 %v2688, 1e-05
    %v2691 = vadd.f32 %v2689, 1e-05
    %v2692 = vrsqrt.pop %v2690
    %v2693 = vrsqrt.pop %v2691
    %v2694 = vmul.f32 %v2678, %v2692
    %v2695 = vmul.f32 %v2679, %v2693
    %v2697 = vlaneseq
    %v2698 = vshrl.u32 %v2697, 7
    %v2699 = vsub.s32 0, %v2698
    %v2700 = vrot.slane %v2667, %v2699
    %v2702 = vmul.f32 %v2694, %v2700
    %v2703 = vmul.f32 %v2695, %v2700
    %v2705 = vlaneseq
    %v2706 = vshrl.u32 %v2705, 7
    %v2707 = vsub.s32 0, %v2706
    %v2708 = vrot.slane %v2669, %v2707
    %v2710 = vadd.f32 %v2702, %v2708
    %v2711 = vadd.f32 %v2703, %v2708
    %v2712 = vpack.c.bf16 %v2711, %v2710
    %s2713 = scalar_lea.vmem [#allocation8], 16
    %v2714 = vld [vmem:[%s2713] sm:$0xf]
    %v2715 = vld [vmem:[%s2713 + $0x4] sm:$0xf]
    %v2716 = vld [vmem:[%s2713 + $0x8] sm:$0xf]
    %v2717 = vld [vmem:[%s2713 + $0xc] sm:$0xf]
    %s2718 = scalar_lea.vmem %s11, 1
    %v2719 = vld [vmem:[%s2718] sm:$0x1]
    %v2721 = vlaneseq
    %v2722 = vshrl.u32 %v2721, 7
    %v2723 = vsub.s32 0, %v2722
    %v2724 = vrot.slane %v2719, %v2723
    %v2730 = vunpack.c.l.b16 %v2714
    %v2731 = vunpack.c.l.b16 %v2715
    %v2732 = vunpack.c.l.b16 %v2716
    %v2733 = vunpack.c.l.b16 %v2717
    %v2734 = vpack.c.b16 %v2731, %v2730
    %v2735 = vpack.c.b16 %v2733, %v2732
    %v2739 = vsel %vm127, %v2712, 0
    %2741 = vmatprep.subr.bf16.mxu0 0
    %2742 = vmatpush1.bf16.msra.mxu0 %v2734
    %2743 = vmatprep.subr.bf16.mxu0 0
    %2744 = vmatpush1.bf16.msra.mxu0 %v2735
    %2745 = vmatprep.subr.bf16.mxu0 0
    %2746 = vmatpush1.bf16.msra.mxu0 0
    %2747 = vmatprep.subr.bf16.mxu0 0
    %2748 = vmatpush1.bf16.msra.mxu0 0
    %2749 = vmatprep.subr.bf16.mxu0 0
    %2750 = vmatpush1.bf16.msra.mxu0 0
    %2751 = vmatprep.subr.bf16.mxu0 0
    %2752 = vmatpush1.bf16.msra.mxu0 0
    %2753 = vmatprep.subr.bf16.mxu0 0
    %2754 = vmatpush1.bf16.msra.mxu0 0
    %2755 = vmatprep.subr.bf16.mxu0 0
    %2756 = vmatpush1.bf16.msra.mxu0 0
    %2757 = vmatprep.subr.bf16.mxu0 0
    %2758 = vmatpush1.bf16.msra.mxu0 0
    %2759 = vmatprep.subr.bf16.mxu0 0
    %2760 = vmatpush1.bf16.msra.mxu0 0
    %2761 = vmatprep.subr.bf16.mxu0 0
    %2762 = vmatpush1.bf16.msra.mxu0 0
    %2763 = vmatprep.subr.bf16.mxu0 0
    %2764 = vmatpush1.bf16.msra.mxu0 0
    %2765 = vmatprep.subr.bf16.mxu0 0
    %2766 = vmatpush1.bf16.msra.mxu0 0
    %2767 = vmatprep.subr.bf16.mxu0 0
    %2768 = vmatpush1.bf16.msra.mxu0 0
    %2769 = vmatprep.subr.bf16.mxu0 0
    %2770 = vmatpush1.bf16.msra.mxu0 0
    %2771 = vmatprep.subr.bf16.mxu0 0
    %2772 = vmatpush1.bf16.msra.mxu0 0
    %2773 = vmatprep.mubr.bf16.mxu0 0
    %2774 = vmatmul.mubr.bf16.gmra.mrb[0].mxu0 %v2739
    %v2775 = vpop.f32.mrb[0].mxu0
    %v2776 = vadd.f32 %v2724, %v2775
    %v2777 = vpop.f32.mrb[0].mxu0
    %v2778 = vpop.f32.mrb[0].mxu0
    %v2779 = vadd.f32 %v2724, %v2778
    %v2780 = vpop.f32.mrb[0].mxu0
    %2781 = vdwg.mxu0
    %v2782 = vmax.f32 %v2776, 0.0
    %v2783 = vmax.f32 %v2779, 0.0
    %v2784 = vpack.c.bf16 %v2783, %v2782
    %s2785 = scalar_lea.vmem %s12, 32
    %v2786 = vld [vmem:[%s2785] sm:$0xf]
    %v2787 = vld [vmem:[%s2785 + $0x4] sm:$0xf]
    %v2788 = vld [vmem:[%s2785 + $0x8] sm:$0xf]
    %v2789 = vld [vmem:[%s2785 + $0xc] sm:$0xf]
    %v2790 = vld [vmem:[%s2785 + $0x10] sm:$0xf]
    %v2791 = vld [vmem:[%s2785 + $0x14] sm:$0xf]
    %v2792 = vld [vmem:[%s2785 + $0x18] sm:$0xf]
    %v2793 = vld [vmem:[%s2785 + $0x1c] sm:$0xf]
    %s2794 = scalar_lea.vmem %s13, 1
    %v2795 = vld [vmem:[%s2794] sm:$0x1]
    %v2797 = vlaneseq
    %v2798 = vshrl.u32 %v2797, 7
    %v2799 = vsub.s32 0, %v2798
    %v2800 = vrot.slane %v2795, %v2799
    %v2810 = vunpack.c.l.b16 %v2786
    %v2811 = vunpack.c.l.b16 %v2787
    %v2812 = vunpack.c.l.b16 %v2788
    %v2813 = vunpack.c.l.b16 %v2789
    %v2814 = vunpack.c.l.b16 %v2790
    %v2815 = vunpack.c.l.b16 %v2791
    %v2816 = vunpack.c.l.b16 %v2792
    %v2817 = vunpack.c.l.b16 %v2793
    %v2818 = vpack.c.b16 %v2811, %v2810
    %v2819 = vpack.c.b16 %v2813, %v2812
    %v2820 = vpack.c.b16 %v2815, %v2814
    %v2821 = vpack.c.b16 %v2817, %v2816
    %v2827 = vsel %vm1415, %v2784, 0
    %2829 = vmatprep.subr.bf16.mxu0 0
    %2830 = vmatpush1.bf16.msra.mxu0 %v2818
    %2831 = vmatprep.subr.bf16.mxu0 0
    %2832 = vmatpush1.bf16.msra.mxu0 %v2819
    %2833 = vmatprep.subr.bf16.mxu0 0
    %2834 = vmatpush1.bf16.msra.mxu0 %v2820
    %2835 = vmatprep.subr.bf16.mxu0 0
    %2836 = vmatpush1.bf16.msra.mxu0 %v2821
    %2837 = vmatprep.subr.bf16.mxu0 0
    %2838 = vmatpush1.bf16.msra.mxu0 0
    %2839 = vmatprep.subr.bf16.mxu0 0
    %2840 = vmatpush1.bf16.msra.mxu0 0
    %2841 = vmatprep.subr.bf16.mxu0 0
    %2842 = vmatpush1.bf16.msra.mxu0 0
    %2843 = vmatprep.subr.bf16.mxu0 0
    %2844 = vmatpush1.bf16.msra.mxu0 0
    %2845 = vmatprep.subr.bf16.mxu0 0
    %2846 = vmatpush1.bf16.msra.mxu0 0
    %2847 = vmatprep.subr.bf16.mxu0 0
    %2848 = vmatpush1.bf16.msra.mxu0 0
    %2849 = vmatprep.subr.bf16.mxu0 0
    %2850 = vmatpush1.bf16.msra.mxu0 0
    %2851 = vmatprep.subr.bf16.mxu0 0
    %2852 = vmatpush1.bf16.msra.mxu0 0
    %2853 = vmatprep.subr.bf16.mxu0 0
    %2854 = vmatpush1.bf16.msra.mxu0 0
    %2855 = vmatprep.subr.bf16.mxu0 0
    %2856 = vmatpush1.bf16.msra.mxu0 0
    %2857 = vmatprep.subr.bf16.mxu0 0
    %2858 = vmatpush1.bf16.msra.mxu0 0
    %2859 = vmatprep.subr.bf16.mxu0 0
    %2860 = vmatpush1.bf16.msra.mxu0 0
    %2861 = vmatprep.mubr.bf16.mxu0 0
    %2862 = vmatmul.mubr.bf16.gmra.mrb[0].mxu0 %v2827
    %v2863 = vpop.f32.mrb[0].mxu0
    %v2864 = vadd.f32 %v2800, %v2863
    %v2865 = vpop.f32.mrb[0].mxu0
    %v2866 = vpop.f32.mrb[0].mxu0
    %v2867 = vadd.f32 %v2800, %v2866
    %v2868 = vpop.f32.mrb[0].mxu0
    %2869 = vdwg.mxu0
    %v2870 = vadd.f32 %v2710, %v2864
    %v2871 = vadd.f32 %v2711, %v2867
    %s2872 = scalar_lea.vmem %s14, 1
    %v2873 = vld [vmem:[%s2872] sm:$0x1]
    %s2874 = scalar_lea.vmem %s15, 1
    %v2875 = vld [vmem:[%s2874] sm:$0x1]
    %v2876 = vsel %vm127, %v2870, 0.0
    %2877 = vadd.xlane.f32.xlu0 %v2876
    %v2878 = vpop.xlane.xlu0 %2877
    %v2879 = vsel %vm127, %v2871, 0.0
    %2880 = vadd.xlane.f32.xlu0 %v2879
    %v2881 = vpop.xlane.xlu0 %2880
    %v2882 = vmul.f32 %v2878, %v1268
    %v2883 = vmul.f32 %v2881, %v1268
    %v2884 = vsub.f32 %v2870, %v2882
    %v2885 = vsub.f32 %v2871, %v2883
    %v2886 = vmul.f32 %v2884, %v2884
    %v2887 = vmul.f32 %v2885, %v2885
    %v2888 = vsel %vm127, %v2886, 0.0
    %2889 = vadd.xlane.f32.xlu0 %v2888
    %v2890 = vpop.xlane.xlu0 %2889
    %v2891 = vsel %vm127, %v2887, 0.0
    %2892 = vadd.xlane.f32.xlu0 %v2891
    %v2893 = vpop.xlane.xlu0 %2892
    %v2894 = vmul.f32 %v2890, %v1268
    %v2895 = vmul.f32 %v2893, %v1268
    %v2896 = vadd.f32 %v2894, 1e-05
    %v2897 = vadd.f32 %v2895, 1e-05
    %v2898 = vrsqrt.pop %v2896
    %v2899 = vrsqrt.pop %v2897
    %v2900 = vmul.f32 %v2884, %v2898
    %v2901 = vmul.f32 %v2885, %v2899
    %v2903 = vlaneseq
    %v2904 = vshrl.u32 %v2903, 7
    %v2905 = vsub.s32 0, %v2904
    %v2906 = vrot.slane %v2873, %v2905
    %v2908 = vmul.f32 %v2900, %v2906
    %v2909 = vmul.f32 %v2901, %v2906
    %v2911 = vlaneseq
    %v2912 = vshrl.u32 %v2911, 7
    %v2913 = vsub.s32 0, %v2912
    %v2914 = vrot.slane %v2875, %v2913
    %v2916 = vadd.f32 %v2908, %v2914
    %v2917 = vadd.f32 %v2909, %v2914
    %2918 = vst.msk [vmem:[#allocation9] sm:$0xff] %vm127, %v2916
    %2919 = vst.msk [vmem:[#allocation9 + $0x8] sm:$0xff] %vm127, %v2917
    // Predicated region
    $region78: #{tpu_custom_call.1} parent=1 // pred_check
      _
    $region79: #{tpu_custom_call.1} parent=1 // pred_check_branch
      %2921 = sbr.rel (0) target = $region81
    $region80: #{tpu_custom_call.1} parent=1 // pred_region
      %s2923 = ssub.s32 256, 256
      %2924 = vsyncadd [#allocation5], %s2923
      %s2925 = sshll.u32 [#allocation9], 4
      %s2926 = int_to_ptr.vmem [resolvable:$true] %s2925
      %2931 = dma.vmem_to_hbm [thread:$0]  %s2926, 256, %s16, [#allocation5], 128, 128, 8
    $region81: #{tpu_custom_call.1} parent=1 // pred_fallthru
      _
    // Predicated region
    $region82: #{tpu_custom_call.1} parent=1 // pred_check
      _
    $region83: #{tpu_custom_call.1} parent=1 // pred_check_branch
      %2933 = sbr.rel (0) target = $region85
    $region84: #{tpu_custom_call.1} parent=1 // pred_region
      %2934 = dma.done [#allocation5], 256
    $region85: #{tpu_custom_call.1} parent=1 // pred_fallthru
      _
    %2935 = vsyncpa [#allocation4], 1
    %2936 = vsyncpa [#allocation7], 1
    %2937 = vsyncpa [#allocation5], 1

</llo_original>
